<compile_context>
chip_gen: v6e
topology: v6e:2x2x1
jax: 0.10.0
libtpu: 0.0.40
codegen_flags: <defaults>
</compile_context>

<pallas_src>
import functools
from math import ceil

import jax
import jax.numpy as jnp
from jax.experimental import pallas as pl
from jax.experimental.pallas import tpu as pltpu

EPS = 1e-15  # same as torch_geometric dense_diff_pool


# ----------------------------------------------------------------------------
# Fused kernel: one grid step processes G graphs end-to-end, fully vectorized.
# ----------------------------------------------------------------------------
def _diffpool_fused_kernel(
        x_ref, adj_ref, mask_ref,          # packed graph data (G graphs/step)
        wa_ref, wb_ref, wc_ref,            # fused conv_in+pool0 weights
        wq_ref,                            # block1 weights (stacked)
        wh_ref,                            # head weights (stacked, lane-padded)
        vb_ref,                            # vector bank: biases / BN (f32)
        rep_ref,                           # (C, G*C) column-replication pattern
        out_ref,
        *, G, N, C, H, num_classes):
    GN, GC = G * N, G * C
    LANES = out_ref.shape[-1]
    f32, bf16 = jnp.float32, jnp.bfloat16

    def mm(a, b):
        # bf16 MXU matmul with f32 accumulation.
        return jnp.dot(a.astype(bf16), b.astype(bf16), preferred_element_type=f32)

    def mm_t0(a, b):
        # (K, M), (K, N) -> (M, N): contracts the leading axis (A^T B without
        # materializing an explicit transpose).
        return jax.lax.dot_general(a.astype(bf16), b.astype(bf16),
                                   (((0,), (0,)), ((), ())),
                                   preferred_element_type=f32)

    # ---- packed per-step graph data (G graphs stacked along the node axis) --
    x = x_ref[0]                      # (GN, Fin)  f32
    a_bd = adj_ref[0]                 # (GN, GN)   bf16 block-diagonal {0,1}
    mask = mask_ref[0]                # (GN, 1)    f32 {0,1}

    # ---- constant patterns from iota (no int div/mod, no HBM traffic) -------
    eye_nn = (jax.lax.broadcasted_iota(jnp.int32, (GN, GN), 0)
              == jax.lax.broadcasted_iota(jnp.int32, (GN, GN), 1))
    eye_cc = (jax.lax.broadcasted_iota(jnp.int32, (GC, GC), 0)
              == jax.lax.broadcasted_iota(jnp.int32, (GC, GC), 1))
    # graph-membership indicators (range tests): used for the block-diag
    # packing of S and for the per-graph global-add pools (MXU, not XLU).
    r = jax.lax.broadcasted_iota(jnp.int32, (G, GN), 1)
    gr = jax.lax.broadcasted_iota(jnp.int32, (G, GN), 0)
    ind_n = jnp.logical_and(r >= gr * N, r < (gr + 1) * N).astype(f32)   # (G, GN)
    q = jax.lax.broadcasted_iota(jnp.int32, (G, GC), 1)
    gq = jax.lax.broadcasted_iota(jnp.int32, (G, GC), 0)
    ind_c = jnp.logical_and(q >= gq * C, q < (gq + 1) * C).astype(f32)   # (G, GC)
    sel = mm_t0(ind_n, ind_c)         # (GN, GC) exact {0,1} same-graph mask

    # ---- self-loops + symmetric normalization, shared by conv_in & pool0 ----
    # (adjacency stays bf16; degree sums accumulate in f32).
    a_sl = jnp.where(eye_nn, jnp.array(1.0, bf16), a_bd)            # (GN, GN) bf16
    deg = jnp.maximum(jnp.sum(a_sl, axis=-1, dtype=f32, keepdims=True), 1.0)
    dis = jax.lax.rsqrt(deg)                                         # (GN, 1)  f32

    # ---- conv_in + pool0, fused column-wise (same input, adj, mask) ---------
    bA = vb_ref[0:1, 0:2 * H]         # [ci_b1 | p_b1]
    bB = vb_ref[1:2, 0:2 * H]         # [ci_b2 | p_b2]
    bC = vb_ref[2:3, 0:H + C]         # [ci_bl | p_bl]

    def gcn(h_in, w, b, msk):
        # DenseGCNConv: D^-1/2 (A+I) D^-1/2 (H W) + b, mask, then ReLU (Block).
        hw = mm(h_in, w)
        o = dis * mm(a_sl, dis * hw) + b
        return jnp.maximum(o * msk, 0.0)

    h1 = gcn(x, wa_ref[...], bA, mask)                               # (GN, 2H)
    h2 = gcn(h1, wb_ref[...], bB, mask)                              # (GN, 2H)
    # JumpingKnowledge('cat') + Linear + ReLU + mask for both blocks at once:
    # cat([h1, h2]) @ Wl == h1 @ Wl[:H] + h2 @ Wl[H:], block-diag over blocks.
    lin = mm(h1, wc_ref[0:2 * H, :]) + mm(h2, wc_ref[2 * H:4 * H, :]) + bC
    lin = jnp.maximum(lin, 0.0) * mask                               # (GN, H+C)
    h_conv = lin[:, 0:H]              # conv_in block output  (GN, H)
    s_raw = lin[:, H:H + C]           # pool0 block output    (GN, C)

    pooled1 = mm(ind_n, h_conv)       # (G, H) global add pool, layer 0

    # ---- dense_diff_pool -----------------------------------------------------
    s_max = jnp.max(s_raw, axis=-1, keepdims=True)
    es = jnp.exp(s_raw - s_max)
    sm = es / jnp.sum(es, axis=-1, keepdims=True) * mask             # (GN, C)
    # block-diagonal S: replicate the C columns across the G column blocks
    # (tiny constant-pattern MXU matmul) and zero the off-graph blocks.
    s_bd = mm(sm, rep_ref[...]) * sel                                # (GN, GC)

    # h_conv is already masked, so the x*mask inside dense_diff_pool is a no-op.
    xp = mm_t0(s_bd, h_conv)          # (GC, H)   S^T X
    sa = mm_t0(s_bd, a_bd)            # (GC, GN)  S^T A
    adjp = mm(sa, s_bd)               # (GC, GC)  block-diag coarse adjacency
    sts = mm_t0(s_bd, s_bd)           # (GC, GC)  S^T S

    # ||A - S S^T||_F^2 = ||A||^2 - 2 tr(S^T A S) + ||S^T S||_F^2
    # (A is {0,1}, so ||A||^2 == sum(A); no N x N intermediate, f32 accumulation)
    norm_a = jnp.sum(a_bd, dtype=f32, keepdims=True)                 # (1, 1)
    tr = jnp.sum(jnp.where(eye_cc, adjp, 0.0), keepdims=True)        # (1, 1)
    link_tot = norm_a - 2.0 * tr + jnp.sum(sts * sts, keepdims=True)
    ent_tot = jnp.sum(-sm * jnp.log(sm + EPS), keepdims=True)        # (1, 1)

    # ---- block1 on the packed coarsened graphs (mask is None after pooling) -
    adjp_sl = jnp.where(eye_cc, 1.0, adjp)                           # (GC, GC) f32
    disc = jax.lax.rsqrt(jnp.maximum(jnp.sum(adjp_sl, axis=-1, keepdims=True), 1.0))
    adjp_bf = adjp_sl.astype(bf16)

    def gcn_c(h_in, w, b):
        o = disc * mm(adjp_bf, disc * mm(h_in, w)) + b
        return jnp.maximum(o, 0.0)

    g1 = gcn_c(xp, wq_ref[0:H, :], vb_ref[3:4, 0:H])                 # (GC, H)
    g2 = gcn_c(g1, wq_ref[H:2 * H, :], vb_ref[4:5, 0:H])
    b1_out = jnp.maximum(mm(g1, wq_ref[2 * H:3 * H, :])
                         + mm(g2, wq_ref[3 * H:4 * H, :])
                         + vb_ref[5:6, 0:H], 0.0)                    # (GC, H)
    pooled2 = mm(ind_c, b1_out)       # (G, H) global add pool, layer 1

    # ---- head, batched over the G graphs ------------------------------------
    # cat([pooled1, pooled2]) handled with the BN / lin1 weights pre-split.
    xn1 = pooled1 * vb_ref[6:7, 0:H] + vb_ref[8:9, 0:H]
    xn2 = pooled2 * vb_ref[7:8, 0:H] + vb_ref[9:10, 0:H]
    hh = jnp.maximum(mm(xn1, wh_ref[0:H, 0:H]) + mm(xn2, wh_ref[H:2 * H, 0:H])
                     + vb_ref[10:11, 0:H], 0.0)                      # (G, H)
    logits = mm(hh, wh_ref[2 * H:3 * H, :]) + vb_ref[11:12, :]       # (G, LANES)
    lmax = jnp.max(logits, axis=-1, keepdims=True)
    le = jnp.exp(logits - lmax)       # padded lanes (-1e30 bias) underflow to 0
    probs = le / jnp.sum(le, axis=-1, keepdims=True)                 # (G, LANES)

    # Pack probs + the step's two loss partials into one lane-dense store.
    lane = jax.lax.broadcasted_iota(jnp.int32, (G, LANES), 1)
    row = jax.lax.broadcasted_iota(jnp.int32, (G, LANES), 0)
    out = jnp.where(jnp.logical_and(lane == num_classes, row == 0), link_tot, probs)
    out = jnp.where(jnp.logical_and(lane == num_classes + 1, row == 0), ent_tot, out)
    out_ref[0] = out


# ----------------------------------------------------------------------------
# Wrapper: one pallas_call for the whole forward pass.
# ----------------------------------------------------------------------------
def _pick_graphs_per_step(batch, num_nodes):
    """Largest divisor G of `batch` whose block-diagonal G*N adjacency stays
    within ~one MXU-friendly tile (G*N <= 256) and a small VMEM budget (keeps
    v7x's 64 MiB physical VMEM safe while v5e/v6e simply get fewer steps)."""
    best = 1
    for g in range(1, batch + 1):
        if batch % g:
            continue
        gn = g * num_nodes
        if gn > 256 or 2 * gn * gn * 2 > (8 << 20):   # double-buffered bf16 adj
            break
        best = g
    return best


def diffpool_forward(params, x, adj, mask, *, graphs_per_step=None):
    B, N, Fin = x.shape
    ci_w1, ci_b1, ci_w2, ci_b2, ci_wl, ci_bl = params['conv_in']
    p_w1, p_b1, p_w2, p_b2, p_wl, p_bl = params['pool0']
    q_w1, q_b1, q_w2, q_b2, q_wl, q_bl = params['block1']
    gamma, beta, run_mean, run_var, hw1, hb1, hw2, hb2 = params['head']
    H = ci_w1.shape[1]
    C = p_wl.shape[1]
    NC = hw2.shape[1]
    LANES = 128 * max(1, -(-max(NC + 2, 2 * H, H + C) // 128))

    G = graphs_per_step if graphs_per_step is not None else _pick_graphs_per_step(B, N)
    assert B % G == 0, "batch must be divisible by graphs_per_step"
    S = B // G
    GN, GC = G * N, G * C

    f32, bf16 = jnp.float32, jnp.bfloat16

    # ---- packed graph data: G graphs per grid step, nodes stacked -----------
    x_s = x.astype(f32).reshape(S, GN, Fin)
    mask_s = mask.astype(f32).reshape(S, GN, 1)
    adj_g = adj.astype(f32).reshape(S, G, N, N)
    eye_g = jnp.eye(G, dtype=f32)
    adj_bd = (adj_g[:, :, :, None, :] * eye_g[None, :, None, :, None]
              ).reshape(S, GN, GN).astype(bf16)      # block-diag, exact for {0,1}

    # ---- fused conv_in + pool0 weights (shared input/adj/mask) --------------
    def blockdiag(a, b):
        z = jnp.zeros((a.shape[0] + b.shape[0], a.shape[1] + b.shape[1]), f32)
        return z.at[:a.shape[0], :a.shape[1]].set(a).at[a.shape[0]:, a.shape[1]:].set(b)

    WA = jnp.concatenate([ci_w1, p_w1], axis=1).astype(bf16)                 # (Fin, 2H)
    WB = blockdiag(ci_w2, p_w2).astype(bf16)                                 # (2H, 2H)
    WC = jnp.concatenate([blockdiag(ci_wl[:H], p_wl[:H]),
                          blockdiag(ci_wl[H:], p_wl[H:])], axis=0).astype(bf16)   # (4H, H+C)
    WQ = jnp.concatenate([q_w1, q_w2, q_wl[:H], q_wl[H:]], axis=0).astype(bf16)   # (4H, H)

    # head: BatchNorm1d (eval) folded into scale/shift; classifier lane-padded
    # to LANES with a -1e30 bias so the in-kernel softmax over all lanes is exact.
    inv_std = jax.lax.rsqrt(run_var + 1e-5)
    bn_scale = gamma * inv_std
    bn_shift = beta - run_mean * bn_scale

    def pad_cols(w):
        return jnp.zeros((w.shape[0], LANES), f32).at[:, :w.shape[1]].set(w)

    WH = jnp.concatenate([pad_cols(hw1[:H]), pad_cols(hw1[H:]),
                          pad_cols(hw2)], axis=0).astype(bf16)               # (3H, LANES)

    # all 1-D params in one f32 "vector bank" (row layout mirrored in-kernel).
    def vrow(v, fill=0.0):
        return jnp.full((LANES,), fill, f32).at[:v.shape[0]].set(v.astype(f32))

    VB = jnp.stack([
        vrow(jnp.concatenate([ci_b1, p_b1])),     # 0: conv1 biases [ci | pool]
        vrow(jnp.concatenate([ci_b2, p_b2])),     # 1: conv2 biases
        vrow(jnp.concatenate([ci_bl, p_bl])),     # 2: jump-linear biases
        vrow(q_b1), vrow(q_b2), vrow(q_bl),       # 3-5: block1 biases
        vrow(bn_scale[:H]), vrow(bn_scale[H:]),   # 6-7: BN scale (split)
        vrow(bn_shift[:H]), vrow(bn_shift[H:]),   # 8-9: BN shift (split)
        vrow(hb1),                                # 10: lin1 bias
        vrow(hb2, fill=-1e30),                    # 11: lin2 bias (-1e30 pad)
    ])                                            # (12, LANES)

    # constant replication pattern used to tile S across the G column blocks.
    REP = (jnp.arange(GC)[None, :] % C == jnp.arange(C)[:, None]).astype(bf16)   # (C, GC)

    data_args = (x_s, adj_bd, mask_s)
    param_args = (WA, WB, WC, WQ, WH, VB, REP)

    in_specs = [
        pl.BlockSpec((1, GN, Fin), lambda b: (b, 0, 0)),
        pl.BlockSpec((1, GN, GN), lambda b: (b, 0, 0)),
        pl.BlockSpec((1, GN, 1), lambda b: (b, 0, 0)),
    ] + [pl.BlockSpec(p.shape, lambda b, nd=p.ndim: (0,) * nd) for p in param_args]

    # explicit VMEM budget (double-buffered data blocks + params), capped well
    # below v7x's 64 MiB physical VMEM.
    blk_bytes = GN * Fin * 4 + GN * GN * 2 + GN * 4 + G * LANES * 4
    par_bytes = sum(int(p.size) * p.dtype.itemsize for p in param_args)
    vmem_limit = int(min(48 << 20, max(24 << 20, 4 * blk_bytes + 2 * par_bytes + (4 << 20))))

    out = pl.pallas_call(
        functools.partial(_diffpool_fused_kernel,
                          G=G, N=N, C=C, H=H, num_classes=NC),
        grid=(S,),
        in_specs=in_specs,
        out_specs=pl.BlockSpec((1, G, LANES), lambda b: (b, 0, 0)),
        out_shape=jax.ShapeDtypeStruct((S, G, LANES), jnp.float32),
        compiler_params=pltpu.CompilerParams(
            dimension_semantics=("parallel",),
            vmem_limit_bytes=vmem_limit),
    )(*data_args, *param_args)

    out = out.reshape(B, LANES)
    probs = out[:, :NC]
    # link = ||A - S S^T||_F over the whole batch / adj.numel(); clamp before
    # sqrt (the trace identity is mildly cancellation-prone in f32).
    link_loss = jnp.sqrt(jnp.maximum(jnp.sum(out[:, NC]), 0.0)) / (B * N * N)
    ent_loss = jnp.sum(out[:, NC + 1]) / (B * N)      # (-s log s).sum(-1).mean()
    return probs, link_loss, ent_loss


# ----------------------------------------------------------------------------
# Deterministic parameter construction + example run.
# ----------------------------------------------------------------------------
def _lin_params(key, fin, fout, wscale=0.2, bscale=0.05):
    kw, kb = jax.random.split(key)
    w = jax.random.normal(kw, (fin, fout), jnp.float32) * wscale
    b = jax.random.normal(kb, (fout,), jnp.float32) * bscale
    return w, b


def _block_params(key, fin, hidden, fout):
    k1, k2, k3 = jax.random.split(key, 3)
    w1, b1 = _lin_params(k1, fin, hidden)
    w2, b2 = _lin_params(k2, hidden, hidden)
    wl, bl = _lin_params(k3, 2 * hidden, fout)
    return (w1, b1, w2, b2, wl, bl)


if __name__ == "__main__":
    B, N, F_IN, HIDDEN, NUM_CLASSES = 8, 16, 4, 32, 3
    RATIO = 0.25
    C = ceil(RATIO * float(N))                        # clusters after pooling

    key = jax.random.PRNGKey(0)
    k_x, k_adj, k_cin, k_pool, k_blk, k_l1, k_l2 = jax.random.split(key, 7)

    # Dense batched graphs with varying node counts (padded to N).
    num_nodes = jnp.array([16, 12, 9, 16, 14, 11, 16, 13], jnp.int32)
    mask = (jnp.arange(N)[None, :] < num_nodes[:, None]).astype(jnp.float32)
    x = jax.random.normal(k_x, (B, N, F_IN), jnp.float32) * mask[..., None]
    a = (jax.random.uniform(k_adj, (B, N, N)) < 0.3).astype(jnp.float32)
    adj = jnp.maximum(a, jnp.swapaxes(a, 1, 2))
    adj = adj * mask[:, :, None] * mask[:, None, :]

    params = {
        'conv_in': _block_params(k_cin, F_IN, HIDDEN, HIDDEN),
        'pool0':   _block_params(k_pool, F_IN, HIDDEN, C),
        'block1':  _block_params(k_blk, HIDDEN, HIDDEN, HIDDEN),
        'head': (
            jnp.ones((2 * HIDDEN,), jnp.float32),     # bn gamma
            jnp.zeros((2 * HIDDEN,), jnp.float32),    # bn beta
            jnp.zeros((2 * HIDDEN,), jnp.float32),    # bn running_mean
            jnp.ones((2 * HIDDEN,), jnp.float32),     # bn running_var
            *_lin_params(k_l1, 2 * HIDDEN, HIDDEN),
            *_lin_params(k_l2, HIDDEN, NUM_CLASSES),
        ),
    }

    fwd = jax.jit(functools.partial(diffpool_forward, params))
    probs, link_loss, ent_loss = fwd(x, adj, mask)
    jax.block_until_ready((probs, link_loss, ent_loss))

    assert probs.shape == (B, NUM_CLASSES)
    assert bool(jnp.all(jnp.isfinite(probs)))
    assert bool(jnp.allclose(jnp.sum(probs, axis=-1), 1.0, atol=1e-5))
    assert bool(jnp.isfinite(link_loss)) and bool(jnp.isfinite(ent_loss))
    print("KERNEL_OK")
</pallas_src>

<mosaic_0001>
module attributes {stable_mosaic.version = 11 : i64} {
  func.func @_diffpool_fused_kernel(%arg0: i32, %arg1: memref<1x128x4xf32, #tpu.memory_space<vmem>>, %arg2: memref<1x128x128xbf16, #tpu.memory_space<vmem>>, %arg3: memref<1x128x1xf32, #tpu.memory_space<vmem>>, %arg4: memref<4x64xbf16, #tpu.memory_space<vmem>>, %arg5: memref<64x64xbf16, #tpu.memory_space<vmem>>, %arg6: memref<128x36xbf16, #tpu.memory_space<vmem>>, %arg7: memref<128x32xbf16, #tpu.memory_space<vmem>>, %arg8: memref<96x128xbf16, #tpu.memory_space<vmem>>, %arg9: memref<12x128xf32, #tpu.memory_space<vmem>>, %arg10: memref<4x32xbf16, #tpu.memory_space<vmem>>, %arg11: memref<1x8x128xf32, #tpu.memory_space<vmem>>) attributes {dimension_semantics = [#tpu.dimension_semantics<parallel>], iteration_bounds = array<i64: 1>, scalar_prefetch = 0 : i64, scratch_operands = 0 : i64, tpu.core_type = #tpu.core_type<tc>, window_params = [{transform_indices = @transform_0, window_bounds = array<i64: 1, 128, 4>}, {transform_indices = @transform_1, window_bounds = array<i64: 1, 128, 128>}, {transform_indices = @transform_2, window_bounds = array<i64: 1, 128, 1>}, {pipeline_mode = #tpu.pipeline_mode<synchronous>, transform_indices = @transform_3, window_bounds = array<i64: 4, 64>}, {pipeline_mode = #tpu.pipeline_mode<synchronous>, transform_indices = @transform_4, window_bounds = array<i64: 64, 64>}, {pipeline_mode = #tpu.pipeline_mode<synchronous>, transform_indices = @transform_5, window_bounds = array<i64: 128, 36>}, {pipeline_mode = #tpu.pipeline_mode<synchronous>, transform_indices = @transform_6, window_bounds = array<i64: 128, 32>}, {pipeline_mode = #tpu.pipeline_mode<synchronous>, transform_indices = @transform_7, window_bounds = array<i64: 96, 128>}, {pipeline_mode = #tpu.pipeline_mode<synchronous>, transform_indices = @transform_8, window_bounds = array<i64: 12, 128>}, {pipeline_mode = #tpu.pipeline_mode<synchronous>, transform_indices = @transform_9, window_bounds = array<i64: 4, 32>}, {transform_indices = @transform_10, window_bounds = array<i64: 1, 8, 128>}]} {
    %c0 = arith.constant 0 : index
    %c0_0 = arith.constant 0 : index
    %c0_1 = arith.constant 0 : index
    %0 = vector.load %arg1[%c0, %c0_0, %c0_1] : memref<1x128x4xf32, #tpu.memory_space<vmem>>, vector<1x128x4xf32>
    %1 = vector.shape_cast %0 : vector<1x128x4xf32> to vector<128x4xf32>
    %c0_2 = arith.constant 0 : index
    %c0_3 = arith.constant 0 : index
    %c0_4 = arith.constant 0 : index
    %2 = vector.load %arg2[%c0_2, %c0_3, %c0_4] : memref<1x128x128xbf16, #tpu.memory_space<vmem>>, vector<1x128x128xbf16>
    %3 = vector.shape_cast %2 : vector<1x128x128xbf16> to vector<128x128xbf16>
    %c0_5 = arith.constant 0 : index
    %c0_6 = arith.constant 0 : index
    %c0_7 = arith.constant 0 : index
    %4 = vector.load %arg3[%c0_5, %c0_6, %c0_7] : memref<1x128x1xf32, #tpu.memory_space<vmem>>, vector<1x128x1xf32>
    %5 = vector.shape_cast %4 : vector<1x128x1xf32> to vector<128x1xf32>
    %6 = tpu.iota {dimensions = array<i32: 0>} : vector<128x128xi32>
    %7 = tpu.iota {dimensions = array<i32: 1>} : vector<128x128xi32>
    %8 = arith.cmpi eq, %6, %7 : vector<128x128xi32>
    %9 = tpu.iota {dimensions = array<i32: 0>} : vector<32x32xi32>
    %10 = tpu.iota {dimensions = array<i32: 1>} : vector<32x32xi32>
    %11 = arith.cmpi eq, %9, %10 : vector<32x32xi32>
    %12 = tpu.iota {dimensions = array<i32: 1>} : vector<8x128xi32>
    %13 = tpu.iota {dimensions = array<i32: 0>} : vector<8x128xi32>
    %c16_i32 = arith.constant 16 : i32
    %14 = vector.broadcast %c16_i32 : i32 to vector<8x128xi32>
    %15 = arith.muli %13, %14 : vector<8x128xi32>
    %16 = arith.cmpi sge, %12, %15 : vector<8x128xi32>
    %c1_i32 = arith.constant 1 : i32
    %17 = vector.broadcast %c1_i32 : i32 to vector<8x128xi32>
    %18 = arith.addi %13, %17 : vector<8x128xi32>
    %c16_i32_8 = arith.constant 16 : i32
    %19 = vector.broadcast %c16_i32_8 : i32 to vector<8x128xi32>
    %20 = arith.muli %18, %19 : vector<8x128xi32>
    %21 = arith.cmpi slt, %12, %20 : vector<8x128xi32>
    %22 = arith.andi %16, %21 : vector<8x128xi1>
    %23 = arith.extui %22 : vector<8x128xi1> to vector<8x128xi32>
    %24 = arith.sitofp %23 : vector<8x128xi32> to vector<8x128xf32>
    %25 = tpu.iota {dimensions = array<i32: 1>} : vector<8x32xi32>
    %26 = tpu.iota {dimensions = array<i32: 0>} : vector<8x32xi32>
    %c4_i32 = arith.constant 4 : i32
    %27 = vector.broadcast %c4_i32 : i32 to vector<8x32xi32>
    %28 = arith.muli %26, %27 : vector<8x32xi32>
    %29 = arith.cmpi sge, %25, %28 : vector<8x32xi32>
    %c1_i32_9 = arith.constant 1 : i32
    %30 = vector.broadcast %c1_i32_9 : i32 to vector<8x32xi32>
    %31 = arith.addi %26, %30 : vector<8x32xi32>
    %c4_i32_10 = arith.constant 4 : i32
    %32 = vector.broadcast %c4_i32_10 : i32 to vector<8x32xi32>
    %33 = arith.muli %31, %32 : vector<8x32xi32>
    %34 = arith.cmpi slt, %25, %33 : vector<8x32xi32>
    %35 = arith.andi %29, %34 : vector<8x32xi1>
    %36 = arith.extui %35 : vector<8x32xi1> to vector<8x32xi32>
    %37 = arith.sitofp %36 : vector<8x32xi32> to vector<8x32xf32>
    %38 = arith.truncf %24 : vector<8x128xf32> to vector<8x128xbf16>
    %39 = arith.truncf %37 : vector<8x32xf32> to vector<8x32xbf16>
    %cst = arith.constant dense<0.000000e+00> : vector<128x32xf32>
    %40 = tpu.matmul %38, %39, %cst {dimension_numbers = #tpu.dot_dimension_numbers<[0], [0], [1], [1], [0, 1, 1, 1], [], []>} : vector<8x128xbf16>, vector<8x32xbf16>, vector<128x32xf32> -> vector<128x32xf32>
    %cst_11 = arith.constant 1.000000e+00 : bf16
    %41 = vector.broadcast %cst_11 : bf16 to vector<128x128xbf16>
    %42 = arith.select %8, %41, %3 : vector<128x128xi1>, vector<128x128xbf16>
    %43 = arith.extf %42 : vector<128x128xbf16> to vector<128x128xf32>
    %cst_12 = arith.constant dense<0.000000e+00> : vector<128xf32>
    %44 = vector.multi_reduction <add>, %43, %cst_12 [1] : vector<128x128xf32> to vector<128xf32>
    %45 = vector.shape_cast %44 : vector<128xf32> to vector<128x1xf32>
    %cst_13 = arith.constant 1.000000e+00 : f32
    %46 = vector.broadcast %cst_13 : f32 to vector<128x1xf32>
    %47 = arith.maximumf %45, %46 : vector<128x1xf32>
    %48 = math.rsqrt %47 : vector<128x1xf32>
    %c0_14 = arith.constant 0 : index
    %c0_15 = arith.constant 0 : index
    %49 = vector.load %arg9[%c0_14, %c0_15] : memref<12x128xf32, #tpu.memory_space<vmem>>, vector<1x64xf32>
    %c1 = arith.constant 1 : index
    %c0_16 = arith.constant 0 : index
    %50 = vector.load %arg9[%c1, %c0_16] : memref<12x128xf32, #tpu.memory_space<vmem>>, vector<1x64xf32>
    %c2 = arith.constant 2 : index
    %c0_17 = arith.constant 0 : index
    %51 = vector.load %arg9[%c2, %c0_17] : memref<12x128xf32, #tpu.memory_space<vmem>>, vector<1x36xf32>
    %c0_18 = arith.constant 0 : index
    %c0_19 = arith.constant 0 : index
    %52 = vector.load %arg4[%c0_18, %c0_19] : memref<4x64xbf16, #tpu.memory_space<vmem>>, vector<4x64xbf16>
    %53 = arith.truncf %1 : vector<128x4xf32> to vector<128x4xbf16>
    %cst_20 = arith.constant dense<0.000000e+00> : vector<128x64xf32>
    %54 = tpu.matmul %53, %52, %cst_20 {dimension_numbers = #tpu.dot_dimension_numbers<[1], [0], [0], [1], [0, 0, 1, 1], [], []>} : vector<128x4xbf16>, vector<4x64xbf16>, vector<128x64xf32> -> vector<128x64xf32>
    %55 = vector.broadcast %48 : vector<128x1xf32> to vector<128x64xf32>
    %56 = arith.mulf %55, %54 : vector<128x64xf32>
    %57 = arith.truncf %56 : vector<128x64xf32> to vector<128x64xbf16>
    %cst_21 = arith.constant dense<0.000000e+00> : vector<128x64xf32>
    %58 = tpu.matmul %42, %57, %cst_21 {dimension_numbers = #tpu.dot_dimension_numbers<[1], [0], [0], [1], [0, 0, 1, 1], [], []>} : vector<128x128xbf16>, vector<128x64xbf16>, vector<128x64xf32> -> vector<128x64xf32>
    %59 = vector.broadcast %48 : vector<128x1xf32> to vector<128x64xf32>
    %60 = arith.mulf %59, %58 : vector<128x64xf32>
    %61 = vector.broadcast %49 : vector<1x64xf32> to vector<128x64xf32>
    %62 = arith.addf %60, %61 : vector<128x64xf32>
    %63 = vector.broadcast %5 : vector<128x1xf32> to vector<128x64xf32>
    %64 = arith.mulf %62, %63 : vector<128x64xf32>
    %cst_22 = arith.constant 0.000000e+00 : f32
    %65 = vector.broadcast %cst_22 : f32 to vector<128x64xf32>
    %66 = arith.maximumf %64, %65 : vector<128x64xf32>
    %c0_23 = arith.constant 0 : index
    %c0_24 = arith.constant 0 : index
    %67 = vector.load %arg5[%c0_23, %c0_24] : memref<64x64xbf16, #tpu.memory_space<vmem>>, vector<64x64xbf16>
    %68 = arith.truncf %66 : vector<128x64xf32> to vector<128x64xbf16>
    %cst_25 = arith.constant dense<0.000000e+00> : vector<128x64xf32>
    %69 = tpu.matmul %68, %67, %cst_25 {dimension_numbers = #tpu.dot_dimension_numbers<[1], [0], [0], [1], [0, 0, 1, 1], [], []>} : vector<128x64xbf16>, vector<64x64xbf16>, vector<128x64xf32> -> vector<128x64xf32>
    %70 = vector.broadcast %48 : vector<128x1xf32> to vector<128x64xf32>
    %71 = arith.mulf %70, %69 : vector<128x64xf32>
    %72 = arith.truncf %71 : vector<128x64xf32> to vector<128x64xbf16>
    %cst_26 = arith.constant dense<0.000000e+00> : vector<128x64xf32>
    %73 = tpu.matmul %42, %72, %cst_26 {dimension_numbers = #tpu.dot_dimension_numbers<[1], [0], [0], [1], [0, 0, 1, 1], [], []>} : vector<128x128xbf16>, vector<128x64xbf16>, vector<128x64xf32> -> vector<128x64xf32>
    %74 = vector.broadcast %48 : vector<128x1xf32> to vector<128x64xf32>
    %75 = arith.mulf %74, %73 : vector<128x64xf32>
    %76 = vector.broadcast %50 : vector<1x64xf32> to vector<128x64xf32>
    %77 = arith.addf %75, %76 : vector<128x64xf32>
    %78 = vector.broadcast %5 : vector<128x1xf32> to vector<128x64xf32>
    %79 = arith.mulf %77, %78 : vector<128x64xf32>
    %cst_27 = arith.constant 0.000000e+00 : f32
    %80 = vector.broadcast %cst_27 : f32 to vector<128x64xf32>
    %81 = arith.maximumf %79, %80 : vector<128x64xf32>
    %c0_28 = arith.constant 0 : index
    %c0_29 = arith.constant 0 : index
    %82 = vector.load %arg6[%c0_28, %c0_29] : memref<128x36xbf16, #tpu.memory_space<vmem>>, vector<64x36xbf16>
    %83 = arith.truncf %66 : vector<128x64xf32> to vector<128x64xbf16>
    %cst_30 = arith.constant dense<0.000000e+00> : vector<128x36xf32>
    %84 = tpu.matmul %83, %82, %cst_30 {dimension_numbers = #tpu.dot_dimension_numbers<[1], [0], [0], [1], [0, 0, 1, 1], [], []>} : vector<128x64xbf16>, vector<64x36xbf16>, vector<128x36xf32> -> vector<128x36xf32>
    %c64 = arith.constant 64 : index
    %c0_31 = arith.constant 0 : index
    %85 = vector.load %arg6[%c64, %c0_31] : memref<128x36xbf16, #tpu.memory_space<vmem>>, vector<64x36xbf16>
    %86 = arith.truncf %81 : vector<128x64xf32> to vector<128x64xbf16>
    %cst_32 = arith.constant dense<0.000000e+00> : vector<128x36xf32>
    %87 = tpu.matmul %86, %85, %cst_32 {dimension_numbers = #tpu.dot_dimension_numbers<[1], [0], [0], [1], [0, 0, 1, 1], [], []>} : vector<128x64xbf16>, vector<64x36xbf16>, vector<128x36xf32> -> vector<128x36xf32>
    %88 = arith.addf %84, %87 : vector<128x36xf32>
    %89 = vector.broadcast %51 : vector<1x36xf32> to vector<128x36xf32>
    %90 = arith.addf %88, %89 : vector<128x36xf32>
    %cst_33 = arith.constant 0.000000e+00 : f32
    %91 = vector.broadcast %cst_33 : f32 to vector<128x36xf32>
    %92 = arith.maximumf %90, %91 : vector<128x36xf32>
    %93 = vector.broadcast %5 : vector<128x1xf32> to vector<128x36xf32>
    %94 = arith.mulf %92, %93 : vector<128x36xf32>
    %95 = vector.extract_strided_slice %94 {offsets = [0, 0], sizes = [128, 32], strides = [1, 1]} : vector<128x36xf32> to vector<128x32xf32>
    %96 = vector.extract_strided_slice %94 {offsets = [0, 32], sizes = [128, 4], strides = [1, 1]} : vector<128x36xf32> to vector<128x4xf32>
    %97 = arith.truncf %24 : vector<8x128xf32> to vector<8x128xbf16>
    %98 = arith.truncf %95 : vector<128x32xf32> to vector<128x32xbf16>
    %cst_34 = arith.constant dense<0.000000e+00> : vector<8x32xf32>
    %99 = tpu.matmul %97, %98, %cst_34 {dimension_numbers = #tpu.dot_dimension_numbers<[1], [0], [0], [1], [0, 0, 1, 1], [], []>} : vector<8x128xbf16>, vector<128x32xbf16>, vector<8x32xf32> -> vector<8x32xf32>
    %cst_35 = arith.constant dense<0xFF800000> : vector<128xf32>
    %100 = vector.multi_reduction <maximumf>, %96, %cst_35 [1] : vector<128x4xf32> to vector<128xf32>
    %101 = vector.shape_cast %100 : vector<128xf32> to vector<128x1xf32>
    %102 = vector.broadcast %101 : vector<128x1xf32> to vector<128x4xf32>
    %103 = arith.subf %96, %102 : vector<128x4xf32>
    %104 = math.exp %103 : vector<128x4xf32>
    %cst_36 = arith.constant dense<0.000000e+00> : vector<128xf32>
    %105 = vector.multi_reduction <add>, %104, %cst_36 [1] : vector<128x4xf32> to vector<128xf32>
    %106 = vector.shape_cast %105 : vector<128xf32> to vector<128x1xf32>
    %107 = vector.broadcast %106 : vector<128x1xf32> to vector<128x4xf32>
    %108 = arith.divf %104, %107 : vector<128x4xf32>
    %109 = vector.broadcast %5 : vector<128x1xf32> to vector<128x4xf32>
    %110 = arith.mulf %108, %109 : vector<128x4xf32>
    %c0_37 = arith.constant 0 : index
    %c0_38 = arith.constant 0 : index
    %111 = vector.load %arg10[%c0_37, %c0_38] : memref<4x32xbf16, #tpu.memory_space<vmem>>, vector<4x32xbf16>
    %112 = arith.truncf %110 : vector<128x4xf32> to vector<128x4xbf16>
    %cst_39 = arith.constant dense<0.000000e+00> : vector<128x32xf32>
    %113 = tpu.matmul %112, %111, %cst_39 {dimension_numbers = #tpu.dot_dimension_numbers<[1], [0], [0], [1], [0, 0, 1, 1], [], []>} : vector<128x4xbf16>, vector<4x32xbf16>, vector<128x32xf32> -> vector<128x32xf32>
    %114 = arith.mulf %113, %40 : vector<128x32xf32>
    %115 = arith.truncf %114 : vector<128x32xf32> to vector<128x32xbf16>
    %116 = arith.truncf %95 : vector<128x32xf32> to vector<128x32xbf16>
    %cst_40 = arith.constant dense<0.000000e+00> : vector<32x32xf32>
    %117 = tpu.matmul %115, %116, %cst_40 {dimension_numbers = #tpu.dot_dimension_numbers<[0], [0], [1], [1], [0, 1, 1, 1], [], []>} : vector<128x32xbf16>, vector<128x32xbf16>, vector<32x32xf32> -> vector<32x32xf32>
    %118 = arith.truncf %114 : vector<128x32xf32> to vector<128x32xbf16>
    %cst_41 = arith.constant dense<0.000000e+00> : vector<32x128xf32>
    %119 = tpu.matmul %118, %3, %cst_41 {dimension_numbers = #tpu.dot_dimension_numbers<[0], [0], [1], [1], [0, 1, 1, 1], [], []>} : vector<128x32xbf16>, vector<128x128xbf16>, vector<32x128xf32> -> vector<32x128xf32>
    %120 = arith.truncf %119 : vector<32x128xf32> to vector<32x128xbf16>
    %121 = arith.truncf %114 : vector<128x32xf32> to vector<128x32xbf16>
    %cst_42 = arith.constant dense<0.000000e+00> : vector<32x32xf32>
    %122 = tpu.matmul %120, %121, %cst_42 {dimension_numbers = #tpu.dot_dimension_numbers<[1], [0], [0], [1], [0, 0, 1, 1], [], []>} : vector<32x128xbf16>, vector<128x32xbf16>, vector<32x32xf32> -> vector<32x32xf32>
    %123 = arith.truncf %114 : vector<128x32xf32> to vector<128x32xbf16>
    %124 = arith.truncf %114 : vector<128x32xf32> to vector<128x32xbf16>
    %cst_43 = arith.constant dense<0.000000e+00> : vector<32x32xf32>
    %125 = tpu.matmul %123, %124, %cst_43 {dimension_numbers = #tpu.dot_dimension_numbers<[0], [0], [1], [1], [0, 1, 1, 1], [], []>} : vector<128x32xbf16>, vector<128x32xbf16>, vector<32x32xf32> -> vector<32x32xf32>
    %126 = arith.extf %3 : vector<128x128xbf16> to vector<128x128xf32>
    %127 = vector.shape_cast %126 : vector<128x128xf32> to vector<1x128x128xf32>
    %cst_44 = arith.constant dense<0.000000e+00> : vector<1xf32>
    %128 = vector.multi_reduction <add>, %127, %cst_44 [1, 2] : vector<1x128x128xf32> to vector<1xf32>
    %129 = vector.shape_cast %128 : vector<1xf32> to vector<1x1x1xf32>
    %130 = vector.extract %129[0, 0, 0] : f32 from vector<1x1x1xf32>
    %131 = vector.broadcast %130 : f32 to vector<1x1xf32>
    %cst_45 = arith.constant 0.000000e+00 : f32
    %132 = vector.broadcast %cst_45 : f32 to vector<32x32xf32>
    %133 = arith.select %11, %122, %132 : vector<32x32xi1>, vector<32x32xf32>
    %134 = vector.shape_cast %133 : vector<32x32xf32> to vector<1x32x32xf32>
    %cst_46 = arith.constant dense<0.000000e+00> : vector<1xf32>
    %135 = vector.multi_reduction <add>, %134, %cst_46 [1, 2] : vector<1x32x32xf32> to vector<1xf32>
    %136 = vector.shape_cast %135 : vector<1xf32> to vector<1x1x1xf32>
    %137 = vector.extract %136[0, 0, 0] : f32 from vector<1x1x1xf32>
    %138 = vector.broadcast %137 : f32 to vector<1x1xf32>
    %cst_47 = arith.constant 2.000000e+00 : f32
    %139 = vector.broadcast %cst_47 : f32 to vector<1x1xf32>
    %140 = arith.mulf %139, %138 : vector<1x1xf32>
    %141 = arith.subf %131, %140 : vector<1x1xf32>
    %142 = arith.mulf %125, %125 : vector<32x32xf32>
    %143 = vector.shape_cast %142 : vector<32x32xf32> to vector<1x32x32xf32>
    %cst_48 = arith.constant dense<0.000000e+00> : vector<1xf32>
    %144 = vector.multi_reduction <add>, %143, %cst_48 [1, 2] : vector<1x32x32xf32> to vector<1xf32>
    %145 = vector.shape_cast %144 : vector<1xf32> to vector<1x1x1xf32>
    %146 = vector.extract %145[0, 0, 0] : f32 from vector<1x1x1xf32>
    %147 = vector.broadcast %146 : f32 to vector<1x1xf32>
    %148 = arith.addf %141, %147 : vector<1x1xf32>
    %cst_49 = arith.constant 0.000000e+00 : f32
    %149 = vector.broadcast %cst_49 : f32 to vector<128x4xf32>
    %150 = arith.subf %149, %110 : vector<128x4xf32>
    %cst_50 = arith.constant 1.000000e-15 : f32
    %151 = vector.broadcast %cst_50 : f32 to vector<128x4xf32>
    %152 = arith.addf %110, %151 : vector<128x4xf32>
    %153 = math.log %152 : vector<128x4xf32>
    %154 = arith.mulf %150, %153 : vector<128x4xf32>
    %155 = vector.shape_cast %154 : vector<128x4xf32> to vector<1x128x4xf32>
    %cst_51 = arith.constant dense<0.000000e+00> : vector<1xf32>
    %156 = vector.multi_reduction <add>, %155, %cst_51 [1, 2] : vector<1x128x4xf32> to vector<1xf32>
    %157 = vector.shape_cast %156 : vector<1xf32> to vector<1x1x1xf32>
    %158 = vector.extract %157[0, 0, 0] : f32 from vector<1x1x1xf32>
    %159 = vector.broadcast %158 : f32 to vector<1x1xf32>
    %cst_52 = arith.constant 1.000000e+00 : f32
    %160 = vector.broadcast %cst_52 : f32 to vector<32x32xf32>
    %161 = arith.select %11, %160, %122 : vector<32x32xi1>, vector<32x32xf32>
    %cst_53 = arith.constant dense<0.000000e+00> : vector<32xf32>
    %162 = vector.multi_reduction <add>, %161, %cst_53 [1] : vector<32x32xf32> to vector<32xf32>
    %163 = vector.shape_cast %162 : vector<32xf32> to vector<32x1xf32>
    %cst_54 = arith.constant 1.000000e+00 : f32
    %164 = vector.broadcast %cst_54 : f32 to vector<32x1xf32>
    %165 = arith.maximumf %163, %164 : vector<32x1xf32>
    %166 = math.rsqrt %165 : vector<32x1xf32>
    %167 = arith.truncf %161 : vector<32x32xf32> to vector<32x32xbf16>
    %c0_55 = arith.constant 0 : index
    %c0_56 = arith.constant 0 : index
    %168 = vector.load %arg7[%c0_55, %c0_56] : memref<128x32xbf16, #tpu.memory_space<vmem>>, vector<32x32xbf16>
    %c3 = arith.constant 3 : index
    %c0_57 = arith.constant 0 : index
    %169 = vector.load %arg9[%c3, %c0_57] : memref<12x128xf32, #tpu.memory_space<vmem>>, vector<1x32xf32>
    %170 = arith.truncf %117 : vector<32x32xf32> to vector<32x32xbf16>
    %cst_58 = arith.constant dense<0.000000e+00> : vector<32x32xf32>
    %171 = tpu.matmul %170, %168, %cst_58 {dimension_numbers = #tpu.dot_dimension_numbers<[1], [0], [0], [1], [0, 0, 1, 1], [], []>} : vector<32x32xbf16>, vector<32x32xbf16>, vector<32x32xf32> -> vector<32x32xf32>
    %172 = vector.broadcast %166 : vector<32x1xf32> to vector<32x32xf32>
    %173 = arith.mulf %172, %171 : vector<32x32xf32>
    %174 = arith.truncf %173 : vector<32x32xf32> to vector<32x32xbf16>
    %cst_59 = arith.constant dense<0.000000e+00> : vector<32x32xf32>
    %175 = tpu.matmul %167, %174, %cst_59 {dimension_numbers = #tpu.dot_dimension_numbers<[1], [0], [0], [1], [0, 0, 1, 1], [], []>} : vector<32x32xbf16>, vector<32x32xbf16>, vector<32x32xf32> -> vector<32x32xf32>
    %176 = vector.broadcast %166 : vector<32x1xf32> to vector<32x32xf32>
    %177 = arith.mulf %176, %175 : vector<32x32xf32>
    %178 = vector.broadcast %169 : vector<1x32xf32> to vector<32x32xf32>
    %179 = arith.addf %177, %178 : vector<32x32xf32>
    %cst_60 = arith.constant 0.000000e+00 : f32
    %180 = vector.broadcast %cst_60 : f32 to vector<32x32xf32>
    %181 = arith.maximumf %179, %180 : vector<32x32xf32>
    %c32 = arith.constant 32 : index
    %c0_61 = arith.constant 0 : index
    %182 = vector.load %arg7[%c32, %c0_61] : memref<128x32xbf16, #tpu.memory_space<vmem>>, vector<32x32xbf16>
    %c4 = arith.constant 4 : index
    %c0_62 = arith.constant 0 : index
    %183 = vector.load %arg9[%c4, %c0_62] : memref<12x128xf32, #tpu.memory_space<vmem>>, vector<1x32xf32>
    %184 = arith.truncf %181 : vector<32x32xf32> to vector<32x32xbf16>
    %cst_63 = arith.constant dense<0.000000e+00> : vector<32x32xf32>
    %185 = tpu.matmul %184, %182, %cst_63 {dimension_numbers = #tpu.dot_dimension_numbers<[1], [0], [0], [1], [0, 0, 1, 1], [], []>} : vector<32x32xbf16>, vector<32x32xbf16>, vector<32x32xf32> -> vector<32x32xf32>
    %186 = vector.broadcast %166 : vector<32x1xf32> to vector<32x32xf32>
    %187 = arith.mulf %186, %185 : vector<32x32xf32>
    %188 = arith.truncf %187 : vector<32x32xf32> to vector<32x32xbf16>
    %cst_64 = arith.constant dense<0.000000e+00> : vector<32x32xf32>
    %189 = tpu.matmul %167, %188, %cst_64 {dimension_numbers = #tpu.dot_dimension_numbers<[1], [0], [0], [1], [0, 0, 1, 1], [], []>} : vector<32x32xbf16>, vector<32x32xbf16>, vector<32x32xf32> -> vector<32x32xf32>
    %190 = vector.broadcast %166 : vector<32x1xf32> to vector<32x32xf32>
    %191 = arith.mulf %190, %189 : vector<32x32xf32>
    %192 = vector.broadcast %183 : vector<1x32xf32> to vector<32x32xf32>
    %193 = arith.addf %191, %192 : vector<32x32xf32>
    %cst_65 = arith.constant 0.000000e+00 : f32
    %194 = vector.broadcast %cst_65 : f32 to vector<32x32xf32>
    %195 = arith.maximumf %193, %194 : vector<32x32xf32>
    %c64_66 = arith.constant 64 : index
    %c0_67 = arith.constant 0 : index
    %196 = vector.load %arg7[%c64_66, %c0_67] : memref<128x32xbf16, #tpu.memory_space<vmem>>, vector<32x32xbf16>
    %197 = arith.truncf %181 : vector<32x32xf32> to vector<32x32xbf16>
    %cst_68 = arith.constant dense<0.000000e+00> : vector<32x32xf32>
    %198 = tpu.matmul %197, %196, %cst_68 {dimension_numbers = #tpu.dot_dimension_numbers<[1], [0], [0], [1], [0, 0, 1, 1], [], []>} : vector<32x32xbf16>, vector<32x32xbf16>, vector<32x32xf32> -> vector<32x32xf32>
    %c96 = arith.constant 96 : index
    %c0_69 = arith.constant 0 : index
    %199 = vector.load %arg7[%c96, %c0_69] : memref<128x32xbf16, #tpu.memory_space<vmem>>, vector<32x32xbf16>
    %200 = arith.truncf %195 : vector<32x32xf32> to vector<32x32xbf16>
    %cst_70 = arith.constant dense<0.000000e+00> : vector<32x32xf32>
    %201 = tpu.matmul %200, %199, %cst_70 {dimension_numbers = #tpu.dot_dimension_numbers<[1], [0], [0], [1], [0, 0, 1, 1], [], []>} : vector<32x32xbf16>, vector<32x32xbf16>, vector<32x32xf32> -> vector<32x32xf32>
    %202 = arith.addf %198, %201 : vector<32x32xf32>
    %c5 = arith.constant 5 : index
    %c0_71 = arith.constant 0 : index
    %203 = vector.load %arg9[%c5, %c0_71] : memref<12x128xf32, #tpu.memory_space<vmem>>, vector<1x32xf32>
    %204 = vector.broadcast %203 : vector<1x32xf32> to vector<32x32xf32>
    %205 = arith.addf %202, %204 : vector<32x32xf32>
    %cst_72 = arith.constant 0.000000e+00 : f32
    %206 = vector.broadcast %cst_72 : f32 to vector<32x32xf32>
    %207 = arith.maximumf %205, %206 : vector<32x32xf32>
    %208 = arith.truncf %37 : vector<8x32xf32> to vector<8x32xbf16>
    %209 = arith.truncf %207 : vector<32x32xf32> to vector<32x32xbf16>
    %cst_73 = arith.constant dense<0.000000e+00> : vector<8x32xf32>
    %210 = tpu.matmul %208, %209, %cst_73 {dimension_numbers = #tpu.dot_dimension_numbers<[1], [0], [0], [1], [0, 0, 1, 1], [], []>} : vector<8x32xbf16>, vector<32x32xbf16>, vector<8x32xf32> -> vector<8x32xf32>
    %c6 = arith.constant 6 : index
    %c0_74 = arith.constant 0 : index
    %211 = vector.load %arg9[%c6, %c0_74] : memref<12x128xf32, #tpu.memory_space<vmem>>, vector<1x32xf32>
    %212 = vector.broadcast %211 : vector<1x32xf32> to vector<8x32xf32>
    %213 = arith.mulf %99, %212 : vector<8x32xf32>
    %c8 = arith.constant 8 : index
    %c0_75 = arith.constant 0 : index
    %214 = vector.load %arg9[%c8, %c0_75] : memref<12x128xf32, #tpu.memory_space<vmem>>, vector<1x32xf32>
    %215 = vector.broadcast %214 : vector<1x32xf32> to vector<8x32xf32>
    %216 = arith.addf %213, %215 : vector<8x32xf32>
    %c7 = arith.constant 7 : index
    %c0_76 = arith.constant 0 : index
    %217 = vector.load %arg9[%c7, %c0_76] : memref<12x128xf32, #tpu.memory_space<vmem>>, vector<1x32xf32>
    %218 = vector.broadcast %217 : vector<1x32xf32> to vector<8x32xf32>
    %219 = arith.mulf %210, %218 : vector<8x32xf32>
    %c9 = arith.constant 9 : index
    %c0_77 = arith.constant 0 : index
    %220 = vector.load %arg9[%c9, %c0_77] : memref<12x128xf32, #tpu.memory_space<vmem>>, vector<1x32xf32>
    %221 = vector.broadcast %220 : vector<1x32xf32> to vector<8x32xf32>
    %222 = arith.addf %219, %221 : vector<8x32xf32>
    %c0_78 = arith.constant 0 : index
    %c0_79 = arith.constant 0 : index
    %223 = vector.load %arg8[%c0_78, %c0_79] : memref<96x128xbf16, #tpu.memory_space<vmem>>, vector<32x32xbf16>
    %224 = arith.truncf %216 : vector<8x32xf32> to vector<8x32xbf16>
    %cst_80 = arith.constant dense<0.000000e+00> : vector<8x32xf32>
    %225 = tpu.matmul %224, %223, %cst_80 {dimension_numbers = #tpu.dot_dimension_numbers<[1], [0], [0], [1], [0, 0, 1, 1], [], []>} : vector<8x32xbf16>, vector<32x32xbf16>, vector<8x32xf32> -> vector<8x32xf32>
    %c32_81 = arith.constant 32 : index
    %c0_82 = arith.constant 0 : index
    %226 = vector.load %arg8[%c32_81, %c0_82] : memref<96x128xbf16, #tpu.memory_space<vmem>>, vector<32x32xbf16>
    %227 = arith.truncf %222 : vector<8x32xf32> to vector<8x32xbf16>
    %cst_83 = arith.constant dense<0.000000e+00> : vector<8x32xf32>
    %228 = tpu.matmul %227, %226, %cst_83 {dimension_numbers = #tpu.dot_dimension_numbers<[1], [0], [0], [1], [0, 0, 1, 1], [], []>} : vector<8x32xbf16>, vector<32x32xbf16>, vector<8x32xf32> -> vector<8x32xf32>
    %229 = arith.addf %225, %228 : vector<8x32xf32>
    %c10 = arith.constant 10 : index
    %c0_84 = arith.constant 0 : index
    %230 = vector.load %arg9[%c10, %c0_84] : memref<12x128xf32, #tpu.memory_space<vmem>>, vector<1x32xf32>
    %231 = vector.broadcast %230 : vector<1x32xf32> to vector<8x32xf32>
    %232 = arith.addf %229, %231 : vector<8x32xf32>
    %cst_85 = arith.constant 0.000000e+00 : f32
    %233 = vector.broadcast %cst_85 : f32 to vector<8x32xf32>
    %234 = arith.maximumf %232, %233 : vector<8x32xf32>
    %c64_86 = arith.constant 64 : index
    %c0_87 = arith.constant 0 : index
    %235 = vector.load %arg8[%c64_86, %c0_87] : memref<96x128xbf16, #tpu.memory_space<vmem>>, vector<32x128xbf16>
    %236 = arith.truncf %234 : vector<8x32xf32> to vector<8x32xbf16>
    %cst_88 = arith.constant dense<0.000000e+00> : vector<8x128xf32>
    %237 = tpu.matmul %236, %235, %cst_88 {dimension_numbers = #tpu.dot_dimension_numbers<[1], [0], [0], [1], [0, 0, 1, 1], [], []>} : vector<8x32xbf16>, vector<32x128xbf16>, vector<8x128xf32> -> vector<8x128xf32>
    %c11 = arith.constant 11 : index
    %c0_89 = arith.constant 0 : index
    %238 = vector.load %arg9[%c11, %c0_89] : memref<12x128xf32, #tpu.memory_space<vmem>>, vector<1x128xf32>
    %239 = vector.broadcast %238 : vector<1x128xf32> to vector<8x128xf32>
    %240 = arith.addf %237, %239 : vector<8x128xf32>
    %cst_90 = arith.constant dense<0xFF800000> : vector<8xf32>
    %241 = vector.multi_reduction <maximumf>, %240, %cst_90 [1] : vector<8x128xf32> to vector<8xf32>
    %242 = vector.shape_cast %241 : vector<8xf32> to vector<8x1xf32>
    %243 = vector.broadcast %242 : vector<8x1xf32> to vector<8x128xf32>
    %244 = arith.subf %240, %243 : vector<8x128xf32>
    %245 = math.exp %244 : vector<8x128xf32>
    %cst_91 = arith.constant dense<0.000000e+00> : vector<8xf32>
    %246 = vector.multi_reduction <add>, %245, %cst_91 [1] : vector<8x128xf32> to vector<8xf32>
    %247 = vector.shape_cast %246 : vector<8xf32> to vector<8x1xf32>
    %248 = vector.broadcast %247 : vector<8x1xf32> to vector<8x128xf32>
    %249 = arith.divf %245, %248 : vector<8x128xf32>
    %250 = tpu.iota {dimensions = array<i32: 1>} : vector<8x128xi32>
    %251 = tpu.iota {dimensions = array<i32: 0>} : vector<8x128xi32>
    %c3_i32 = arith.constant 3 : i32
    %252 = vector.broadcast %c3_i32 : i32 to vector<8x128xi32>
    %253 = arith.cmpi eq, %250, %252 : vector<8x128xi32>
    %c0_i32 = arith.constant 0 : i32
    %254 = vector.broadcast %c0_i32 : i32 to vector<8x128xi32>
    %255 = arith.cmpi eq, %251, %254 : vector<8x128xi32>
    %256 = arith.andi %253, %255 : vector<8x128xi1>
    %257 = vector.shape_cast %148 : vector<1x1xf32> to vector<1x1xf32>
    %258 = vector.broadcast %257 : vector<1x1xf32> to vector<8x128xf32>
    %259 = arith.select %256, %258, %249 : vector<8x128xi1>, vector<8x128xf32>
    %c4_i32_92 = arith.constant 4 : i32
    %260 = vector.broadcast %c4_i32_92 : i32 to vector<8x128xi32>
    %261 = arith.cmpi eq, %250, %260 : vector<8x128xi32>
    %c0_i32_93 = arith.constant 0 : i32
    %262 = vector.broadcast %c0_i32_93 : i32 to vector<8x128xi32>
    %263 = arith.cmpi eq, %251, %262 : vector<8x128xi32>
    %264 = arith.andi %261, %263 : vector<8x128xi1>
    %265 = vector.shape_cast %159 : vector<1x1xf32> to vector<1x1xf32>
    %266 = vector.broadcast %265 : vector<1x1xf32> to vector<8x128xf32>
    %267 = arith.select %264, %266, %259 : vector<8x128xi1>, vector<8x128xf32>
    %c0_94 = arith.constant 0 : index
    %c0_95 = arith.constant 0 : index
    %c0_96 = arith.constant 0 : index
    %268 = vector.load %arg11[%c0_94, %c0_95, %c0_96] : memref<1x8x128xf32, #tpu.memory_space<vmem>>, vector<1x8x128xf32>
    %269 = vector.shape_cast %268 : vector<1x8x128xf32> to vector<8x128xf32>
    %270 = vector.shape_cast %267 : vector<8x128xf32> to vector<1x8x128xf32>
    tpu.vector_store %arg11[%c0_94, %c0_95, %c0_96], %270 {strides = array<i32>} : memref<1x8x128xf32, #tpu.memory_space<vmem>>, vector<1x8x128xf32>,
    return
  }
  func.func @transform_0(%arg0: i32) -> (i32, i32, i32) {
    %c0_i32 = arith.constant 0 : i32
    %c0_i32_0 = arith.constant 0 : i32
    %c0_i32_1 = arith.constant 0 : i32
    return %arg0, %c0_i32, %c0_i32_0 : i32, i32, i32
  }
  func.func @transform_1(%arg0: i32) -> (i32, i32, i32) {
    %c0_i32 = arith.constant 0 : i32
    %c0_i32_0 = arith.constant 0 : i32
    %c0_i32_1 = arith.constant 0 : i32
    return %arg0, %c0_i32, %c0_i32_0 : i32, i32, i32
  }
  func.func @transform_2(%arg0: i32) -> (i32, i32, i32) {
    %c0_i32 = arith.constant 0 : i32
    %c0_i32_0 = arith.constant 0 : i32
    %c0_i32_1 = arith.constant 0 : i32
    return %arg0, %c0_i32, %c0_i32_0 : i32, i32, i32
  }
  func.func @transform_3(%arg0: i32) -> (i32, i32) {
    %c0_i32 = arith.constant 0 : i32
    %c0_i32_0 = arith.constant 0 : i32
    %c0_i32_1 = arith.constant 0 : i32
    return %c0_i32, %c0_i32_0 : i32, i32
  }
  func.func @transform_4(%arg0: i32) -> (i32, i32) {
    %c0_i32 = arith.constant 0 : i32
    %c0_i32_0 = arith.constant 0 : i32
    %c0_i32_1 = arith.constant 0 : i32
    return %c0_i32, %c0_i32_0 : i32, i32
  }
  func.func @transform_5(%arg0: i32) -> (i32, i32) {
    %c0_i32 = arith.constant 0 : i32
    %c0_i32_0 = arith.constant 0 : i32
    %c0_i32_1 = arith.constant 0 : i32
    return %c0_i32, %c0_i32_0 : i32, i32
  }
  func.func @transform_6(%arg0: i32) -> (i32, i32) {
    %c0_i32 = arith.constant 0 : i32
    %c0_i32_0 = arith.constant 0 : i32
    %c0_i32_1 = arith.constant 0 : i32
    return %c0_i32, %c0_i32_0 : i32, i32
  }
  func.func @transform_7(%arg0: i32) -> (i32, i32) {
    %c0_i32 = arith.constant 0 : i32
    %c0_i32_0 = arith.constant 0 : i32
    %c0_i32_1 = arith.constant 0 : i32
    return %c0_i32, %c0_i32_0 : i32, i32
  }
  func.func @transform_8(%arg0: i32) -> (i32, i32) {
    %c0_i32 = arith.constant 0 : i32
    %c0_i32_0 = arith.constant 0 : i32
    %c0_i32_1 = arith.constant 0 : i32
    return %c0_i32, %c0_i32_0 : i32, i32
  }
  func.func @transform_9(%arg0: i32) -> (i32, i32) {
    %c0_i32 = arith.constant 0 : i32
    %c0_i32_0 = arith.constant 0 : i32
    %c0_i32_1 = arith.constant 0 : i32
    return %c0_i32, %c0_i32_0 : i32, i32
  }
  func.func @transform_10(%arg0: i32) -> (i32, i32, i32) {
    %c0_i32 = arith.constant 0 : i32
    %c0_i32_0 = arith.constant 0 : i32
    %c0_i32_1 = arith.constant 0 : i32
    return %arg0, %c0_i32, %c0_i32_0 : i32, i32, i32
  }
}

</mosaic_0001>

<llo_original>
// kernel: diffpool_forward.1
$region0: #{diffpool_forward.1}
  #allocation0 [shape = 'u32[]', space=smem, size = 0x4, offset = 0x4, fixed_abs, tag = 'smem constant byte address 0x4 - core index']
  #allocation1 [shape = 'u32[144,128]{1,0:T(1,128)}', space=vmem, size = 0x12000, scoped, tag = 'internal scratch']
  %s0 = inlined_call_operand.vmem [shape: f32[1,128,4], index: 0, kind: input, shape index: {}]
  %s1 = inlined_call_operand.vmem [shape: bf16[1,128,128], index: 1, kind: input, shape index: {}]
  %s2 = inlined_call_operand.vmem [shape: f32[1,128,1], index: 2, kind: input, shape index: {}]
  %s3 = inlined_call_operand.vmem [shape: bf16[4,64], index: 3, kind: input, shape index: {}]
  %s4 = inlined_call_operand.vmem [shape: bf16[64,64], index: 4, kind: input, shape index: {}]
  %s5 = inlined_call_operand.vmem [shape: bf16[128,36], index: 5, kind: input, shape index: {}]
  %s6 = inlined_call_operand.vmem [shape: bf16[128,32], index: 6, kind: input, shape index: {}]
  %s7 = inlined_call_operand.vmem [shape: bf16[96,128], index: 7, kind: input, shape index: {}]
  %s8 = inlined_call_operand.vmem [shape: f32[12,128], index: 8, kind: input, shape index: {}]
  %s9 = inlined_call_operand.vmem [shape: bf16[4,32], index: 9, kind: input, shape index: {}]
  %s10 = inlined_call_operand.vmem [shape: f32[1,8,128], index: 10, kind: output, shape index: {}]
  %s11 = sld [smem:[#allocation0]]
  $region50: #{diffpool_forward.1} parent=0
    _
  %s13 = ssub.s32 1, %s11
  %s14 = scalar_select 0, %s13, %s11
  // Predicated region
  $region2: #{diffpool_forward.1} parent=0 // pred_check
    _
  $region3: #{diffpool_forward.1} parent=0 // pred_check_branch
    %16 = sbr.rel (0) target = $region5
  $region4: #{diffpool_forward.1} parent=0 // pred_region
    _
  $region5: #{diffpool_forward.1} parent=0 // pred_fallthru
    _
  // Predicated region
  $region6: #{diffpool_forward.1} parent=0 // pred_check
    _
  $region7: #{diffpool_forward.1} parent=0 // pred_check_branch
    %18 = sbr.rel (0) target = $region9
  $region8: #{diffpool_forward.1} parent=0 // pred_region
    _
  $region9: #{diffpool_forward.1} parent=0 // pred_fallthru
    _
  // Predicated region
  $region10: #{diffpool_forward.1} parent=0 // pred_check
    _
  $region11: #{diffpool_forward.1} parent=0 // pred_check_branch
    %20 = sbr.rel (0) target = $region13
  $region12: #{diffpool_forward.1} parent=0 // pred_region
    _
  $region13: #{diffpool_forward.1} parent=0 // pred_fallthru
    _
  // Predicated region
  $region14: #{diffpool_forward.1} parent=0 // pred_check
    _
  $region15: #{diffpool_forward.1} parent=0 // pred_check_branch
    %22 = sbr.rel (0) target = $region17
  $region16: #{diffpool_forward.1} parent=0 // pred_region
    _
  $region17: #{diffpool_forward.1} parent=0 // pred_fallthru
    _
  // Predicated region
  $region18: #{diffpool_forward.1} parent=0 // pred_check
    _
  $region19: #{diffpool_forward.1} parent=0 // pred_check_branch
    %24 = sbr.rel (0) target = $region21
  $region20: #{diffpool_forward.1} parent=0 // pred_region
    _
  $region21: #{diffpool_forward.1} parent=0 // pred_fallthru
    _
  // Predicated region
  $region22: #{diffpool_forward.1} parent=0 // pred_check
    _
  $region23: #{diffpool_forward.1} parent=0 // pred_check_branch
    %26 = sbr.rel (0) target = $region25
  $region24: #{diffpool_forward.1} parent=0 // pred_region
    _
  $region25: #{diffpool_forward.1} parent=0 // pred_fallthru
    _
  // Predicated region
  $region26: #{diffpool_forward.1} parent=0 // pred_check
    _
  $region27: #{diffpool_forward.1} parent=0 // pred_check_branch
    %28 = sbr.rel (0) target = $region29
  $region28: #{diffpool_forward.1} parent=0 // pred_region
    _
  $region29: #{diffpool_forward.1} parent=0 // pred_fallthru
    _
  // Predicated region
  $region30: #{diffpool_forward.1} parent=0 // pred_check
    _
  $region31: #{diffpool_forward.1} parent=0 // pred_check_branch
    %30 = sbr.rel (0) target = $region33
  $region32: #{diffpool_forward.1} parent=0 // pred_region
    _
  $region33: #{diffpool_forward.1} parent=0 // pred_fallthru
    _
  // Predicated region
  $region34: #{diffpool_forward.1} parent=0 // pred_check
    _
  $region35: #{diffpool_forward.1} parent=0 // pred_check_branch
    %32 = sbr.rel (0) target = $region37
  $region36: #{diffpool_forward.1} parent=0 // pred_region
    _
  $region37: #{diffpool_forward.1} parent=0 // pred_fallthru
    _
  // Predicated region
  $region38: #{diffpool_forward.1} parent=0 // pred_check
    _
  $region39: #{diffpool_forward.1} parent=0 // pred_check_branch
    %34 = sbr.rel (0) target = $region41
  $region40: #{diffpool_forward.1} parent=0 // pred_region
    _
  $region41: #{diffpool_forward.1} parent=0 // pred_fallthru
    _
  %v37 = vld [vmem:[%s0] sm:$0xff]
  %v38 = vld [vmem:[%s0 + $0x8] sm:$0xff]
  %v39 = vld [vmem:[%s0 + $0x10] sm:$0xff]
  %v40 = vld [vmem:[%s0 + $0x18] sm:$0xff]
  %v41 = vld [vmem:[%s0 + $0x20] sm:$0xff]
  %v42 = vld [vmem:[%s0 + $0x28] sm:$0xff]
  %v43 = vld [vmem:[%s0 + $0x30] sm:$0xff]
  %v44 = vld [vmem:[%s0 + $0x38] sm:$0xff]
  %v45 = vld [vmem:[%s0 + $0x40] sm:$0xff]
  %v46 = vld [vmem:[%s0 + $0x48] sm:$0xff]
  %v47 = vld [vmem:[%s0 + $0x50] sm:$0xff]
  %v48 = vld [vmem:[%s0 + $0x58] sm:$0xff]
  %v49 = vld [vmem:[%s0 + $0x60] sm:$0xff]
  %v50 = vld [vmem:[%s0 + $0x68] sm:$0xff]
  %v51 = vld [vmem:[%s0 + $0x70] sm:$0xff]
  %v52 = vld [vmem:[%s0 + $0x78] sm:$0xff]
  %v53 = vld [vmem:[%s1] sm:$0xf]
  %v54 = vld [vmem:[%s1 + $0x4] sm:$0xf]
  %v55 = vld [vmem:[%s1 + $0x8] sm:$0xf]
  %v56 = vld [vmem:[%s1 + $0xc] sm:$0xf]
  %v57 = vld [vmem:[%s1 + $0x10] sm:$0xf]
  %v58 = vld [vmem:[%s1 + $0x14] sm:$0xf]
  %v59 = vld [vmem:[%s1 + $0x18] sm:$0xf]
  %v60 = vld [vmem:[%s1 + $0x1c] sm:$0xf]
  %v61 = vld [vmem:[%s1 + $0x20] sm:$0xf]
  %v62 = vld [vmem:[%s1 + $0x24] sm:$0xf]
  %v63 = vld [vmem:[%s1 + $0x28] sm:$0xf]
  %v64 = vld [vmem:[%s1 + $0x2c] sm:$0xf]
  %v65 = vld [vmem:[%s1 + $0x30] sm:$0xf]
  %v66 = vld [vmem:[%s1 + $0x34] sm:$0xf]
  %v67 = vld [vmem:[%s1 + $0x38] sm:$0xf]
  %v68 = vld [vmem:[%s1 + $0x3c] sm:$0xf]
  %v69 = vld [vmem:[%s2] sm:$0xff]
  %v70 = vld [vmem:[%s2 + $0x8] sm:$0xff]
  %v71 = vld [vmem:[%s2 + $0x10] sm:$0xff]
  %v72 = vld [vmem:[%s2 + $0x18] sm:$0xff]
  %v73 = vld [vmem:[%s2 + $0x20] sm:$0xff]
  %v74 = vld [vmem:[%s2 + $0x28] sm:$0xff]
  %v75 = vld [vmem:[%s2 + $0x30] sm:$0xff]
  %v76 = vld [vmem:[%s2 + $0x38] sm:$0xff]
  %v77 = vld [vmem:[%s2 + $0x40] sm:$0xff]
  %v78 = vld [vmem:[%s2 + $0x48] sm:$0xff]
  %v79 = vld [vmem:[%s2 + $0x50] sm:$0xff]
  %v80 = vld [vmem:[%s2 + $0x58] sm:$0xff]
  %v81 = vld [vmem:[%s2 + $0x60] sm:$0xff]
  %v82 = vld [vmem:[%s2 + $0x68] sm:$0xff]
  %v83 = vld [vmem:[%s2 + $0x70] sm:$0xff]
  %v84 = vld [vmem:[%s2 + $0x78] sm:$0xff]
  %v85 = vlaneseq
  %v86 = vshrl.u32 %v85, 7
  %v87 = vadd.s32 %v86, 8
  %v88 = vadd.s32 %v86, 16
  %v89 = vadd.s32 %v86, 24
  %v90 = vadd.s32 %v86, 32
  %v91 = vadd.s32 %v86, 40
  %v92 = vadd.s32 %v86, 48
  %v93 = vadd.s32 %v86, 56
  %v94 = vadd.s32 %v86, 64
  %v95 = vadd.s32 %v86, 72
  %v96 = vadd.s32 %v86, 80
  %v97 = vadd.s32 %v86, 88
  %v98 = vadd.s32 %v86, 96
  %v99 = vadd.s32 %v86, 104
  %v100 = vadd.s32 %v86, 112
  %v101 = vadd.s32 %v86, 120
  %v102 = vlaneseq
  %v103 = vand.u32 %v102, 127
  %vm104 = vcmp.eq.s32.totalorder %v86, %v103
  %vm105 = vcmp.eq.s32.totalorder %v87, %v103
  %vm106 = vcmp.eq.s32.totalorder %v88, %v103
  %vm107 = vcmp.eq.s32.totalorder %v89, %v103
  %vm108 = vcmp.eq.s32.totalorder %v90, %v103
  %vm109 = vcmp.eq.s32.totalorder %v91, %v103
  %vm110 = vcmp.eq.s32.totalorder %v92, %v103
  %vm111 = vcmp.eq.s32.totalorder %v93, %v103
  %vm112 = vcmp.eq.s32.totalorder %v94, %v103
  %vm113 = vcmp.eq.s32.totalorder %v95, %v103
  %vm114 = vcmp.eq.s32.totalorder %v96, %v103
  %vm115 = vcmp.eq.s32.totalorder %v97, %v103
  %vm116 = vcmp.eq.s32.totalorder %v98, %v103
  %vm117 = vcmp.eq.s32.totalorder %v99, %v103
  %vm118 = vcmp.eq.s32.totalorder %v100, %v103
  %vm119 = vcmp.eq.s32.totalorder %v101, %v103
  %v120 = vmul.u32 %v86, 16
  %vm121 = vcmp.ge.s32.totalorder %v103, %v120
  %v122 = vadd.s32 %v86, 1
  %v123 = vmul.u32 %v122, 16
  %vm124 = vcmp.lt.s32.totalorder %v103, %v123
  %vm125 = vmand %vm121, %vm124
  %v126 = vmul.u32 %v86, 4
  %vm127 = vcmp.ge.s32.totalorder %v103, %v126
  %v128 = vmul.u32 %v122, 4
  %vm129 = vcmp.lt.s32.totalorder %v103, %v128
  %vm130 = vmand %vm127, %vm129
  %v131 = vsel %vm125, 1, 0
  %v132 = vcvt.s32.f32 %v131
  %v133 = vpack.c.bf16 %v132, %v132
  %v134 = vsel %vm130, 1, 0
  %v135 = vcvt.s32.f32 %v134
  %v136 = vpack.c.bf16 %v135, %v135
  %137 = vxpose.xlu0.c.b16.start [1/8] %v133, 128
  %138 = vxpose.xlu0.c.b16.cont [2/8] 0, 128
  %139 = vxpose.xlu0.c.b16.cont [3/8] 0, 128
  %140 = vxpose.xlu0.c.b16.cont [4/8] 0, 128
  %141 = vxpose.xlu0.c.b16.cont [5/8] 0, 128
  %142 = vxpose.xlu0.c.b16.cont [6/8] 0, 128
  %143 = vxpose.xlu0.c.b16.cont [7/8] 0, 128
  %144 = vxpose.xlu0.c.b16.end [8/8] 0, 128
  %v145 = vpop.trf.xlu0
  %v146 = vpop.trf.xlu0
  %v147 = vpop.trf.xlu0
  %v148 = vpop.trf.xlu0
  %v149 = vpop.trf.xlu0
  %v150 = vpop.trf.xlu0
  %v151 = vpop.trf.xlu0
  %v152 = vpop.trf.xlu0
  %vm153 = vcmask 64512
  %v155 = vsel %vm153, %v145, 0
  %v158 = vsel %vm153, %v146, 0
  %v161 = vsel %vm153, %v147, 0
  %v164 = vsel %vm153, %v148, 0
  %v167 = vsel %vm153, %v149, 0
  %v170 = vsel %vm153, %v150, 0
  %v173 = vsel %vm153, %v151, 0
  %v176 = vsel %vm153, %v152, 0
  %vm178 = vcmask 1043456
  %v180 = vsel %vm178, %v136, 0
  %182 = vmatprep.subr.bf16.mxu0 0
  %183 = vmatpush1.bf16.msra.mxu0 0
  %184 = vmatprep.subr.bf16.mxu0 0
  %185 = vmatpush1.bf16.msra.mxu0 0
  %186 = vmatprep.subr.bf16.mxu0 0
  %187 = vmatpush1.bf16.msra.mxu0 0
  %188 = vmatprep.subr.bf16.mxu0 0
  %189 = vmatpush1.bf16.msra.mxu0 0
  %190 = vmatprep.subr.bf16.mxu0 0
  %191 = vmatpush1.bf16.msra.mxu0 0
  %192 = vmatprep.subr.bf16.mxu0 0
  %193 = vmatpush1.bf16.msra.mxu0 0
  %194 = vmatprep.subr.bf16.mxu0 0
  %195 = vmatpush1.bf16.msra.mxu0 0
  %196 = vmatprep.subr.bf16.mxu0 0
  %197 = vmatpush1.bf16.msra.mxu0 %v180
  %198 = vmatprep.subr.bf16.mxu0 0
  %199 = vmatpush2.bf16.msra.mxu0 0
  %200 = vmatprep.subr.bf16.mxu0 0
  %201 = vmatpush2.bf16.msra.mxu0 0
  %202 = vmatprep.subr.bf16.mxu0 0
  %203 = vmatpush2.bf16.msra.mxu0 0
  %204 = vmatprep.subr.bf16.mxu0 0
  %205 = vmatpush2.bf16.msra.mxu0 0
  %206 = vmatprep.subr.bf16.mxu0 0
  %207 = vmatpush2.bf16.msra.mxu0 0
  %208 = vmatprep.subr.bf16.mxu0 0
  %209 = vmatpush2.bf16.msra.mxu0 0
  %210 = vmatprep.subr.bf16.mxu0 0
  %211 = vmatpush2.bf16.msra.mxu0 0
  %212 = vmatprep.subr.bf16.mxu0 0
  %213 = vmatpush2.bf16.msra.mxu0 0
  %214 = vmatprep.mubr.bf16.mxu0 0
  %215 = vmatmul.mubr.bf16.gmra.mxu0 %v155
  %v216 = vpop.f32.mrf.mxu0
  %v217 = vadd.f32 0.0, %v216
  %v218 = vpop.f32.mrf.mxu0
  %v219 = vpop.f32.mrf.mxu0
  %v220 = vadd.f32 0.0, %v219
  %v221 = vpop.f32.mrf.mxu0
  %222 = vmatprep.mubr.bf16.mxu0 0
  %223 = vmatmul.mubr.bf16.gmra.mxu0 %v158
  %v224 = vpop.f32.mrf.mxu0
  %v225 = vadd.f32 0.0, %v224
  %v226 = vpop.f32.mrf.mxu0
  %v227 = vpop.f32.mrf.mxu0
  %v228 = vadd.f32 0.0, %v227
  %v229 = vpop.f32.mrf.mxu0
  %230 = vmatprep.mubr.bf16.mxu0 0
  %231 = vmatmul.mubr.bf16.gmra.mxu0 %v161
  %v232 = vpop.f32.mrf.mxu0
  %v233 = vadd.f32 0.0, %v232
  %v234 = vpop.f32.mrf.mxu0
  %v235 = vpop.f32.mrf.mxu0
  %v236 = vadd.f32 0.0, %v235
  %v237 = vpop.f32.mrf.mxu0
  %238 = vmatprep.mubr.bf16.mxu0 0
  %239 = vmatmul.mubr.bf16.gmra.mxu0 %v164
  %v240 = vpop.f32.mrf.mxu0
  %v241 = vadd.f32 0.0, %v240
  %v242 = vpop.f32.mrf.mxu0
  %v243 = vpop.f32.mrf.mxu0
  %v244 = vadd.f32 0.0, %v243
  %v245 = vpop.f32.mrf.mxu0
  %246 = vmatprep.mubr.bf16.mxu0 0
  %247 = vmatmul.mubr.bf16.gmra.mxu0 %v167
  %v248 = vpop.f32.mrf.mxu0
  %v249 = vadd.f32 0.0, %v248
  %v250 = vpop.f32.mrf.mxu0
  %v251 = vpop.f32.mrf.mxu0
  %v252 = vadd.f32 0.0, %v251
  %v253 = vpop.f32.mrf.mxu0
  %254 = vmatprep.mubr.bf16.mxu0 0
  %255 = vmatmul.mubr.bf16.gmra.mxu0 %v170
  %v256 = vpop.f32.mrf.mxu0
  %v257 = vadd.f32 0.0, %v256
  %v258 = vpop.f32.mrf.mxu0
  %v259 = vpop.f32.mrf.mxu0
  %v260 = vadd.f32 0.0, %v259
  %v261 = vpop.f32.mrf.mxu0
  %262 = vmatprep.mubr.bf16.mxu0 0
  %263 = vmatmul.mubr.bf16.gmra.mxu0 %v173
  %v264 = vpop.f32.mrf.mxu0
  %v265 = vadd.f32 0.0, %v264
  %v266 = vpop.f32.mrf.mxu0
  %v267 = vpop.f32.mrf.mxu0
  %v268 = vadd.f32 0.0, %v267
  %v269 = vpop.f32.mrf.mxu0
  %270 = vmatprep.mubr.bf16.mxu0 0
  %271 = vmatmul.mubr.bf16.gmra.mxu0 %v176
  %v272 = vpop.f32.mrf.mxu0
  %v273 = vadd.f32 0.0, %v272
  %v274 = vpop.f32.mrf.mxu0
  %v275 = vpop.f32.mrf.mxu0
  %v276 = vadd.f32 0.0, %v275
  %v277 = vpop.f32.mrf.mxu0
  %278 = vdwg.mxu0
  %vm279 = vmpackc.low %vm104, %vm104
  %vm280 = vmpackc.low %vm105, %vm105
  %vm281 = vmpackc.low %vm106, %vm106
  %vm282 = vmpackc.low %vm107, %vm107
  %vm283 = vmpackc.low %vm108, %vm108
  %vm284 = vmpackc.low %vm109, %vm109
  %vm285 = vmpackc.low %vm110, %vm110
  %vm286 = vmpackc.low %vm111, %vm111
  %vm287 = vmpackc.low %vm112, %vm112
  %vm288 = vmpackc.low %vm113, %vm113
  %vm289 = vmpackc.low %vm114, %vm114
  %vm290 = vmpackc.low %vm115, %vm115
  %vm291 = vmpackc.low %vm116, %vm116
  %vm292 = vmpackc.low %vm117, %vm117
  %vm293 = vmpackc.low %vm118, %vm118
  %vm294 = vmpackc.low %vm119, %vm119
  %v295 = vsel %vm279, 1065369472, %v53
  %v296 = vsel %vm280, 1065369472, %v54
  %v297 = vsel %vm281, 1065369472, %v55
  %v298 = vsel %vm282, 1065369472, %v56
  %v299 = vsel %vm283, 1065369472, %v57
  %v300 = vsel %vm284, 1065369472, %v58
  %v301 = vsel %vm285, 1065369472, %v59
  %v302 = vsel %vm286, 1065369472, %v60
  %v303 = vsel %vm287, 1065369472, %v61
  %v304 = vsel %vm288, 1065369472, %v62
  %v305 = vsel %vm289, 1065369472, %v63
  %v306 = vsel %vm290, 1065369472, %v64
  %v307 = vsel %vm291, 1065369472, %v65
  %v308 = vsel %vm292, 1065369472, %v66
  %v309 = vsel %vm293, 1065369472, %v67
  %v310 = vsel %vm294, 1065369472, %v68
  %v311 = vunpack.c.l.bf16 %v295
  %v312 = vunpack.c.l.bf16 %v296
  %v313 = vunpack.c.l.bf16 %v297
  %v314 = vunpack.c.l.bf16 %v298
  %v315 = vunpack.c.l.bf16 %v299
  %v316 = vunpack.c.l.bf16 %v300
  %v317 = vunpack.c.l.bf16 %v301
  %v318 = vunpack.c.l.bf16 %v302
  %v319 = vunpack.c.l.bf16 %v303
  %v320 = vunpack.c.l.bf16 %v304
  %v321 = vunpack.c.l.bf16 %v305
  %v322 = vunpack.c.l.bf16 %v306
  %v323 = vunpack.c.l.bf16 %v307
  %v324 = vunpack.c.l.bf16 %v308
  %v325 = vunpack.c.l.bf16 %v309
  %v326 = vunpack.c.l.bf16 %v310
  %327 = vadd.xlane.f32.xlu0 %v311
  %v328 = vpop.xlane.xlu0 %327
  %329 = vadd.xlane.f32.xlu0 %v312
  %v330 = vpop.xlane.xlu0 %329
  %331 = vadd.xlane.f32.xlu0 %v313
  %v332 = vpop.xlane.xlu0 %331
  %333 = vadd.xlane.f32.xlu0 %v314
  %v334 = vpop.xlane.xlu0 %333
  %335 = vadd.xlane.f32.xlu0 %v315
  %v336 = vpop.xlane.xlu0 %335
  %337 = vadd.xlane.f32.xlu0 %v316
  %v338 = vpop.xlane.xlu0 %337
  %339 = vadd.xlane.f32.xlu0 %v317
  %v340 = vpop.xlane.xlu0 %339
  %341 = vadd.xlane.f32.xlu0 %v318
  %v342 = vpop.xlane.xlu0 %341
  %343 = vadd.xlane.f32.xlu0 %v319
  %v344 = vpop.xlane.xlu0 %343
  %345 = vadd.xlane.f32.xlu0 %v320
  %v346 = vpop.xlane.xlu0 %345
  %347 = vadd.xlane.f32.xlu0 %v321
  %v348 = vpop.xlane.xlu0 %347
  %349 = vadd.xlane.f32.xlu0 %v322
  %v350 = vpop.xlane.xlu0 %349
  %351 = vadd.xlane.f32.xlu0 %v323
  %v352 = vpop.xlane.xlu0 %351
  %353 = vadd.xlane.f32.xlu0 %v324
  %v354 = vpop.xlane.xlu0 %353
  %355 = vadd.xlane.f32.xlu0 %v325
  %v356 = vpop.xlane.xlu0 %355
  %357 = vadd.xlane.f32.xlu0 %v326
  %v358 = vpop.xlane.xlu0 %357
  %v359 = vmax.f32 %v328, 1.0
  %v360 = vmax.f32 %v330, 1.0
  %v361 = vmax.f32 %v332, 1.0
  %v362 = vmax.f32 %v334, 1.0
  %v363 = vmax.f32 %v336, 1.0
  %v364 = vmax.f32 %v338, 1.0
  %v365 = vmax.f32 %v340, 1.0
  %v366 = vmax.f32 %v342, 1.0
  %v367 = vmax.f32 %v344, 1.0
  %v368 = vmax.f32 %v346, 1.0
  %v369 = vmax.f32 %v348, 1.0
  %v370 = vmax.f32 %v350, 1.0
  %v371 = vmax.f32 %v352, 1.0
  %v372 = vmax.f32 %v354, 1.0
  %v373 = vmax.f32 %v356, 1.0
  %v374 = vmax.f32 %v358, 1.0
  %v375 = vrsqrt.pop %v359
  %v376 = vrsqrt.pop %v360
  %v377 = vrsqrt.pop %v361
  %v378 = vrsqrt.pop %v362
  %v379 = vrsqrt.pop %v363
  %v380 = vrsqrt.pop %v364
  %v381 = vrsqrt.pop %v365
  %v382 = vrsqrt.pop %v366
  %v383 = vrsqrt.pop %v367
  %v384 = vrsqrt.pop %v368
  %v385 = vrsqrt.pop %v369
  %v386 = vrsqrt.pop %v370
  %v387 = vrsqrt.pop %v371
  %v388 = vrsqrt.pop %v372
  %v389 = vrsqrt.pop %v373
  %v390 = vrsqrt.pop %v374
  %v391 = vld [vmem:[%s8] sm:$0x1]
  %v392 = vld [vmem:[%s8 + $0x1] sm:$0x1]
  %v393 = vld [vmem:[%s8 + $0x2] sm:$0x1]
  %v394 = vld [vmem:[%s3] sm:$0x3]
  %v395 = vpack.c.bf16 %v38, %v37
  %v396 = vpack.c.bf16 %v40, %v39
  %v397 = vpack.c.bf16 %v42, %v41
  %v398 = vpack.c.bf16 %v44, %v43
  %v399 = vpack.c.bf16 %v46, %v45
  %v400 = vpack.c.bf16 %v48, %v47
  %v401 = vpack.c.bf16 %v50, %v49
  %v402 = vpack.c.bf16 %v52, %v51
  %vm403 = vcmask 31744
  %v405 = vsel %vm403, %v395, 0
  %v408 = vsel %vm403, %v396, 0
  %v411 = vsel %vm403, %v397, 0
  %v414 = vsel %vm403, %v398, 0
  %v417 = vsel %vm403, %v399, 0
  %v420 = vsel %vm403, %v400, 0
  %v423 = vsel %vm403, %v401, 0
  %v426 = vsel %vm403, %v402, 0
  %vm428 = vcmask 1041408
  %v430 = vsel %vm428, %v394, 0
  %432 = vmatprep.subr.bf16.mxu0 0
  %433 = vmatpush1.bf16.msra.mxu0 0
  %434 = vmatprep.subr.bf16.mxu0 0
  %435 = vmatpush1.bf16.msra.mxu0 0
  %436 = vmatprep.subr.bf16.mxu0 0
  %437 = vmatpush1.bf16.msra.mxu0 0
  %438 = vmatprep.subr.bf16.mxu0 0
  %439 = vmatpush1.bf16.msra.mxu0 0
  %440 = vmatprep.subr.bf16.mxu0 0
  %441 = vmatpush1.bf16.msra.mxu0 0
  %442 = vmatprep.subr.bf16.mxu0 0
  %443 = vmatpush1.bf16.msra.mxu0 0
  %444 = vmatprep.subr.bf16.mxu0 0
  %445 = vmatpush1.bf16.msra.mxu0 0
  %446 = vmatprep.subr.bf16.mxu0 0
  %447 = vmatpush1.bf16.msra.mxu0 %v430
  %448 = vmatprep.subr.bf16.mxu0 0
  %449 = vmatpush2.bf16.msra.mxu0 0
  %450 = vmatprep.subr.bf16.mxu0 0
  %451 = vmatpush2.bf16.msra.mxu0 0
  %452 = vmatprep.subr.bf16.mxu0 0
  %453 = vmatpush2.bf16.msra.mxu0 0
  %454 = vmatprep.subr.bf16.mxu0 0
  %455 = vmatpush2.bf16.msra.mxu0 0
  %456 = vmatprep.subr.bf16.mxu0 0
  %457 = vmatpush2.bf16.msra.mxu0 0
  %458 = vmatprep.subr.bf16.mxu0 0
  %459 = vmatpush2.bf16.msra.mxu0 0
  %460 = vmatprep.subr.bf16.mxu0 0
  %461 = vmatpush2.bf16.msra.mxu0 0
  %462 = vmatprep.subr.bf16.mxu0 0
  %463 = vmatpush2.bf16.msra.mxu0 0
  %464 = vmatprep.mubr.bf16.mxu0 0
  %465 = vmatmul.mubr.bf16.gmra.mxu0 %v405
  %v466 = vpop.f32.mrf.mxu0
  %v467 = vadd.f32 0.0, %v466
  %v468 = vpop.f32.mrf.mxu0
  %v469 = vpop.f32.mrf.mxu0
  %v470 = vadd.f32 0.0, %v469
  %v471 = vpop.f32.mrf.mxu0
  %472 = vmatprep.mubr.bf16.mxu0 0
  %473 = vmatmul.mubr.bf16.gmra.mxu0 %v408
  %v474 = vpop.f32.mrf.mxu0
  %v475 = vadd.f32 0.0, %v474
  %v476 = vpop.f32.mrf.mxu0
  %v477 = vpop.f32.mrf.mxu0
  %v478 = vadd.f32 0.0, %v477
  %v479 = vpop.f32.mrf.mxu0
  %480 = vmatprep.mubr.bf16.mxu0 0
  %481 = vmatmul.mubr.bf16.gmra.mxu0 %v411
  %v482 = vpop.f32.mrf.mxu0
  %v483 = vadd.f32 0.0, %v482
  %v484 = vpop.f32.mrf.mxu0
  %v485 = vpop.f32.mrf.mxu0
  %v486 = vadd.f32 0.0, %v485
  %v487 = vpop.f32.mrf.mxu0
  %488 = vmatprep.mubr.bf16.mxu0 0
  %489 = vmatmul.mubr.bf16.gmra.mxu0 %v414
  %v490 = vpop.f32.mrf.mxu0
  %v491 = vadd.f32 0.0, %v490
  %v492 = vpop.f32.mrf.mxu0
  %v493 = vpop.f32.mrf.mxu0
  %v494 = vadd.f32 0.0, %v493
  %v495 = vpop.f32.mrf.mxu0
  %496 = vmatprep.mubr.bf16.mxu0 0
  %497 = vmatmul.mubr.bf16.gmra.mxu0 %v417
  %v498 = vpop.f32.mrf.mxu0
  %v499 = vadd.f32 0.0, %v498
  %v500 = vpop.f32.mrf.mxu0
  %v501 = vpop.f32.mrf.mxu0
  %v502 = vadd.f32 0.0, %v501
  %v503 = vpop.f32.mrf.mxu0
  %504 = vmatprep.mubr.bf16.mxu0 0
  %505 = vmatmul.mubr.bf16.gmra.mxu0 %v420
  %v506 = vpop.f32.mrf.mxu0
  %v507 = vadd.f32 0.0, %v506
  %v508 = vpop.f32.mrf.mxu0
  %v509 = vpop.f32.mrf.mxu0
  %v510 = vadd.f32 0.0, %v509
  %v511 = vpop.f32.mrf.mxu0
  %512 = vmatprep.mubr.bf16.mxu0 0
  %513 = vmatmul.mubr.bf16.gmra.mxu0 %v423
  %v514 = vpop.f32.mrf.mxu0
  %v515 = vadd.f32 0.0, %v514
  %v516 = vpop.f32.mrf.mxu0
  %v517 = vpop.f32.mrf.mxu0
  %v518 = vadd.f32 0.0, %v517
  %v519 = vpop.f32.mrf.mxu0
  %520 = vmatprep.mubr.bf16.mxu0 0
  %521 = vmatmul.mubr.bf16.gmra.mxu0 %v426
  %v522 = vpop.f32.mrf.mxu0
  %v523 = vadd.f32 0.0, %v522
  %v524 = vpop.f32.mrf.mxu0
  %v525 = vpop.f32.mrf.mxu0
  %v526 = vadd.f32 0.0, %v525
  %v527 = vpop.f32.mrf.mxu0
  %528 = vdwg.mxu0
  %v529 = vmul.f32 %v375, %v467
  %v530 = vmul.f32 %v376, %v470
  %v531 = vmul.f32 %v377, %v475
  %v532 = vmul.f32 %v378, %v478
  %v533 = vmul.f32 %v379, %v483
  %v534 = vmul.f32 %v380, %v486
  %v535 = vmul.f32 %v381, %v491
  %v536 = vmul.f32 %v382, %v494
  %v537 = vmul.f32 %v383, %v499
  %v538 = vmul.f32 %v384, %v502
  %v539 = vmul.f32 %v385, %v507
  %v540 = vmul.f32 %v386, %v510
  %v541 = vmul.f32 %v387, %v515
  %v542 = vmul.f32 %v388, %v518
  %v543 = vmul.f32 %v389, %v523
  %v544 = vmul.f32 %v390, %v526
  %v545 = vpack.c.bf16 %v530, %v529
  %v546 = vpack.c.bf16 %v532, %v531
  %v547 = vpack.c.bf16 %v534, %v533
  %v548 = vpack.c.bf16 %v536, %v535
  %v549 = vpack.c.bf16 %v538, %v537
  %v550 = vpack.c.bf16 %v540, %v539
  %v551 = vpack.c.bf16 %v542, %v541
  %v552 = vpack.c.bf16 %v544, %v543
  %v569 = vunpack.c.l.b16 %v295
  %v570 = vunpack.c.l.b16 %v296
  %v571 = vunpack.c.l.b16 %v297
  %v572 = vunpack.c.l.b16 %v298
  %v573 = vunpack.c.l.b16 %v299
  %v574 = vunpack.c.l.b16 %v300
  %v575 = vunpack.c.l.b16 %v301
  %v576 = vunpack.c.l.b16 %v302
  %v577 = vunpack.c.l.b16 %v303
  %v578 = vunpack.c.l.b16 %v304
  %v579 = vunpack.c.l.b16 %v305
  %v580 = vunpack.c.l.b16 %v306
  %v581 = vunpack.c.l.b16 %v307
  %v582 = vunpack.c.l.b16 %v308
  %v583 = vunpack.c.l.b16 %v309
  %v584 = vunpack.c.l.b16 %v310
  %v585 = vpack.c.b16 %v570, %v569
  %v586 = vpack.c.b16 %v572, %v571
  %v587 = vpack.c.b16 %v574, %v573
  %v588 = vpack.c.b16 %v576, %v575
  %v589 = vpack.c.b16 %v578, %v577
  %v590 = vpack.c.b16 %v580, %v579
  %v591 = vpack.c.b16 %v582, %v581
  %v592 = vpack.c.b16 %v584, %v583
  %601 = vmatprep.subr.bf16.mxu0 0
  %602 = vmatpush1.bf16.msra.mxu0 %v552
  %603 = vmatprep.subr.bf16.mxu0 0
  %604 = vmatpush1.bf16.msra.mxu0 %v551
  %605 = vmatprep.subr.bf16.mxu0 0
  %606 = vmatpush1.bf16.msra.mxu0 %v550
  %607 = vmatprep.subr.bf16.mxu0 0
  %608 = vmatpush1.bf16.msra.mxu0 %v549
  %609 = vmatprep.subr.bf16.mxu0 0
  %610 = vmatpush1.bf16.msra.mxu0 %v548
  %611 = vmatprep.subr.bf16.mxu0 0
  %612 = vmatpush1.bf16.msra.mxu0 %v547
  %613 = vmatprep.subr.bf16.mxu0 0
  %614 = vmatpush1.bf16.msra.mxu0 %v546
  %615 = vmatprep.subr.bf16.mxu0 0
  %616 = vmatpush1.bf16.msra.mxu0 %v545
  %617 = vmatprep.subr.bf16.mxu0 0
  %618 = vmatpush2.bf16.msra.mxu0 0
  %619 = vmatprep.subr.bf16.mxu0 0
  %620 = vmatpush2.bf16.msra.mxu0 0
  %621 = vmatprep.subr.bf16.mxu0 0
  %622 = vmatpush2.bf16.msra.mxu0 0
  %623 = vmatprep.subr.bf16.mxu0 0
  %624 = vmatpush2.bf16.msra.mxu0 0
  %625 = vmatprep.subr.bf16.mxu0 0
  %626 = vmatpush2.bf16.msra.mxu0 0
  %627 = vmatprep.subr.bf16.mxu0 0
  %628 = vmatpush2.bf16.msra.mxu0 0
  %629 = vmatprep.subr.bf16.mxu0 0
  %630 = vmatpush2.bf16.msra.mxu0 0
  %631 = vmatprep.subr.bf16.mxu0 0
  %632 = vmatpush2.bf16.msra.mxu0 0
  %633 = vmatprep.mubr.bf16.mxu0 0
  %634 = vmatmul.mubr.bf16.gmra.mxu0 %v585
  %v635 = vpop.f32.mrf.mxu0
  %v636 = vadd.f32 0.0, %v635
  %v637 = vpop.f32.mrf.mxu0
  %v638 = vpop.f32.mrf.mxu0
  %v639 = vadd.f32 0.0, %v638
  %v640 = vpop.f32.mrf.mxu0
  %641 = vmatprep.mubr.bf16.mxu0 0
  %642 = vmatmul.mubr.bf16.gmra.mxu0 %v586
  %v643 = vpop.f32.mrf.mxu0
  %v644 = vadd.f32 0.0, %v643
  %v645 = vpop.f32.mrf.mxu0
  %v646 = vpop.f32.mrf.mxu0
  %v647 = vadd.f32 0.0, %v646
  %v648 = vpop.f32.mrf.mxu0
  %649 = vmatprep.mubr.bf16.mxu0 0
  %650 = vmatmul.mubr.bf16.gmra.mxu0 %v587
  %v651 = vpop.f32.mrf.mxu0
  %v652 = vadd.f32 0.0, %v651
  %v653 = vpop.f32.mrf.mxu0
  %v654 = vpop.f32.mrf.mxu0
  %v655 = vadd.f32 0.0, %v654
  %v656 = vpop.f32.mrf.mxu0
  %657 = vmatprep.mubr.bf16.mxu0 0
  %658 = vmatmul.mubr.bf16.gmra.mxu0 %v588
  %v659 = vpop.f32.mrf.mxu0
  %v660 = vadd.f32 0.0, %v659
  %v661 = vpop.f32.mrf.mxu0
  %v662 = vpop.f32.mrf.mxu0
  %v663 = vadd.f32 0.0, %v662
  %v664 = vpop.f32.mrf.mxu0
  %665 = vmatprep.mubr.bf16.mxu0 0
  %666 = vmatmul.mubr.bf16.gmra.mxu0 %v589
  %v667 = vpop.f32.mrf.mxu0
  %v668 = vadd.f32 0.0, %v667
  %v669 = vpop.f32.mrf.mxu0
  %v670 = vpop.f32.mrf.mxu0
  %v671 = vadd.f32 0.0, %v670
  %v672 = vpop.f32.mrf.mxu0
  %673 = vmatprep.mubr.bf16.mxu0 0
  %674 = vmatmul.mubr.bf16.gmra.mxu0 %v590
  %v675 = vpop.f32.mrf.mxu0
  %v676 = vadd.f32 0.0, %v675
  %v677 = vpop.f32.mrf.mxu0
  %v678 = vpop.f32.mrf.mxu0
  %v679 = vadd.f32 0.0, %v678
  %v680 = vpop.f32.mrf.mxu0
  %681 = vmatprep.mubr.bf16.mxu0 0
  %682 = vmatmul.mubr.bf16.gmra.mxu0 %v591
  %v683 = vpop.f32.mrf.mxu0
  %v684 = vadd.f32 0.0, %v683
  %v685 = vpop.f32.mrf.mxu0
  %v686 = vpop.f32.mrf.mxu0
  %v687 = vadd.f32 0.0, %v686
  %v688 = vpop.f32.mrf.mxu0
  %689 = vmatprep.mubr.bf16.mxu0 0
  %690 = vmatmul.mubr.bf16.gmra.mxu0 %v592
  %v691 = vpop.f32.mrf.mxu0
  %v692 = vadd.f32 0.0, %v691
  %v693 = vpop.f32.mrf.mxu0
  %v694 = vpop.f32.mrf.mxu0
  %v695 = vadd.f32 0.0, %v694
  %v696 = vpop.f32.mrf.mxu0
  %697 = vdwg.mxu0
  %v698 = vmul.f32 %v375, %v636
  %v699 = vmul.f32 %v376, %v639
  %v700 = vmul.f32 %v377, %v644
  %v701 = vmul.f32 %v378, %v647
  %v702 = vmul.f32 %v379, %v652
  %v703 = vmul.f32 %v380, %v655
  %v704 = vmul.f32 %v381, %v660
  %v705 = vmul.f32 %v382, %v663
  %v706 = vmul.f32 %v383, %v668
  %v707 = vmul.f32 %v384, %v671
  %v708 = vmul.f32 %v385, %v676
  %v709 = vmul.f32 %v386, %v679
  %v710 = vmul.f32 %v387, %v684
  %v711 = vmul.f32 %v388, %v687
  %v712 = vmul.f32 %v389, %v692
  %v713 = vmul.f32 %v390, %v695
  %v714 = vlaneseq
  %v715 = vshrl.u32 %v714, 7
  %v716 = vsub.s32 0, %v715
  %v717 = vrot.slane %v391, %v716
  %v718 = vadd.f32 %v698, %v717
  %v719 = vadd.f32 %v699, %v717
  %v720 = vadd.f32 %v700, %v717
  %v721 = vadd.f32 %v701, %v717
  %v722 = vadd.f32 %v702, %v717
  %v723 = vadd.f32 %v703, %v717
  %v724 = vadd.f32 %v704, %v717
  %v725 = vadd.f32 %v705, %v717
  %v726 = vadd.f32 %v706, %v717
  %v727 = vadd.f32 %v707, %v717
  %v728 = vadd.f32 %v708, %v717
  %v729 = vadd.f32 %v709, %v717
  %v730 = vadd.f32 %v710, %v717
  %v731 = vadd.f32 %v711, %v717
  %v732 = vadd.f32 %v712, %v717
  %v733 = vadd.f32 %v713, %v717
  %735 = vset.pattern.permute.xlu0 0
  %736 = vperm.xlu0 %735, %v69
  %v737 = vpop.permute.xlu0 %736
  %740 = vset.pattern.permute.xlu0 0
  %741 = vperm.xlu0 %740, %v70
  %v742 = vpop.permute.xlu0 %741
  %745 = vset.pattern.permute.xlu0 0
  %746 = vperm.xlu0 %745, %v71
  %v747 = vpop.permute.xlu0 %746
  %750 = vset.pattern.permute.xlu0 0
  %751 = vperm.xlu0 %750, %v72
  %v752 = vpop.permute.xlu0 %751
  %755 = vset.pattern.permute.xlu0 0
  %756 = vperm.xlu0 %755, %v73
  %v757 = vpop.permute.xlu0 %756
  %760 = vset.pattern.permute.xlu0 0
  %761 = vperm.xlu0 %760, %v74
  %v762 = vpop.permute.xlu0 %761
  %765 = vset.pattern.permute.xlu0 0
  %766 = vperm.xlu0 %765, %v75
  %v767 = vpop.permute.xlu0 %766
  %770 = vset.pattern.permute.xlu0 0
  %771 = vperm.xlu0 %770, %v76
  %v772 = vpop.permute.xlu0 %771
  %775 = vset.pattern.permute.xlu0 0
  %776 = vperm.xlu0 %775, %v77
  %v777 = vpop.permute.xlu0 %776
  %780 = vset.pattern.permute.xlu0 0
  %781 = vperm.xlu0 %780, %v78
  %v782 = vpop.permute.xlu0 %781
  %785 = vset.pattern.permute.xlu0 0
  %786 = vperm.xlu0 %785, %v79
  %v787 = vpop.permute.xlu0 %786
  %790 = vset.pattern.permute.xlu0 0
  %791 = vperm.xlu0 %790, %v80
  %v792 = vpop.permute.xlu0 %791
  %795 = vset.pattern.permute.xlu0 0
  %796 = vperm.xlu0 %795, %v81
  %v797 = vpop.permute.xlu0 %796
  %800 = vset.pattern.permute.xlu0 0
  %801 = vperm.xlu0 %800, %v82
  %v802 = vpop.permute.xlu0 %801
  %805 = vset.pattern.permute.xlu0 0
  %806 = vperm.xlu0 %805, %v83
  %v807 = vpop.permute.xlu0 %806
  %810 = vset.pattern.permute.xlu0 0
  %811 = vperm.xlu0 %810, %v84
  %v812 = vpop.permute.xlu0 %811
  %v814 = vmul.f32 %v718, %v737
  %v815 = vmul.f32 %v719, %v742
  %v816 = vmul.f32 %v720, %v747
  %v817 = vmul.f32 %v721, %v752
  %v818 = vmul.f32 %v722, %v757
  %v819 = vmul.f32 %v723, %v762
  %v820 = vmul.f32 %v724, %v767
  %v821 = vmul.f32 %v725, %v772
  %v822 = vmul.f32 %v726, %v777
  %v823 = vmul.f32 %v727, %v782
  %v824 = vmul.f32 %v728, %v787
  %v825 = vmul.f32 %v729, %v792
  %v826 = vmul.f32 %v730, %v797
  %v827 = vmul.f32 %v731, %v802
  %v828 = vmul.f32 %v732, %v807
  %v829 = vmul.f32 %v733, %v812
  %v830 = vmax.f32 %v814, 0.0
  %v831 = vmax.f32 %v815, 0.0
  %v832 = vmax.f32 %v816, 0.0
  %v833 = vmax.f32 %v817, 0.0
  %v834 = vmax.f32 %v818, 0.0
  %v835 = vmax.f32 %v819, 0.0
  %v836 = vmax.f32 %v820, 0.0
  %v837 = vmax.f32 %v821, 0.0
  %v838 = vmax.f32 %v822, 0.0
  %v839 = vmax.f32 %v823, 0.0
  %v840 = vmax.f32 %v824, 0.0
  %v841 = vmax.f32 %v825, 0.0
  %v842 = vmax.f32 %v826, 0.0
  %v843 = vmax.f32 %v827, 0.0
  %v844 = vmax.f32 %v828, 0.0
  %v845 = vmax.f32 %v829, 0.0
  %v846 = vld [vmem:[%s4] sm:$0xf]
  %v847 = vld [vmem:[%s4 + $0x4] sm:$0xf]
  %v848 = vld [vmem:[%s4 + $0x8] sm:$0xf]
  %v849 = vld [vmem:[%s4 + $0xc] sm:$0xf]
  %v850 = vld [vmem:[%s4 + $0x10] sm:$0xf]
  %v851 = vld [vmem:[%s4 + $0x14] sm:$0xf]
  %v852 = vld [vmem:[%s4 + $0x18] sm:$0xf]
  %v853 = vld [vmem:[%s4 + $0x1c] sm:$0xf]
  %v854 = vpack.c.bf16 %v831, %v830
  %v855 = vpack.c.bf16 %v833, %v832
  %v856 = vpack.c.bf16 %v835, %v834
  %v857 = vpack.c.bf16 %v837, %v836
  %v858 = vpack.c.bf16 %v839, %v838
  %v859 = vpack.c.bf16 %v841, %v840
  %v860 = vpack.c.bf16 %v843, %v842
  %v861 = vpack.c.bf16 %v845, %v844
  %v870 = vunpack.c.l.b16 %v846
  %v871 = vunpack.c.l.b16 %v847
  %v872 = vunpack.c.l.b16 %v848
  %v873 = vunpack.c.l.b16 %v849
  %v874 = vunpack.c.l.b16 %v850
  %v875 = vunpack.c.l.b16 %v851
  %v876 = vunpack.c.l.b16 %v852
  %v877 = vunpack.c.l.b16 %v853
  %v878 = vpack.c.b16 %v871, %v870
  %v879 = vpack.c.b16 %v873, %v872
  %v880 = vpack.c.b16 %v875, %v874
  %v881 = vpack.c.b16 %v877, %v876
  %vm886 = vcmask 523264
  %v888 = vsel %vm886, %v854, 0
  %v891 = vsel %vm886, %v855, 0
  %v894 = vsel %vm886, %v856, 0
  %v897 = vsel %vm886, %v857, 0
  %v900 = vsel %vm886, %v858, 0
  %v903 = vsel %vm886, %v859, 0
  %v906 = vsel %vm886, %v860, 0
  %v909 = vsel %vm886, %v861, 0
  %911 = vmatprep.subr.bf16.mxu0 0
  %912 = vmatpush1.bf16.msra.mxu0 0
  %913 = vmatprep.subr.bf16.mxu0 0
  %914 = vmatpush1.bf16.msra.mxu0 0
  %915 = vmatprep.subr.bf16.mxu0 0
  %916 = vmatpush1.bf16.msra.mxu0 0
  %917 = vmatprep.subr.bf16.mxu0 0
  %918 = vmatpush1.bf16.msra.mxu0 0
  %919 = vmatprep.subr.bf16.mxu0 0
  %920 = vmatpush1.bf16.msra.mxu0 %v881
  %921 = vmatprep.subr.bf16.mxu0 0
  %922 = vmatpush1.bf16.msra.mxu0 %v880
  %923 = vmatprep.subr.bf16.mxu0 0
  %924 = vmatpush1.bf16.msra.mxu0 %v879
  %925 = vmatprep.subr.bf16.mxu0 0
  %926 = vmatpush1.bf16.msra.mxu0 %v878
  %927 = vmatprep.subr.bf16.mxu0 0
  %928 = vmatpush2.bf16.msra.mxu0 0
  %929 = vmatprep.subr.bf16.mxu0 0
  %930 = vmatpush2.bf16.msra.mxu0 0
  %931 = vmatprep.subr.bf16.mxu0 0
  %932 = vmatpush2.bf16.msra.mxu0 0
  %933 = vmatprep.subr.bf16.mxu0 0
  %934 = vmatpush2.bf16.msra.mxu0 0
  %935 = vmatprep.subr.bf16.mxu0 0
  %936 = vmatpush2.bf16.msra.mxu0 0
  %937 = vmatprep.subr.bf16.mxu0 0
  %938 = vmatpush2.bf16.msra.mxu0 0
  %939 = vmatprep.subr.bf16.mxu0 0
  %940 = vmatpush2.bf16.msra.mxu0 0
  %941 = vmatprep.subr.bf16.mxu0 0
  %942 = vmatpush2.bf16.msra.mxu0 0
  %943 = vmatprep.mubr.bf16.mxu0 0
  %944 = vmatmul.mubr.bf16.gmra.mxu0 %v888
  %v945 = vpop.f32.mrf.mxu0
  %v946 = vadd.f32 0.0, %v945
  %v947 = vpop.f32.mrf.mxu0
  %v948 = vpop.f32.mrf.mxu0
  %v949 = vadd.f32 0.0, %v948
  %v950 = vpop.f32.mrf.mxu0
  %951 = vmatprep.mubr.bf16.mxu0 0
  %952 = vmatmul.mubr.bf16.gmra.mxu0 %v891
  %v953 = vpop.f32.mrf.mxu0
  %v954 = vadd.f32 0.0, %v953
  %v955 = vpop.f32.mrf.mxu0
  %v956 = vpop.f32.mrf.mxu0
  %v957 = vadd.f32 0.0, %v956
  %v958 = vpop.f32.mrf.mxu0
  %959 = vmatprep.mubr.bf16.mxu0 0
  %960 = vmatmul.mubr.bf16.gmra.mxu0 %v894
  %v961 = vpop.f32.mrf.mxu0
  %v962 = vadd.f32 0.0, %v961
  %v963 = vpop.f32.mrf.mxu0
  %v964 = vpop.f32.mrf.mxu0
  %v965 = vadd.f32 0.0, %v964
  %v966 = vpop.f32.mrf.mxu0
  %967 = vmatprep.mubr.bf16.mxu0 0
  %968 = vmatmul.mubr.bf16.gmra.mxu0 %v897
  %v969 = vpop.f32.mrf.mxu0
  %v970 = vadd.f32 0.0, %v969
  %v971 = vpop.f32.mrf.mxu0
  %v972 = vpop.f32.mrf.mxu0
  %v973 = vadd.f32 0.0, %v972
  %v974 = vpop.f32.mrf.mxu0
  %975 = vmatprep.mubr.bf16.mxu0 0
  %976 = vmatmul.mubr.bf16.gmra.mxu0 %v900
  %v977 = vpop.f32.mrf.mxu0
  %v978 = vadd.f32 0.0, %v977
  %v979 = vpop.f32.mrf.mxu0
  %v980 = vpop.f32.mrf.mxu0
  %v981 = vadd.f32 0.0, %v980
  %v982 = vpop.f32.mrf.mxu0
  %983 = vmatprep.mubr.bf16.mxu0 0
  %984 = vmatmul.mubr.bf16.gmra.mxu0 %v903
  %v985 = vpop.f32.mrf.mxu0
  %v986 = vadd.f32 0.0, %v985
  %v987 = vpop.f32.mrf.mxu0
  %v988 = vpop.f32.mrf.mxu0
  %v989 = vadd.f32 0.0, %v988
  %v990 = vpop.f32.mrf.mxu0
  %991 = vmatprep.mubr.bf16.mxu0 0
  %992 = vmatmul.mubr.bf16.gmra.mxu0 %v906
  %v993 = vpop.f32.mrf.mxu0
  %v994 = vadd.f32 0.0, %v993
  %v995 = vpop.f32.mrf.mxu0
  %v996 = vpop.f32.mrf.mxu0
  %v997 = vadd.f32 0.0, %v996
  %v998 = vpop.f32.mrf.mxu0
  %999 = vmatprep.mubr.bf16.mxu0 0
  %1000 = vmatmul.mubr.bf16.gmra.mxu0 %v909
  %v1001 = vpop.f32.mrf.mxu0
  %v1002 = vadd.f32 0.0, %v1001
  %v1003 = vpop.f32.mrf.mxu0
  %v1004 = vpop.f32.mrf.mxu0
  %v1005 = vadd.f32 0.0, %v1004
  %v1006 = vpop.f32.mrf.mxu0
  %1007 = vdwg.mxu0
  %v1008 = vmul.f32 %v375, %v946
  %v1009 = vmul.f32 %v376, %v949
  %v1010 = vmul.f32 %v377, %v954
  %v1011 = vmul.f32 %v378, %v957
  %v1012 = vmul.f32 %v379, %v962
  %v1013 = vmul.f32 %v380, %v965
  %v1014 = vmul.f32 %v381, %v970
  %v1015 = vmul.f32 %v382, %v973
  %v1016 = vmul.f32 %v383, %v978
  %v1017 = vmul.f32 %v384, %v981
  %v1018 = vmul.f32 %v385, %v986
  %v1019 = vmul.f32 %v386, %v989
  %v1020 = vmul.f32 %v387, %v994
  %v1021 = vmul.f32 %v388, %v997
  %v1022 = vmul.f32 %v389, %v1002
  %v1023 = vmul.f32 %v390, %v1005
  %v1024 = vpack.c.bf16 %v1009, %v1008
  %v1025 = vpack.c.bf16 %v1011, %v1010
  %v1026 = vpack.c.bf16 %v1013, %v1012
  %v1027 = vpack.c.bf16 %v1015, %v1014
  %v1028 = vpack.c.bf16 %v1017, %v1016
  %v1029 = vpack.c.bf16 %v1019, %v1018
  %v1030 = vpack.c.bf16 %v1021, %v1020
  %v1031 = vpack.c.bf16 %v1023, %v1022
  %1032 = vmatprep.subr.bf16.mxu0 0
  %1033 = vmatpush1.bf16.msra.mxu0 %v1031
  %1034 = vmatprep.subr.bf16.mxu0 0
  %1035 = vmatpush1.bf16.msra.mxu0 %v1030
  %1036 = vmatprep.subr.bf16.mxu0 0
  %1037 = vmatpush1.bf16.msra.mxu0 %v1029
  %1038 = vmatprep.subr.bf16.mxu0 0
  %1039 = vmatpush1.bf16.msra.mxu0 %v1028
  %1040 = vmatprep.subr.bf16.mxu0 0
  %1041 = vmatpush1.bf16.msra.mxu0 %v1027
  %1042 = vmatprep.subr.bf16.mxu0 0
  %1043 = vmatpush1.bf16.msra.mxu0 %v1026
  %1044 = vmatprep.subr.bf16.mxu0 0
  %1045 = vmatpush1.bf16.msra.mxu0 %v1025
  %1046 = vmatprep.subr.bf16.mxu0 0
  %1047 = vmatpush1.bf16.msra.mxu0 %v1024
  %1048 = vmatprep.subr.bf16.mxu0 0
  %1049 = vmatpush2.bf16.msra.mxu0 0
  %1050 = vmatprep.subr.bf16.mxu0 0
  %1051 = vmatpush2.bf16.msra.mxu0 0
  %1052 = vmatprep.subr.bf16.mxu0 0
  %1053 = vmatpush2.bf16.msra.mxu0 0
  %1054 = vmatprep.subr.bf16.mxu0 0
  %1055 = vmatpush2.bf16.msra.mxu0 0
  %1056 = vmatprep.subr.bf16.mxu0 0
  %1057 = vmatpush2.bf16.msra.mxu0 0
  %1058 = vmatprep.subr.bf16.mxu0 0
  %1059 = vmatpush2.bf16.msra.mxu0 0
  %1060 = vmatprep.subr.bf16.mxu0 0
  %1061 = vmatpush2.bf16.msra.mxu0 0
  %1062 = vmatprep.subr.bf16.mxu0 0
  %1063 = vmatpush2.bf16.msra.mxu0 0
  %1064 = vmatprep.mubr.bf16.mxu0 0
  %1065 = vmatmul.mubr.bf16.gmra.mxu0 %v585
  %v1066 = vpop.f32.mrf.mxu0
  %v1067 = vadd.f32 0.0, %v1066
  %v1068 = vpop.f32.mrf.mxu0
  %v1069 = vpop.f32.mrf.mxu0
  %v1070 = vadd.f32 0.0, %v1069
  %v1071 = vpop.f32.mrf.mxu0
  %1072 = vmatprep.mubr.bf16.mxu0 0
  %1073 = vmatmul.mubr.bf16.gmra.mxu0 %v586
  %v1074 = vpop.f32.mrf.mxu0
  %v1075 = vadd.f32 0.0, %v1074
  %v1076 = vpop.f32.mrf.mxu0
  %v1077 = vpop.f32.mrf.mxu0
  %v1078 = vadd.f32 0.0, %v1077
  %v1079 = vpop.f32.mrf.mxu0
  %1080 = vmatprep.mubr.bf16.mxu0 0
  %1081 = vmatmul.mubr.bf16.gmra.mxu0 %v587
  %v1082 = vpop.f32.mrf.mxu0
  %v1083 = vadd.f32 0.0, %v1082
  %v1084 = vpop.f32.mrf.mxu0
  %v1085 = vpop.f32.mrf.mxu0
  %v1086 = vadd.f32 0.0, %v1085
  %v1087 = vpop.f32.mrf.mxu0
  %1088 = vmatprep.mubr.bf16.mxu0 0
  %1089 = vmatmul.mubr.bf16.gmra.mxu0 %v588
  %v1090 = vpop.f32.mrf.mxu0
  %v1091 = vadd.f32 0.0, %v1090
  %v1092 = vpop.f32.mrf.mxu0
  %v1093 = vpop.f32.mrf.mxu0
  %v1094 = vadd.f32 0.0, %v1093
  %v1095 = vpop.f32.mrf.mxu0
  %1096 = vmatprep.mubr.bf16.mxu0 0
  %1097 = vmatmul.mubr.bf16.gmra.mxu0 %v589
  %v1098 = vpop.f32.mrf.mxu0
  %v1099 = vadd.f32 0.0, %v1098
  %v1100 = vpop.f32.mrf.mxu0
  %v1101 = vpop.f32.mrf.mxu0
  %v1102 = vadd.f32 0.0, %v1101
  %v1103 = vpop.f32.mrf.mxu0
  %1104 = vmatprep.mubr.bf16.mxu0 0
  %1105 = vmatmul.mubr.bf16.gmra.mxu0 %v590
  %v1106 = vpop.f32.mrf.mxu0
  %v1107 = vadd.f32 0.0, %v1106
  %v1108 = vpop.f32.mrf.mxu0
  %v1109 = vpop.f32.mrf.mxu0
  %v1110 = vadd.f32 0.0, %v1109
  %v1111 = vpop.f32.mrf.mxu0
  %1112 = vmatprep.mubr.bf16.mxu0 0
  %1113 = vmatmul.mubr.bf16.gmra.mxu0 %v591
  %v1114 = vpop.f32.mrf.mxu0
  %v1115 = vadd.f32 0.0, %v1114
  %v1116 = vpop.f32.mrf.mxu0
  %v1117 = vpop.f32.mrf.mxu0
  %v1118 = vadd.f32 0.0, %v1117
  %v1119 = vpop.f32.mrf.mxu0
  %1120 = vmatprep.mubr.bf16.mxu0 0
  %1121 = vmatmul.mubr.bf16.gmra.mxu0 %v592
  %v1122 = vpop.f32.mrf.mxu0
  %v1123 = vadd.f32 0.0, %v1122
  %v1124 = vpop.f32.mrf.mxu0
  %v1125 = vpop.f32.mrf.mxu0
  %v1126 = vadd.f32 0.0, %v1125
  %v1127 = vpop.f32.mrf.mxu0
  %1128 = vdwg.mxu0
  %v1129 = vmul.f32 %v375, %v1067
  %v1130 = vmul.f32 %v376, %v1070
  %v1131 = vmul.f32 %v377, %v1075
  %v1132 = vmul.f32 %v378, %v1078
  %v1133 = vmul.f32 %v379, %v1083
  %v1134 = vmul.f32 %v380, %v1086
  %v1135 = vmul.f32 %v381, %v1091
  %v1136 = vmul.f32 %v382, %v1094
  %v1137 = vmul.f32 %v383, %v1099
  %v1138 = vmul.f32 %v384, %v1102
  %v1139 = vmul.f32 %v385, %v1107
  %v1140 = vmul.f32 %v386, %v1110
  %v1141 = vmul.f32 %v387, %v1115
  %v1142 = vmul.f32 %v388, %v1118
  %v1143 = vmul.f32 %v389, %v1123
  %v1144 = vmul.f32 %v390, %v1126
  %v1145 = vlaneseq
  %v1146 = vshrl.u32 %v1145, 7
  %v1147 = vsub.s32 0, %v1146
  %v1148 = vrot.slane %v392, %v1147
  %v1149 = vadd.f32 %v1129, %v1148
  %v1150 = vadd.f32 %v1130, %v1148
  %v1151 = vadd.f32 %v1131, %v1148
  %v1152 = vadd.f32 %v1132, %v1148
  %v1153 = vadd.f32 %v1133, %v1148
  %v1154 = vadd.f32 %v1134, %v1148
  %v1155 = vadd.f32 %v1135, %v1148
  %v1156 = vadd.f32 %v1136, %v1148
  %v1157 = vadd.f32 %v1137, %v1148
  %v1158 = vadd.f32 %v1138, %v1148
  %v1159 = vadd.f32 %v1139, %v1148
  %v1160 = vadd.f32 %v1140, %v1148
  %v1161 = vadd.f32 %v1141, %v1148
  %v1162 = vadd.f32 %v1142, %v1148
  %v1163 = vadd.f32 %v1143, %v1148
  %v1164 = vadd.f32 %v1144, %v1148
  %v1165 = vmul.f32 %v1149, %v737
  %v1166 = vmul.f32 %v1150, %v742
  %v1167 = vmul.f32 %v1151, %v747
  %v1168 = vmul.f32 %v1152, %v752
  %v1169 = vmul.f32 %v1153, %v757
  %v1170 = vmul.f32 %v1154, %v762
  %v1171 = vmul.f32 %v1155, %v767
  %v1172 = vmul.f32 %v1156, %v772
  %v1173 = vmul.f32 %v1157, %v777
  %v1174 = vmul.f32 %v1158, %v782
  %v1175 = vmul.f32 %v1159, %v787
  %v1176 = vmul.f32 %v1160, %v792
  %v1177 = vmul.f32 %v1161, %v797
  %v1178 = vmul.f32 %v1162, %v802
  %v1179 = vmul.f32 %v1163, %v807
  %v1180 = vmul.f32 %v1164, %v812
  %v1181 = vmax.f32 %v1165, 0.0
  %v1182 = vmax.f32 %v1166, 0.0
  %v1183 = vmax.f32 %v1167, 0.0
  %v1184 = vmax.f32 %v1168, 0.0
  %v1185 = vmax.f32 %v1169, 0.0
  %v1186 = vmax.f32 %v1170, 0.0
  %v1187 = vmax.f32 %v1171, 0.0
  %v1188 = vmax.f32 %v1172, 0.0
  %v1189 = vmax.f32 %v1173, 0.0
  %v1190 = vmax.f32 %v1174, 0.0
  %v1191 = vmax.f32 %v1175, 0.0
  %v1192 = vmax.f32 %v1176, 0.0
  %v1193 = vmax.f32 %v1177, 0.0
  %v1194 = vmax.f32 %v1178, 0.0
  %v1195 = vmax.f32 %v1179, 0.0
  %v1196 = vmax.f32 %v1180, 0.0
  %v1197 = vld [vmem:[%s5] sm:$0xf]
  %v1198 = vld [vmem:[%s5 + $0x4] sm:$0xf]
  %v1199 = vld [vmem:[%s5 + $0x8] sm:$0xf]
  %v1200 = vld [vmem:[%s5 + $0xc] sm:$0xf]
  %v1201 = vld [vmem:[%s5 + $0x10] sm:$0xf]
  %v1202 = vld [vmem:[%s5 + $0x14] sm:$0xf]
  %v1203 = vld [vmem:[%s5 + $0x18] sm:$0xf]
  %v1204 = vld [vmem:[%s5 + $0x1c] sm:$0xf]
  %v1205 = vld [vmem:[%s5 + $0x20] sm:$0xf]
  %v1206 = vld [vmem:[%s5 + $0x24] sm:$0xf]
  %v1207 = vld [vmem:[%s5 + $0x28] sm:$0xf]
  %v1208 = vld [vmem:[%s5 + $0x2c] sm:$0xf]
  %v1209 = vld [vmem:[%s5 + $0x30] sm:$0xf]
  %v1210 = vld [vmem:[%s5 + $0x34] sm:$0xf]
  %v1211 = vld [vmem:[%s5 + $0x38] sm:$0xf]
  %v1212 = vld [vmem:[%s5 + $0x3c] sm:$0xf]
  %v1213 = vpack.c.bf16 %v1182, %v1181
  %v1214 = vpack.c.bf16 %v1184, %v1183
  %v1215 = vpack.c.bf16 %v1186, %v1185
  %v1216 = vpack.c.bf16 %v1188, %v1187
  %v1217 = vpack.c.bf16 %v1190, %v1189
  %v1218 = vpack.c.bf16 %v1192, %v1191
  %v1219 = vpack.c.bf16 %v1194, %v1193
  %v1220 = vpack.c.bf16 %v1196, %v1195
  %v1229 = vunpack.c.l.b16 %v1205
  %v1230 = vunpack.c.l.b16 %v1206
  %v1231 = vunpack.c.l.b16 %v1207
  %v1232 = vunpack.c.l.b16 %v1208
  %v1233 = vunpack.c.l.b16 %v1209
  %v1234 = vunpack.c.l.b16 %v1210
  %v1235 = vunpack.c.l.b16 %v1211
  %v1236 = vunpack.c.l.b16 %v1212
  %v1237 = vpack.c.b16 %v1230, %v1229
  %v1238 = vpack.c.b16 %v1232, %v1231
  %v1239 = vpack.c.b16 %v1234, %v1233
  %v1240 = vpack.c.b16 %v1236, %v1235
  %v1246 = vsel %vm886, %v1213, 0
  %v1249 = vsel %vm886, %v1214, 0
  %v1252 = vsel %vm886, %v1215, 0
  %v1255 = vsel %vm886, %v1216, 0
  %v1258 = vsel %vm886, %v1217, 0
  %v1261 = vsel %vm886, %v1218, 0
  %v1264 = vsel %vm886, %v1219, 0
  %v1267 = vsel %vm886, %v1220, 0
  %1269 = vmatprep.subr.bf16.mxu0 0
  %1270 = vmatpush1.bf16.msra.mxu0 0
  %1271 = vmatprep.subr.bf16.mxu0 0
  %1272 = vmatpush1.bf16.msra.mxu0 0
  %1273 = vmatprep.subr.bf16.mxu0 0
  %1274 = vmatpush1.bf16.msra.mxu0 0
  %1275 = vmatprep.subr.bf16.mxu0 0
  %1276 = vmatpush1.bf16.msra.mxu0 0
  %1277 = vmatprep.subr.bf16.mxu0 0
  %1278 = vmatpush1.bf16.msra.mxu0 %v1240
  %1279 = vmatprep.subr.bf16.mxu0 0
  %1280 = vmatpush1.bf16.msra.mxu0 %v1239
  %1281 = vmatprep.subr.bf16.mxu0 0
  %1282 = vmatpush1.bf16.msra.mxu0 %v1238
  %1283 = vmatprep.subr.bf16.mxu0 0
  %1284 = vmatpush1.bf16.msra.mxu0 %v1237
  %1285 = vmatprep.subr.bf16.mxu0 0
  %1286 = vmatpush2.bf16.msra.mxu0 0
  %1287 = vmatprep.subr.bf16.mxu0 0
  %1288 = vmatpush2.bf16.msra.mxu0 0
  %1289 = vmatprep.subr.bf16.mxu0 0
  %1290 = vmatpush2.bf16.msra.mxu0 0
  %1291 = vmatprep.subr.bf16.mxu0 0
  %1292 = vmatpush2.bf16.msra.mxu0 0
  %1293 = vmatprep.subr.bf16.mxu0 0
  %1294 = vmatpush2.bf16.msra.mxu0 0
  %1295 = vmatprep.subr.bf16.mxu0 0
  %1296 = vmatpush2.bf16.msra.mxu0 0
  %1297 = vmatprep.subr.bf16.mxu0 0
  %1298 = vmatpush2.bf16.msra.mxu0 0
  %1299 = vmatprep.subr.bf16.mxu0 0
  %1300 = vmatpush2.bf16.msra.mxu0 0
  %1301 = vmatprep.mubr.bf16.mxu0 0
  %1302 = vmatmul.mubr.bf16.gmra.mxu0 %v1246
  %v1303 = vpop.f32.mrf.mxu0
  %v1304 = vadd.f32 0.0, %v1303
  %v1305 = vpop.f32.mrf.mxu0
  %v1306 = vpop.f32.mrf.mxu0
  %v1307 = vadd.f32 0.0, %v1306
  %v1308 = vpop.f32.mrf.mxu0
  %1309 = vmatprep.mubr.bf16.mxu0 0
  %1310 = vmatmul.mubr.bf16.gmra.mxu0 %v1249
  %v1311 = vpop.f32.mrf.mxu0
  %v1312 = vadd.f32 0.0, %v1311
  %v1313 = vpop.f32.mrf.mxu0
  %v1314 = vpop.f32.mrf.mxu0
  %v1315 = vadd.f32 0.0, %v1314
  %v1316 = vpop.f32.mrf.mxu0
  %1317 = vmatprep.mubr.bf16.mxu0 0
  %1318 = vmatmul.mubr.bf16.gmra.mxu0 %v1252
  %v1319 = vpop.f32.mrf.mxu0
  %v1320 = vadd.f32 0.0, %v1319
  %v1321 = vpop.f32.mrf.mxu0
  %v1322 = vpop.f32.mrf.mxu0
  %v1323 = vadd.f32 0.0, %v1322
  %v1324 = vpop.f32.mrf.mxu0
  %1325 = vmatprep.mubr.bf16.mxu0 0
  %1326 = vmatmul.mubr.bf16.gmra.mxu0 %v1255
  %v1327 = vpop.f32.mrf.mxu0
  %v1328 = vadd.f32 0.0, %v1327
  %v1329 = vpop.f32.mrf.mxu0
  %v1330 = vpop.f32.mrf.mxu0
  %v1331 = vadd.f32 0.0, %v1330
  %v1332 = vpop.f32.mrf.mxu0
  %1333 = vmatprep.mubr.bf16.mxu0 0
  %1334 = vmatmul.mubr.bf16.gmra.mxu0 %v1258
  %v1335 = vpop.f32.mrf.mxu0
  %v1336 = vadd.f32 0.0, %v1335
  %v1337 = vpop.f32.mrf.mxu0
  %v1338 = vpop.f32.mrf.mxu0
  %v1339 = vadd.f32 0.0, %v1338
  %v1340 = vpop.f32.mrf.mxu0
  %1341 = vmatprep.mubr.bf16.mxu0 0
  %1342 = vmatmul.mubr.bf16.gmra.mxu0 %v1261
  %v1343 = vpop.f32.mrf.mxu0
  %v1344 = vadd.f32 0.0, %v1343
  %v1345 = vpop.f32.mrf.mxu0
  %v1346 = vpop.f32.mrf.mxu0
  %v1347 = vadd.f32 0.0, %v1346
  %v1348 = vpop.f32.mrf.mxu0
  %1349 = vmatprep.mubr.bf16.mxu0 0
  %1350 = vmatmul.mubr.bf16.gmra.mxu0 %v1264
  %v1351 = vpop.f32.mrf.mxu0
  %v1352 = vadd.f32 0.0, %v1351
  %v1353 = vpop.f32.mrf.mxu0
  %v1354 = vpop.f32.mrf.mxu0
  %v1355 = vadd.f32 0.0, %v1354
  %v1356 = vpop.f32.mrf.mxu0
  %1357 = vmatprep.mubr.bf16.mxu0 0
  %1358 = vmatmul.mubr.bf16.gmra.mxu0 %v1267
  %v1359 = vpop.f32.mrf.mxu0
  %v1360 = vadd.f32 0.0, %v1359
  %v1361 = vpop.f32.mrf.mxu0
  %v1362 = vpop.f32.mrf.mxu0
  %v1363 = vadd.f32 0.0, %v1362
  %v1364 = vpop.f32.mrf.mxu0
  %1365 = vdwg.mxu0
  %v1374 = vunpack.c.l.b16 %v1197
  %v1375 = vunpack.c.l.b16 %v1198
  %v1376 = vunpack.c.l.b16 %v1199
  %v1377 = vunpack.c.l.b16 %v1200
  %v1378 = vunpack.c.l.b16 %v1201
  %v1379 = vunpack.c.l.b16 %v1202
  %v1380 = vunpack.c.l.b16 %v1203
  %v1381 = vunpack.c.l.b16 %v1204
  %v1382 = vpack.c.b16 %v1375, %v1374
  %v1383 = vpack.c.b16 %v1377, %v1376
  %v1384 = vpack.c.b16 %v1379, %v1378
  %v1385 = vpack.c.b16 %v1381, %v1380
  %1390 = vmatprep.subr.bf16.mxu0 0
  %1391 = vmatpush1.bf16.msra.mxu0 0
  %1392 = vmatprep.subr.bf16.mxu0 0
  %1393 = vmatpush1.bf16.msra.mxu0 0
  %1394 = vmatprep.subr.bf16.mxu0 0
  %1395 = vmatpush1.bf16.msra.mxu0 0
  %1396 = vmatprep.subr.bf16.mxu0 0
  %1397 = vmatpush1.bf16.msra.mxu0 0
  %1398 = vmatprep.subr.bf16.mxu0 0
  %1399 = vmatpush1.bf16.msra.mxu0 %v1385
  %1400 = vmatprep.subr.bf16.mxu0 0
  %1401 = vmatpush1.bf16.msra.mxu0 %v1384
  %1402 = vmatprep.subr.bf16.mxu0 0
  %1403 = vmatpush1.bf16.msra.mxu0 %v1383
  %1404 = vmatprep.subr.bf16.mxu0 0
  %1405 = vmatpush1.bf16.msra.mxu0 %v1382
  %1406 = vmatprep.subr.bf16.mxu0 0
  %1407 = vmatpush2.bf16.msra.mxu0 0
  %1408 = vmatprep.subr.bf16.mxu0 0
  %1409 = vmatpush2.bf16.msra.mxu0 0
  %1410 = vmatprep.subr.bf16.mxu0 0
  %1411 = vmatpush2.bf16.msra.mxu0 0
  %1412 = vmatprep.subr.bf16.mxu0 0
  %1413 = vmatpush2.bf16.msra.mxu0 0
  %1414 = vmatprep.subr.bf16.mxu0 0
  %1415 = vmatpush2.bf16.msra.mxu0 0
  %1416 = vmatprep.subr.bf16.mxu0 0
  %1417 = vmatpush2.bf16.msra.mxu0 0
  %1418 = vmatprep.subr.bf16.mxu0 0
  %1419 = vmatpush2.bf16.msra.mxu0 0
  %1420 = vmatprep.subr.bf16.mxu0 0
  %1421 = vmatpush2.bf16.msra.mxu0 0
  %1422 = vmatprep.mubr.bf16.mxu0 0
  %1423 = vmatmul.mubr.bf16.gmra.mxu0 %v888
  %v1424 = vpop.f32.mrf.mxu0
  %v1425 = vadd.f32 %v1304, %v1424
  %v1426 = vpop.f32.mrf.mxu0
  %v1427 = vpop.f32.mrf.mxu0
  %v1428 = vadd.f32 %v1307, %v1427
  %v1429 = vpop.f32.mrf.mxu0
  %1430 = vmatprep.mubr.bf16.mxu0 0
  %1431 = vmatmul.mubr.bf16.gmra.mxu0 %v891
  %v1432 = vpop.f32.mrf.mxu0
  %v1433 = vadd.f32 %v1312, %v1432
  %v1434 = vpop.f32.mrf.mxu0
  %v1435 = vpop.f32.mrf.mxu0
  %v1436 = vadd.f32 %v1315, %v1435
  %v1437 = vpop.f32.mrf.mxu0
  %1438 = vmatprep.mubr.bf16.mxu0 0
  %1439 = vmatmul.mubr.bf16.gmra.mxu0 %v894
  %v1440 = vpop.f32.mrf.mxu0
  %v1441 = vadd.f32 %v1320, %v1440
  %v1442 = vpop.f32.mrf.mxu0
  %v1443 = vpop.f32.mrf.mxu0
  %v1444 = vadd.f32 %v1323, %v1443
  %v1445 = vpop.f32.mrf.mxu0
  %1446 = vmatprep.mubr.bf16.mxu0 0
  %1447 = vmatmul.mubr.bf16.gmra.mxu0 %v897
  %v1448 = vpop.f32.mrf.mxu0
  %v1449 = vadd.f32 %v1328, %v1448
  %v1450 = vpop.f32.mrf.mxu0
  %v1451 = vpop.f32.mrf.mxu0
  %v1452 = vadd.f32 %v1331, %v1451
  %v1453 = vpop.f32.mrf.mxu0
  %1454 = vmatprep.mubr.bf16.mxu0 0
  %1455 = vmatmul.mubr.bf16.gmra.mxu0 %v900
  %v1456 = vpop.f32.mrf.mxu0
  %v1457 = vadd.f32 %v1336, %v1456
  %v1458 = vpop.f32.mrf.mxu0
  %v1459 = vpop.f32.mrf.mxu0
  %v1460 = vadd.f32 %v1339, %v1459
  %v1461 = vpop.f32.mrf.mxu0
  %1462 = vmatprep.mubr.bf16.mxu0 0
  %1463 = vmatmul.mubr.bf16.gmra.mxu0 %v903
  %v1464 = vpop.f32.mrf.mxu0
  %v1465 = vadd.f32 %v1344, %v1464
  %v1466 = vpop.f32.mrf.mxu0
  %v1467 = vpop.f32.mrf.mxu0
  %v1468 = vadd.f32 %v1347, %v1467
  %v1469 = vpop.f32.mrf.mxu0
  %1470 = vmatprep.mubr.bf16.mxu0 0
  %1471 = vmatmul.mubr.bf16.gmra.mxu0 %v906
  %v1472 = vpop.f32.mrf.mxu0
  %v1473 = vadd.f32 %v1352, %v1472
  %v1474 = vpop.f32.mrf.mxu0
  %v1475 = vpop.f32.mrf.mxu0
  %v1476 = vadd.f32 %v1355, %v1475
  %v1477 = vpop.f32.mrf.mxu0
  %1478 = vmatprep.mubr.bf16.mxu0 0
  %1479 = vmatmul.mubr.bf16.gmra.mxu0 %v909
  %v1480 = vpop.f32.mrf.mxu0
  %v1481 = vadd.f32 %v1360, %v1480
  %v1482 = vpop.f32.mrf.mxu0
  %v1483 = vpop.f32.mrf.mxu0
  %v1484 = vadd.f32 %v1363, %v1483
  %v1485 = vpop.f32.mrf.mxu0
  %1486 = vdwg.mxu0
  %v1487 = vlaneseq
  %v1488 = vshrl.u32 %v1487, 7
  %v1489 = vsub.s32 0, %v1488
  %v1490 = vrot.slane %v393, %v1489
  %v1491 = vadd.f32 %v1425, %v1490
  %v1492 = vadd.f32 %v1428, %v1490
  %v1493 = vadd.f32 %v1433, %v1490
  %v1494 = vadd.f32 %v1436, %v1490
  %v1495 = vadd.f32 %v1441, %v1490
  %v1496 = vadd.f32 %v1444, %v1490
  %v1497 = vadd.f32 %v1449, %v1490
  %v1498 = vadd.f32 %v1452, %v1490
  %v1499 = vadd.f32 %v1457, %v1490
  %v1500 = vadd.f32 %v1460, %v1490
  %v1501 = vadd.f32 %v1465, %v1490
  %v1502 = vadd.f32 %v1468, %v1490
  %v1503 = vadd.f32 %v1473, %v1490
  %v1504 = vadd.f32 %v1476, %v1490
  %v1505 = vadd.f32 %v1481, %v1490
  %v1506 = vadd.f32 %v1484, %v1490
  %v1507 = vmax.f32 %v1491, 0.0
  %v1508 = vmax.f32 %v1492, 0.0
  %v1509 = vmax.f32 %v1493, 0.0
  %v1510 = vmax.f32 %v1494, 0.0
  %v1511 = vmax.f32 %v1495, 0.0
  %v1512 = vmax.f32 %v1496, 0.0
  %v1513 = vmax.f32 %v1497, 0.0
  %v1514 = vmax.f32 %v1498, 0.0
  %v1515 = vmax.f32 %v1499, 0.0
  %v1516 = vmax.f32 %v1500, 0.0
  %v1517 = vmax.f32 %v1501, 0.0
  %v1518 = vmax.f32 %v1502, 0.0
  %v1519 = vmax.f32 %v1503, 0.0
  %v1520 = vmax.f32 %v1504, 0.0
  %v1521 = vmax.f32 %v1505, 0.0
  %v1522 = vmax.f32 %v1506, 0.0
  %v1523 = vmul.f32 %v1507, %v737
  %v1524 = vmul.f32 %v1508, %v742
  %v1525 = vmul.f32 %v1509, %v747
  %v1526 = vmul.f32 %v1510, %v752
  %v1527 = vmul.f32 %v1511, %v757
  %v1528 = vmul.f32 %v1512, %v762
  %v1529 = vmul.f32 %v1513, %v767
  %v1530 = vmul.f32 %v1514, %v772
  %v1531 = vmul.f32 %v1515, %v777
  %v1532 = vmul.f32 %v1516, %v782
  %v1533 = vmul.f32 %v1517, %v787
  %v1534 = vmul.f32 %v1518, %v792
  %v1535 = vmul.f32 %v1519, %v797
  %v1536 = vmul.f32 %v1520, %v802
  %v1537 = vmul.f32 %v1521, %v807
  %v1538 = vmul.f32 %v1522, %v812
  %v1539 = vpack.c.bf16 %v1524, %v1523
  %v1540 = vpack.c.bf16 %v1526, %v1525
  %v1541 = vpack.c.bf16 %v1528, %v1527
  %v1542 = vpack.c.bf16 %v1530, %v1529
  %v1543 = vpack.c.bf16 %v1532, %v1531
  %v1544 = vpack.c.bf16 %v1534, %v1533
  %v1545 = vpack.c.bf16 %v1536, %v1535
  %v1546 = vpack.c.bf16 %v1538, %v1537
  %1547 = vmatprep.subr.bf16.mxu0 0
  %1548 = vmatpush1.bf16.msra.mxu0 %v1546
  %1549 = vmatprep.subr.bf16.mxu0 0
  %1550 = vmatpush1.bf16.msra.mxu0 %v1545
  %1551 = vmatprep.subr.bf16.mxu0 0
  %1552 = vmatpush1.bf16.msra.mxu0 %v1544
  %1553 = vmatprep.subr.bf16.mxu0 0
  %1554 = vmatpush1.bf16.msra.mxu0 %v1543
  %1555 = vmatprep.subr.bf16.mxu0 0
  %1556 = vmatpush1.bf16.msra.mxu0 %v1542
  %1557 = vmatprep.subr.bf16.mxu0 0
  %1558 = vmatpush1.bf16.msra.mxu0 %v1541
  %1559 = vmatprep.subr.bf16.mxu0 0
  %1560 = vmatpush1.bf16.msra.mxu0 %v1540
  %1561 = vmatprep.subr.bf16.mxu0 0
  %1562 = vmatpush1.bf16.msra.mxu0 %v1539
  %1563 = vmatprep.subr.bf16.mxu0 0
  %1564 = vmatpush2.bf16.msra.mxu0 0
  %1565 = vmatprep.subr.bf16.mxu0 0
  %1566 = vmatpush2.bf16.msra.mxu0 0
  %1567 = vmatprep.subr.bf16.mxu0 0
  %1568 = vmatpush2.bf16.msra.mxu0 0
  %1569 = vmatprep.subr.bf16.mxu0 0
  %1570 = vmatpush2.bf16.msra.mxu0 0
  %1571 = vmatprep.subr.bf16.mxu0 0
  %1572 = vmatpush2.bf16.msra.mxu0 0
  %1573 = vmatprep.subr.bf16.mxu0 0
  %1574 = vmatpush2.bf16.msra.mxu0 0
  %1575 = vmatprep.subr.bf16.mxu0 0
  %1576 = vmatpush2.bf16.msra.mxu0 0
  %1577 = vmatprep.subr.bf16.mxu0 0
  %1578 = vmatpush2.bf16.msra.mxu0 0
  %1579 = vmatprep.mubr.bf16.mxu0 0
  %1580 = vmatmul.mubr.bf16.gmra.mxu0 %v133
  %v1581 = vpop.f32.mrf.mxu0
  %v1582 = vadd.f32 0.0, %v1581
  %v1583 = vpop.f32.mrf.mxu0
  %v1584 = vpop.f32.mrf.mxu0
  %v1585 = vpop.f32.mrf.mxu0
  %1586 = vdwg.mxu0
  %vm1587 = vcmask 294144
  %v1588 = vsel %vm1587, %v1523, -inf
  %1589 = vmax.xlane.f32.xlu0 %v1588
  %v1590 = vpop.xlane.xlu0 %1589
  %v1591 = vsel %vm1587, %v1524, -inf
  %1592 = vmax.xlane.f32.xlu0 %v1591
  %v1593 = vpop.xlane.xlu0 %1592
  %v1594 = vsel %vm1587, %v1525, -inf
  %1595 = vmax.xlane.f32.xlu0 %v1594
  %v1596 = vpop.xlane.xlu0 %1595
  %v1597 = vsel %vm1587, %v1526, -inf
  %1598 = vmax.xlane.f32.xlu0 %v1597
  %v1599 = vpop.xlane.xlu0 %1598
  %v1600 = vsel %vm1587, %v1527, -inf
  %1601 = vmax.xlane.f32.xlu0 %v1600
  %v1602 = vpop.xlane.xlu0 %1601
  %v1603 = vsel %vm1587, %v1528, -inf
  %1604 = vmax.xlane.f32.xlu0 %v1603
  %v1605 = vpop.xlane.xlu0 %1604
  %v1606 = vsel %vm1587, %v1529, -inf
  %1607 = vmax.xlane.f32.xlu0 %v1606
  %v1608 = vpop.xlane.xlu0 %1607
  %v1609 = vsel %vm1587, %v1530, -inf
  %1610 = vmax.xlane.f32.xlu0 %v1609
  %v1611 = vpop.xlane.xlu0 %1610
  %v1612 = vsel %vm1587, %v1531, -inf
  %1613 = vmax.xlane.f32.xlu0 %v1612
  %v1614 = vpop.xlane.xlu0 %1613
  %v1615 = vsel %vm1587, %v1532, -inf
  %1616 = vmax.xlane.f32.xlu0 %v1615
  %v1617 = vpop.xlane.xlu0 %1616
  %v1618 = vsel %vm1587, %v1533, -inf
  %1619 = vmax.xlane.f32.xlu0 %v1618
  %v1620 = vpop.xlane.xlu0 %1619
  %v1621 = vsel %vm1587, %v1534, -inf
  %1622 = vmax.xlane.f32.xlu0 %v1621
  %v1623 = vpop.xlane.xlu0 %1622
  %v1624 = vsel %vm1587, %v1535, -inf
  %1625 = vmax.xlane.f32.xlu0 %v1624
  %v1626 = vpop.xlane.xlu0 %1625
  %v1627 = vsel %vm1587, %v1536, -inf
  %1628 = vmax.xlane.f32.xlu0 %v1627
  %v1629 = vpop.xlane.xlu0 %1628
  %v1630 = vsel %vm1587, %v1537, -inf
  %1631 = vmax.xlane.f32.xlu0 %v1630
  %v1632 = vpop.xlane.xlu0 %1631
  %v1633 = vsel %vm1587, %v1538, -inf
  %1634 = vmax.xlane.f32.xlu0 %v1633
  %v1635 = vpop.xlane.xlu0 %1634
  %v1636 = vsub.f32 %v1523, %v1590
  %v1637 = vsub.f32 %v1524, %v1593
  %v1638 = vsub.f32 %v1525, %v1596
  %v1639 = vsub.f32 %v1526, %v1599
  %v1640 = vsub.f32 %v1527, %v1602
  %v1641 = vsub.f32 %v1528, %v1605
  %v1642 = vsub.f32 %v1529, %v1608
  %v1643 = vsub.f32 %v1530, %v1611
  %v1644 = vsub.f32 %v1531, %v1614
  %v1645 = vsub.f32 %v1532, %v1617
  %v1646 = vsub.f32 %v1533, %v1620
  %v1647 = vsub.f32 %v1534, %v1623
  %v1648 = vsub.f32 %v1535, %v1626
  %v1649 = vsub.f32 %v1536, %v1629
  %v1650 = vsub.f32 %v1537, %v1632
  %v1651 = vsub.f32 %v1538, %v1635
  %v1652 = vmul.f32 %v1636, 1.442695
  %v1653 = vpow.pop %v1652
  %v1654 = vmul.f32 %v1637, 1.442695
  %v1655 = vpow.pop %v1654
  %v1656 = vmul.f32 %v1638, 1.442695
  %v1657 = vpow.pop %v1656
  %v1658 = vmul.f32 %v1639, 1.442695
  %v1659 = vpow.pop %v1658
  %v1660 = vmul.f32 %v1640, 1.442695
  %v1661 = vpow.pop %v1660
  %v1662 = vmul.f32 %v1641, 1.442695
  %v1663 = vpow.pop %v1662
  %v1664 = vmul.f32 %v1642, 1.442695
  %v1665 = vpow.pop %v1664
  %v1666 = vmul.f32 %v1643, 1.442695
  %v1667 = vpow.pop %v1666
  %v1668 = vmul.f32 %v1644, 1.442695
  %v1669 = vpow.pop %v1668
  %v1670 = vmul.f32 %v1645, 1.442695
  %v1671 = vpow.pop %v1670
  %v1672 = vmul.f32 %v1646, 1.442695
  %v1673 = vpow.pop %v1672
  %v1674 = vmul.f32 %v1647, 1.442695
  %v1675 = vpow.pop %v1674
  %v1676 = vmul.f32 %v1648, 1.442695
  %v1677 = vpow.pop %v1676
  %v1678 = vmul.f32 %v1649, 1.442695
  %v1679 = vpow.pop %v1678
  %v1680 = vmul.f32 %v1650, 1.442695
  %v1681 = vpow.pop %v1680
  %v1682 = vmul.f32 %v1651, 1.442695
  %v1683 = vpow.pop %v1682
  %1700 = vrot.lane.b32.xlu0 %v1653, 96
  %v1701 = vpop.permute.xlu0 %1700
  %1702 = vrot.lane.b32.xlu0 %v1655, 96
  %v1703 = vpop.permute.xlu0 %1702
  %1704 = vrot.lane.b32.xlu0 %v1657, 96
  %v1705 = vpop.permute.xlu0 %1704
  %1706 = vrot.lane.b32.xlu0 %v1659, 96
  %v1707 = vpop.permute.xlu0 %1706
  %1708 = vrot.lane.b32.xlu0 %v1661, 96
  %v1709 = vpop.permute.xlu0 %1708
  %1710 = vrot.lane.b32.xlu0 %v1663, 96
  %v1711 = vpop.permute.xlu0 %1710
  %1712 = vrot.lane.b32.xlu0 %v1665, 96
  %v1713 = vpop.permute.xlu0 %1712
  %1714 = vrot.lane.b32.xlu0 %v1667, 96
  %v1715 = vpop.permute.xlu0 %1714
  %1716 = vrot.lane.b32.xlu0 %v1669, 96
  %v1717 = vpop.permute.xlu0 %1716
  %1718 = vrot.lane.b32.xlu0 %v1671, 96
  %v1719 = vpop.permute.xlu0 %1718
  %1720 = vrot.lane.b32.xlu0 %v1673, 96
  %v1721 = vpop.permute.xlu0 %1720
  %1722 = vrot.lane.b32.xlu0 %v1675, 96
  %v1723 = vpop.permute.xlu0 %1722
  %1724 = vrot.lane.b32.xlu0 %v1677, 96
  %v1725 = vpop.permute.xlu0 %1724
  %1726 = vrot.lane.b32.xlu0 %v1679, 96
  %v1727 = vpop.permute.xlu0 %1726
  %1728 = vrot.lane.b32.xlu0 %v1681, 96
  %v1729 = vpop.permute.xlu0 %1728
  %1730 = vrot.lane.b32.xlu0 %v1683, 96
  %v1731 = vpop.permute.xlu0 %1730
  %v1748 = vsel %vm403, %v1701, 0.0
  %1749 = vadd.xlane.f32.xlu0 %v1748
  %v1750 = vpop.xlane.xlu0 %1749
  %v1751 = vsel %vm403, %v1703, 0.0
  %1752 = vadd.xlane.f32.xlu0 %v1751
  %v1753 = vpop.xlane.xlu0 %1752
  %v1754 = vsel %vm403, %v1705, 0.0
  %1755 = vadd.xlane.f32.xlu0 %v1754
  %v1756 = vpop.xlane.xlu0 %1755
  %v1757 = vsel %vm403, %v1707, 0.0
  %1758 = vadd.xlane.f32.xlu0 %v1757
  %v1759 = vpop.xlane.xlu0 %1758
  %v1760 = vsel %vm403, %v1709, 0.0
  %1761 = vadd.xlane.f32.xlu0 %v1760
  %v1762 = vpop.xlane.xlu0 %1761
  %v1763 = vsel %vm403, %v1711, 0.0
  %1764 = vadd.xlane.f32.xlu0 %v1763
  %v1765 = vpop.xlane.xlu0 %1764
  %v1766 = vsel %vm403, %v1713, 0.0
  %1767 = vadd.xlane.f32.xlu0 %v1766
  %v1768 = vpop.xlane.xlu0 %1767
  %v1769 = vsel %vm403, %v1715, 0.0
  %1770 = vadd.xlane.f32.xlu0 %v1769
  %v1771 = vpop.xlane.xlu0 %1770
  %v1772 = vsel %vm403, %v1717, 0.0
  %1773 = vadd.xlane.f32.xlu0 %v1772
  %v1774 = vpop.xlane.xlu0 %1773
  %v1775 = vsel %vm403, %v1719, 0.0
  %1776 = vadd.xlane.f32.xlu0 %v1775
  %v1777 = vpop.xlane.xlu0 %1776
  %v1778 = vsel %vm403, %v1721, 0.0
  %1779 = vadd.xlane.f32.xlu0 %v1778
  %v1780 = vpop.xlane.xlu0 %1779
  %v1781 = vsel %vm403, %v1723, 0.0
  %1782 = vadd.xlane.f32.xlu0 %v1781
  %v1783 = vpop.xlane.xlu0 %1782
  %v1784 = vsel %vm403, %v1725, 0.0
  %1785 = vadd.xlane.f32.xlu0 %v1784
  %v1786 = vpop.xlane.xlu0 %1785
  %v1787 = vsel %vm403, %v1727, 0.0
  %1788 = vadd.xlane.f32.xlu0 %v1787
  %v1789 = vpop.xlane.xlu0 %1788
  %v1790 = vsel %vm403, %v1729, 0.0
  %1791 = vadd.xlane.f32.xlu0 %v1790
  %v1792 = vpop.xlane.xlu0 %1791
  %v1793 = vsel %vm403, %v1731, 0.0
  %1794 = vadd.xlane.f32.xlu0 %v1793
  %v1795 = vpop.xlane.xlu0 %1794
  %v1796 = vrcp.pop %v1750
  %v1797 = vmul.f32 %v1653, %v1796
  %v1798 = vrcp.pop %v1753
  %v1799 = vmul.f32 %v1655, %v1798
  %v1800 = vrcp.pop %v1756
  %v1801 = vmul.f32 %v1657, %v1800
  %v1802 = vrcp.pop %v1759
  %v1803 = vmul.f32 %v1659, %v1802
  %v1804 = vrcp.pop %v1762
  %v1805 = vmul.f32 %v1661, %v1804
  %v1806 = vrcp.pop %v1765
  %v1807 = vmul.f32 %v1663, %v1806
  %v1808 = vrcp.pop %v1768
  %v1809 = vmul.f32 %v1665, %v1808
  %v1810 = vrcp.pop %v1771
  %v1811 = vmul.f32 %v1667, %v1810
  %v1812 = vrcp.pop %v1774
  %v1813 = vmul.f32 %v1669, %v1812
  %v1814 = vrcp.pop %v1777
  %v1815 = vmul.f32 %v1671, %v1814
  %v1816 = vrcp.pop %v1780
  %v1817 = vmul.f32 %v1673, %v1816
  %v1818 = vrcp.pop %v1783
  %v1819 = vmul.f32 %v1675, %v1818
  %v1820 = vrcp.pop %v1786
  %v1821 = vmul.f32 %v1677, %v1820
  %v1822 = vrcp.pop %v1789
  %v1823 = vmul.f32 %v1679, %v1822
  %v1824 = vrcp.pop %v1792
  %v1825 = vmul.f32 %v1681, %v1824
  %v1826 = vrcp.pop %v1795
  %v1827 = vmul.f32 %v1683, %v1826
  %v1828 = vmul.f32 %v1797, %v737
  %v1829 = vmul.f32 %v1799, %v742
  %v1830 = vmul.f32 %v1801, %v747
  %v1831 = vmul.f32 %v1803, %v752
  %v1832 = vmul.f32 %v1805, %v757
  %v1833 = vmul.f32 %v1807, %v762
  %v1834 = vmul.f32 %v1809, %v767
  %v1835 = vmul.f32 %v1811, %v772
  %v1836 = vmul.f32 %v1813, %v777
  %v1837 = vmul.f32 %v1815, %v782
  %v1838 = vmul.f32 %v1817, %v787
  %v1839 = vmul.f32 %v1819, %v792
  %v1840 = vmul.f32 %v1821, %v797
  %v1841 = vmul.f32 %v1823, %v802
  %v1842 = vmul.f32 %v1825, %v807
  %v1843 = vmul.f32 %v1827, %v812
  %v1844 = vld [vmem:[%s9] sm:$0x3]
  %v1845 = vpack.c.bf16 %v1829, %v1828
  %v1846 = vpack.c.bf16 %v1831, %v1830
  %v1847 = vpack.c.bf16 %v1833, %v1832
  %v1848 = vpack.c.bf16 %v1835, %v1834
  %v1849 = vpack.c.bf16 %v1837, %v1836
  %v1850 = vpack.c.bf16 %v1839, %v1838
  %v1851 = vpack.c.bf16 %v1841, %v1840
  %v1852 = vpack.c.bf16 %v1843, %v1842
  %1861 = vrot.lane.b32.xlu0 %v1845, 96
  %v1862 = vpop.permute.xlu0 %1861
  %1863 = vrot.lane.b32.xlu0 %v1846, 96
  %v1864 = vpop.permute.xlu0 %1863
  %1865 = vrot.lane.b32.xlu0 %v1847, 96
  %v1866 = vpop.permute.xlu0 %1865
  %1867 = vrot.lane.b32.xlu0 %v1848, 96
  %v1868 = vpop.permute.xlu0 %1867
  %1869 = vrot.lane.b32.xlu0 %v1849, 96
  %v1870 = vpop.permute.xlu0 %1869
  %1871 = vrot.lane.b32.xlu0 %v1850, 96
  %v1872 = vpop.permute.xlu0 %1871
  %1873 = vrot.lane.b32.xlu0 %v1851, 96
  %v1874 = vpop.permute.xlu0 %1873
  %1875 = vrot.lane.b32.xlu0 %v1852, 96
  %v1876 = vpop.permute.xlu0 %1875
  %v1878 = vsel %vm403, %v1862, 0
  %v1881 = vsel %vm403, %v1864, 0
  %v1884 = vsel %vm403, %v1866, 0
  %v1887 = vsel %vm403, %v1868, 0
  %v1890 = vsel %vm403, %v1870, 0
  %v1893 = vsel %vm403, %v1872, 0
  %v1896 = vsel %vm403, %v1874, 0
  %v1899 = vsel %vm403, %v1876, 0
  %v1902 = vsel %vm428, %v1844, 0
  %1904 = vmatprep.subr.bf16.mxu0 0
  %1905 = vmatpush1.bf16.msra.mxu0 0
  %1906 = vmatprep.subr.bf16.mxu0 0
  %1907 = vmatpush1.bf16.msra.mxu0 0
  %1908 = vmatprep.subr.bf16.mxu0 0
  %1909 = vmatpush1.bf16.msra.mxu0 0
  %1910 = vmatprep.subr.bf16.mxu0 0
  %1911 = vmatpush1.bf16.msra.mxu0 0
  %1912 = vmatprep.subr.bf16.mxu0 0
  %1913 = vmatpush1.bf16.msra.mxu0 0
  %1914 = vmatprep.subr.bf16.mxu0 0
  %1915 = vmatpush1.bf16.msra.mxu0 0
  %1916 = vmatprep.subr.bf16.mxu0 0
  %1917 = vmatpush1.bf16.msra.mxu0 0
  %1918 = vmatprep.subr.bf16.mxu0 0
  %1919 = vmatpush1.bf16.msra.mxu0 %v1902
  %1920 = vmatprep.subr.bf16.mxu0 0
  %1921 = vmatpush2.bf16.msra.mxu0 0
  %1922 = vmatprep.subr.bf16.mxu0 0
  %1923 = vmatpush2.bf16.msra.mxu0 0
  %1924 = vmatprep.subr.bf16.mxu0 0
  %1925 = vmatpush2.bf16.msra.mxu0 0
  %1926 = vmatprep.subr.bf16.mxu0 0
  %1927 = vmatpush2.bf16.msra.mxu0 0
  %1928 = vmatprep.subr.bf16.mxu0 0
  %1929 = vmatpush2.bf16.msra.mxu0 0
  %1930 = vmatprep.subr.bf16.mxu0 0
  %1931 = vmatpush2.bf16.msra.mxu0 0
  %1932 = vmatprep.subr.bf16.mxu0 0
  %1933 = vmatpush2.bf16.msra.mxu0 0
  %1934 = vmatprep.subr.bf16.mxu0 0
  %1935 = vmatpush2.bf16.msra.mxu0 0
  %1936 = vmatprep.mubr.bf16.mxu0 0
  %1937 = vmatmul.mubr.bf16.gmra.mxu0 %v1878
  %v1938 = vpop.f32.mrf.mxu0
  %v1939 = vadd.f32 0.0, %v1938
  %v1940 = vpop.f32.mrf.mxu0
  %v1941 = vpop.f32.mrf.mxu0
  %v1942 = vadd.f32 0.0, %v1941
  %v1943 = vpop.f32.mrf.mxu0
  %1944 = vmatprep.mubr.bf16.mxu0 0
  %1945 = vmatmul.mubr.bf16.gmra.mxu0 %v1881
  %v1946 = vpop.f32.mrf.mxu0
  %v1947 = vadd.f32 0.0, %v1946
  %v1948 = vpop.f32.mrf.mxu0
  %v1949 = vpop.f32.mrf.mxu0
  %v1950 = vadd.f32 0.0, %v1949
  %v1951 = vpop.f32.mrf.mxu0
  %1952 = vmatprep.mubr.bf16.mxu0 0
  %1953 = vmatmul.mubr.bf16.gmra.mxu0 %v1884
  %v1954 = vpop.f32.mrf.mxu0
  %v1955 = vadd.f32 0.0, %v1954
  %v1956 = vpop.f32.mrf.mxu0
  %v1957 = vpop.f32.mrf.mxu0
  %v1958 = vadd.f32 0.0, %v1957
  %v1959 = vpop.f32.mrf.mxu0
  %1960 = vmatprep.mubr.bf16.mxu0 0
  %1961 = vmatmul.mubr.bf16.gmra.mxu0 %v1887
  %v1962 = vpop.f32.mrf.mxu0
  %v1963 = vadd.f32 0.0, %v1962
  %v1964 = vpop.f32.mrf.mxu0
  %v1965 = vpop.f32.mrf.mxu0
  %v1966 = vadd.f32 0.0, %v1965
  %v1967 = vpop.f32.mrf.mxu0
  %1968 = vmatprep.mubr.bf16.mxu0 0
  %1969 = vmatmul.mubr.bf16.gmra.mxu0 %v1890
  %v1970 = vpop.f32.mrf.mxu0
  %v1971 = vadd.f32 0.0, %v1970
  %v1972 = vpop.f32.mrf.mxu0
  %v1973 = vpop.f32.mrf.mxu0
  %v1974 = vadd.f32 0.0, %v1973
  %v1975 = vpop.f32.mrf.mxu0
  %1976 = vmatprep.mubr.bf16.mxu0 0
  %1977 = vmatmul.mubr.bf16.gmra.mxu0 %v1893
  %v1978 = vpop.f32.mrf.mxu0
  %v1979 = vadd.f32 0.0, %v1978
  %v1980 = vpop.f32.mrf.mxu0
  %v1981 = vpop.f32.mrf.mxu0
  %v1982 = vadd.f32 0.0, %v1981
  %v1983 = vpop.f32.mrf.mxu0
  %1984 = vmatprep.mubr.bf16.mxu0 0
  %1985 = vmatmul.mubr.bf16.gmra.mxu0 %v1896
  %v1986 = vpop.f32.mrf.mxu0
  %v1987 = vadd.f32 0.0, %v1986
  %v1988 = vpop.f32.mrf.mxu0
  %v1989 = vpop.f32.mrf.mxu0
  %v1990 = vadd.f32 0.0, %v1989
  %v1991 = vpop.f32.mrf.mxu0
  %1992 = vmatprep.mubr.bf16.mxu0 0
  %1993 = vmatmul.mubr.bf16.gmra.mxu0 %v1899
  %v1994 = vpop.f32.mrf.mxu0
  %v1995 = vadd.f32 0.0, %v1994
  %v1996 = vpop.f32.mrf.mxu0
  %v1997 = vpop.f32.mrf.mxu0
  %v1998 = vadd.f32 0.0, %v1997
  %v1999 = vpop.f32.mrf.mxu0
  %2000 = vdwg.mxu0
  %v2001 = vmul.f32 %v1939, %v217
  %v2002 = vmul.f32 %v1942, %v220
  %v2003 = vmul.f32 %v1947, %v225
  %v2004 = vmul.f32 %v1950, %v228
  %v2005 = vmul.f32 %v1955, %v233
  %v2006 = vmul.f32 %v1958, %v236
  %v2007 = vmul.f32 %v1963, %v241
  %v2008 = vmul.f32 %v1966, %v244
  %v2009 = vmul.f32 %v1971, %v249
  %v2010 = vmul.f32 %v1974, %v252
  %v2011 = vmul.f32 %v1979, %v257
  %v2012 = vmul.f32 %v1982, %v260
  %v2013 = vmul.f32 %v1987, %v265
  %v2014 = vmul.f32 %v1990, %v268
  %v2015 = vmul.f32 %v1995, %v273
  %v2016 = vmul.f32 %v1998, %v276
  %v2017 = vpack.c.bf16 %v2002, %v2001
  %v2018 = vpack.c.bf16 %v2004, %v2003
  %v2019 = vpack.c.bf16 %v2006, %v2005
  %v2020 = vpack.c.bf16 %v2008, %v2007
  %v2021 = vpack.c.bf16 %v2010, %v2009
  %v2022 = vpack.c.bf16 %v2012, %v2011
  %v2023 = vpack.c.bf16 %v2014, %v2013
  %v2024 = vpack.c.bf16 %v2016, %v2015
  %2025 = vxpose.xlu0.c.b16.start [1/8] %v2017, 128
  %2026 = vxpose.xlu0.c.b16.cont [2/8] %v2018, 128
  %2027 = vxpose.xlu0.c.b16.cont [3/8] %v2019, 128
  %2028 = vxpose.xlu0.c.b16.cont [4/8] %v2020, 128
  %2029 = vxpose.xlu0.c.b16.cont [5/8] %v2021, 128
  %2030 = vxpose.xlu0.c.b16.cont [6/8] %v2022, 128
  %2031 = vxpose.xlu0.c.b16.cont [7/8] %v2023, 128
  %2032 = vxpose.xlu0.c.b16.end [8/8] %v2024, 128
  %v2033 = vpop.trf.xlu0
  %v2034 = vpop.trf.xlu0
  %v2035 = vpop.trf.xlu0
  %v2036 = vpop.trf.xlu0
  %v2037 = vpop.trf.xlu0
  %v2038 = vpop.trf.xlu0
  %v2039 = vpop.trf.xlu0
  %v2040 = vpop.trf.xlu0
  %2041 = vmatprep.subr.bf16.mxu0 0
  %2042 = vmatpush1.bf16.msra.mxu0 %v1546
  %2043 = vmatprep.subr.bf16.mxu0 0
  %2044 = vmatpush1.bf16.msra.mxu0 %v1545
  %2045 = vmatprep.subr.bf16.mxu0 0
  %2046 = vmatpush1.bf16.msra.mxu0 %v1544
  %2047 = vmatprep.subr.bf16.mxu0 0
  %2048 = vmatpush1.bf16.msra.mxu0 %v1543
  %2049 = vmatprep.subr.bf16.mxu0 0
  %2050 = vmatpush1.bf16.msra.mxu0 %v1542
  %2051 = vmatprep.subr.bf16.mxu0 0
  %2052 = vmatpush1.bf16.msra.mxu0 %v1541
  %2053 = vmatprep.subr.bf16.mxu0 0
  %2054 = vmatpush1.bf16.msra.mxu0 %v1540
  %2055 = vmatprep.subr.bf16.mxu0 0
  %2056 = vmatpush1.bf16.msra.mxu0 %v1539
  %2057 = vmatprep.subr.bf16.mxu0 0
  %2058 = vmatpush2.bf16.msra.mxu0 0
  %2059 = vmatprep.subr.bf16.mxu0 0
  %2060 = vmatpush2.bf16.msra.mxu0 0
  %2061 = vmatprep.subr.bf16.mxu0 0
  %2062 = vmatpush2.bf16.msra.mxu0 0
  %2063 = vmatprep.subr.bf16.mxu0 0
  %2064 = vmatpush2.bf16.msra.mxu0 0
  %2065 = vmatprep.subr.bf16.mxu0 0
  %2066 = vmatpush2.bf16.msra.mxu0 0
  %2067 = vmatprep.subr.bf16.mxu0 0
  %2068 = vmatpush2.bf16.msra.mxu0 0
  %2069 = vmatprep.subr.bf16.mxu0 0
  %2070 = vmatpush2.bf16.msra.mxu0 0
  %2071 = vmatprep.subr.bf16.mxu0 0
  %2072 = vmatpush2.bf16.msra.mxu0 0
  %2073 = vmatprep.mubr.bf16.mxu0 0
  %2074 = vmatmul.mubr.bf16.gmra.mxu0 %v2033
  %v2075 = vpop.f32.mrf.mxu0
  %v2076 = vadd.f32 0.0, %v2075
  %v2077 = vpop.f32.mrf.mxu0
  %v2078 = vpop.f32.mrf.mxu0
  %v2079 = vadd.f32 0.0, %v2078
  %v2080 = vpop.f32.mrf.mxu0
  %2081 = vmatprep.mubr.bf16.mxu0 0
  %2082 = vmatmul.mubr.bf16.gmra.mxu0 %v2034
  %v2083 = vpop.f32.mrf.mxu0
  %v2084 = vadd.f32 0.0, %v2083
  %v2085 = vpop.f32.mrf.mxu0
  %v2086 = vpop.f32.mrf.mxu0
  %v2087 = vadd.f32 0.0, %v2086
  %v2088 = vpop.f32.mrf.mxu0
  %2089 = vdwg.mxu0
  %v2106 = vunpack.c.l.b16 %v53
  %v2107 = vunpack.c.l.b16 %v54
  %v2108 = vunpack.c.l.b16 %v55
  %v2109 = vunpack.c.l.b16 %v56
  %v2110 = vunpack.c.l.b16 %v57
  %v2111 = vunpack.c.l.b16 %v58
  %v2112 = vunpack.c.l.b16 %v59
  %v2113 = vunpack.c.l.b16 %v60
  %v2114 = vunpack.c.l.b16 %v61
  %v2115 = vunpack.c.l.b16 %v62
  %v2116 = vunpack.c.l.b16 %v63
  %v2117 = vunpack.c.l.b16 %v64
  %v2118 = vunpack.c.l.b16 %v65
  %v2119 = vunpack.c.l.b16 %v66
  %v2120 = vunpack.c.l.b16 %v67
  %v2121 = vunpack.c.l.b16 %v68
  %v2122 = vpack.c.b16 %v2107, %v2106
  %v2123 = vpack.c.b16 %v2109, %v2108
  %v2124 = vpack.c.b16 %v2111, %v2110
  %v2125 = vpack.c.b16 %v2113, %v2112
  %v2126 = vpack.c.b16 %v2115, %v2114
  %v2127 = vpack.c.b16 %v2117, %v2116
  %v2128 = vpack.c.b16 %v2119, %v2118
  %v2129 = vpack.c.b16 %v2121, %v2120
  %2138 = vmatprep.subr.bf16.mxu0 0
  %2139 = vmatpush1.bf16.msra.mxu0 %v2129
  %2140 = vmatprep.subr.bf16.mxu0 0
  %2141 = vmatpush1.bf16.msra.mxu0 %v2128
  %2142 = vmatprep.subr.bf16.mxu0 0
  %2143 = vmatpush1.bf16.msra.mxu0 %v2127
  %2144 = vmatprep.subr.bf16.mxu0 0
  %2145 = vmatpush1.bf16.msra.mxu0 %v2126
  %2146 = vmatprep.subr.bf16.mxu0 0
  %2147 = vmatpush1.bf16.msra.mxu0 %v2125
  %2148 = vmatprep.subr.bf16.mxu0 0
  %2149 = vmatpush1.bf16.msra.mxu0 %v2124
  %2150 = vmatprep.subr.bf16.mxu0 0
  %2151 = vmatpush1.bf16.msra.mxu0 %v2123
  %2152 = vmatprep.subr.bf16.mxu0 0
  %2153 = vmatpush1.bf16.msra.mxu0 %v2122
  %2154 = vmatprep.subr.bf16.mxu0 0
  %2155 = vmatpush2.bf16.msra.mxu0 0
  %2156 = vmatprep.subr.bf16.mxu0 0
  %2157 = vmatpush2.bf16.msra.mxu0 0
  %2158 = vmatprep.subr.bf16.mxu0 0
  %2159 = vmatpush2.bf16.msra.mxu0 0
  %2160 = vmatprep.subr.bf16.mxu0 0
  %2161 = vmatpush2.bf16.msra.mxu0 0
  %2162 = vmatprep.subr.bf16.mxu0 0
  %2163 = vmatpush2.bf16.msra.mxu0 0
  %2164 = vmatprep.subr.bf16.mxu0 0
  %2165 = vmatpush2.bf16.msra.mxu0 0
  %2166 = vmatprep.subr.bf16.mxu0 0
  %2167 = vmatpush2.bf16.msra.mxu0 0
  %2168 = vmatprep.subr.bf16.mxu0 0
  %2169 = vmatpush2.bf16.msra.mxu0 0
  %2170 = vmatprep.mubr.bf16.mxu0 0
  %2171 = vmatmul.mubr.bf16.gmra.mxu0 %v2033
  %v2172 = vpop.f32.mrf.mxu0
  %v2173 = vadd.f32 0.0, %v2172
  %v2174 = vpop.f32.mrf.mxu0
  %v2175 = vpop.f32.mrf.mxu0
  %v2176 = vadd.f32 0.0, %v2175
  %v2177 = vpop.f32.mrf.mxu0
  %2178 = vmatprep.mubr.bf16.mxu0 0
  %2179 = vmatmul.mubr.bf16.gmra.mxu0 %v2034
  %v2180 = vpop.f32.mrf.mxu0
  %v2181 = vadd.f32 0.0, %v2180
  %v2182 = vpop.f32.mrf.mxu0
  %v2183 = vpop.f32.mrf.mxu0
  %v2184 = vadd.f32 0.0, %v2183
  %v2185 = vpop.f32.mrf.mxu0
  %2186 = vdwg.mxu0
  %v2187 = vpack.c.bf16 %v2176, %v2173
  %v2188 = vpack.c.bf16 %v2184, %v2181
  %2189 = vmatprep.subr.bf16.mxu0 0
  %2190 = vmatpush1.bf16.msra.mxu0 %v2024
  %2191 = vmatprep.subr.bf16.mxu0 0
  %2192 = vmatpush1.bf16.msra.mxu0 %v2023
  %2193 = vmatprep.subr.bf16.mxu0 0
  %2194 = vmatpush1.bf16.msra.mxu0 %v2022
  %2195 = vmatprep.subr.bf16.mxu0 0
  %2196 = vmatpush1.bf16.msra.mxu0 %v2021
  %2197 = vmatprep.subr.bf16.mxu0 0
  %2198 = vmatpush1.bf16.msra.mxu0 %v2020
  %2199 = vmatprep.subr.bf16.mxu0 0
  %2200 = vmatpush1.bf16.msra.mxu0 %v2019
  %2201 = vmatprep.subr.bf16.mxu0 0
  %2202 = vmatpush1.bf16.msra.mxu0 %v2018
  %2203 = vmatprep.subr.bf16.mxu0 0
  %2204 = vmatpush1.bf16.msra.mxu0 %v2017
  %2205 = vmatprep.subr.bf16.mxu0 0
  %2206 = vmatpush2.bf16.msra.mxu0 0
  %2207 = vmatprep.subr.bf16.mxu0 0
  %2208 = vmatpush2.bf16.msra.mxu0 0
  %2209 = vmatprep.subr.bf16.mxu0 0
  %2210 = vmatpush2.bf16.msra.mxu0 0
  %2211 = vmatprep.subr.bf16.mxu0 0
  %2212 = vmatpush2.bf16.msra.mxu0 0
  %2213 = vmatprep.subr.bf16.mxu0 0
  %2214 = vmatpush2.bf16.msra.mxu0 0
  %2215 = vmatprep.subr.bf16.mxu0 0
  %2216 = vmatpush2.bf16.msra.mxu0 0
  %2217 = vmatprep.subr.bf16.mxu0 0
  %2218 = vmatpush2.bf16.msra.mxu0 0
  %2219 = vmatprep.subr.bf16.mxu0 0
  %2220 = vmatpush2.bf16.msra.mxu0 0
  %2221 = vmatprep.mubr.bf16.mxu0 0
  %2222 = vmatmul.mubr.bf16.gmra.mxu0 %v2187
  %v2223 = vpop.f32.mrf.mxu0
  %v2224 = vadd.f32 0.0, %v2223
  %v2225 = vpop.f32.mrf.mxu0
  %v2226 = vpop.f32.mrf.mxu0
  %v2227 = vadd.f32 0.0, %v2226
  %v2228 = vpop.f32.mrf.mxu0
  %2229 = vmatprep.mubr.bf16.mxu0 0
  %2230 = vmatmul.mubr.bf16.gmra.mxu0 %v2188
  %v2231 = vpop.f32.mrf.mxu0
  %v2232 = vadd.f32 0.0, %v2231
  %v2233 = vpop.f32.mrf.mxu0
  %v2234 = vpop.f32.mrf.mxu0
  %v2235 = vadd.f32 0.0, %v2234
  %v2236 = vpop.f32.mrf.mxu0
  %2237 = vdwg.mxu0
  %2238 = vmatprep.subr.bf16.mxu0 0
  %2239 = vmatpush1.bf16.msra.mxu0 %v2024
  %2240 = vmatprep.subr.bf16.mxu0 0
  %2241 = vmatpush1.bf16.msra.mxu0 %v2023
  %2242 = vmatprep.subr.bf16.mxu0 0
  %2243 = vmatpush1.bf16.msra.mxu0 %v2022
  %2244 = vmatprep.subr.bf16.mxu0 0
  %2245 = vmatpush1.bf16.msra.mxu0 %v2021
  %2246 = vmatprep.subr.bf16.mxu0 0
  %2247 = vmatpush1.bf16.msra.mxu0 %v2020
  %2248 = vmatprep.subr.bf16.mxu0 0
  %2249 = vmatpush1.bf16.msra.mxu0 %v2019
  %2250 = vmatprep.subr.bf16.mxu0 0
  %2251 = vmatpush1.bf16.msra.mxu0 %v2018
  %2252 = vmatprep.subr.bf16.mxu0 0
  %2253 = vmatpush1.bf16.msra.mxu0 %v2017
  %2254 = vmatprep.subr.bf16.mxu0 0
  %2255 = vmatpush2.bf16.msra.mxu0 0
  %2256 = vmatprep.subr.bf16.mxu0 0
  %2257 = vmatpush2.bf16.msra.mxu0 0
  %2258 = vmatprep.subr.bf16.mxu0 0
  %2259 = vmatpush2.bf16.msra.mxu0 0
  %2260 = vmatprep.subr.bf16.mxu0 0
  %2261 = vmatpush2.bf16.msra.mxu0 0
  %2262 = vmatprep.subr.bf16.mxu0 0
  %2263 = vmatpush2.bf16.msra.mxu0 0
  %2264 = vmatprep.subr.bf16.mxu0 0
  %2265 = vmatpush2.bf16.msra.mxu0 0
  %2266 = vmatprep.subr.bf16.mxu0 0
  %2267 = vmatpush2.bf16.msra.mxu0 0
  %2268 = vmatprep.subr.bf16.mxu0 0
  %2269 = vmatpush2.bf16.msra.mxu0 0
  %2270 = vmatprep.mubr.bf16.mxu0 0
  %2271 = vmatmul.mubr.bf16.gmra.mxu0 %v2033
  %v2272 = vpop.f32.mrf.mxu0
  %v2273 = vadd.f32 0.0, %v2272
  %v2274 = vpop.f32.mrf.mxu0
  %v2275 = vpop.f32.mrf.mxu0
  %v2276 = vadd.f32 0.0, %v2275
  %v2277 = vpop.f32.mrf.mxu0
  %2278 = vmatprep.mubr.bf16.mxu0 0
  %2279 = vmatmul.mubr.bf16.gmra.mxu0 %v2034
  %v2280 = vpop.f32.mrf.mxu0
  %v2281 = vadd.f32 0.0, %v2280
  %v2282 = vpop.f32.mrf.mxu0
  %v2283 = vpop.f32.mrf.mxu0
  %v2284 = vadd.f32 0.0, %v2283
  %v2285 = vpop.f32.mrf.mxu0
  %2286 = vdwg.mxu0
  %v2287 = vunpack.c.l.bf16 %v53
  %v2288 = vunpack.c.l.bf16 %v54
  %v2289 = vunpack.c.l.bf16 %v55
  %v2290 = vunpack.c.l.bf16 %v56
  %v2291 = vunpack.c.l.bf16 %v57
  %v2292 = vunpack.c.l.bf16 %v58
  %v2293 = vunpack.c.l.bf16 %v59
  %v2294 = vunpack.c.l.bf16 %v60
  %v2295 = vunpack.c.l.bf16 %v61
  %v2296 = vunpack.c.l.bf16 %v62
  %v2297 = vunpack.c.l.bf16 %v63
  %v2298 = vunpack.c.l.bf16 %v64
  %v2299 = vunpack.c.l.bf16 %v65
  %v2300 = vunpack.c.l.bf16 %v66
  %v2301 = vunpack.c.l.bf16 %v67
  %v2302 = vunpack.c.l.bf16 %v68
  %v2303 = vadd.f32 %v2287, %v2288
  %v2304 = vadd.f32 %v2303, %v2289
  %v2305 = vadd.f32 %v2304, %v2290
  %v2306 = vadd.f32 %v2305, %v2291
  %v2307 = vadd.f32 %v2306, %v2292
  %v2308 = vadd.f32 %v2307, %v2293
  %v2309 = vadd.f32 %v2308, %v2294
  %v2310 = vadd.f32 %v2309, %v2295
  %v2311 = vadd.f32 %v2310, %v2296
  %v2312 = vadd.f32 %v2311, %v2297
  %v2313 = vadd.f32 %v2312, %v2298
  %v2314 = vadd.f32 %v2313, %v2299
  %v2315 = vadd.f32 %v2314, %v2300
  %v2316 = vadd.f32 %v2315, %v2301
  %v2317 = vadd.f32 %v2316, %v2302
  %2318 = vadd.xlane.f32.xlu0 %v2317
  %v2319 = vpop.xlane.xlu0 %2318
  %v2320 = vrot.slane %v2319, 4
  %v2321 = vadd.f32 %v2319, %v2320
  %v2322 = vrot.slane %v2321, 2
  %v2323 = vadd.f32 %v2321, %v2322
  %v2324 = vrot.slane %v2323, 1
  %v2325 = vadd.f32 %v2323, %v2324
  %s2326 = vtos %v2325
  %v2327 = vstv %s2326
  %v2328 = vsel %vm104, %v2224, 0.0
  %v2329 = vsel %vm105, %v2227, 0.0
  %v2330 = vsel %vm106, %v2232, 0.0
  %v2331 = vsel %vm107, %v2235, 0.0
  %vm2332 = vcmask 261120
  %v2333 = vsel %vm2332, %v2328, 0.0
  %v2334 = vsel %vm2332, %v2329, 0.0
  %v2335 = vadd.f32 %v2333, %v2334
  %v2336 = vsel %vm2332, %v2330, 0.0
  %v2337 = vadd.f32 %v2335, %v2336
  %v2338 = vsel %vm2332, %v2331, 0.0
  %v2339 = vadd.f32 %v2337, %v2338
  %2340 = vadd.xlane.f32.xlu0 %v2339
  %v2341 = vpop.xlane.xlu0 %2340
  %v2342 = vrot.slane %v2341, 4
  %v2343 = vadd.f32 %v2341, %v2342
  %v2344 = vrot.slane %v2343, 2
  %v2345 = vadd.f32 %v2343, %v2344
  %v2346 = vrot.slane %v2345, 1
  %v2347 = vadd.f32 %v2345, %v2346
  %s2348 = vtos %v2347
  %v2349 = vstv %s2348
  %v2350 = vmul.f32 %v2349, 2.0
  %v2351 = vsub.f32 %v2327, %v2350
  %v2352 = vmul.f32 %v2273, %v2273
  %v2353 = vmul.f32 %v2276, %v2276
  %v2354 = vmul.f32 %v2281, %v2281
  %v2355 = vmul.f32 %v2284, %v2284
  %v2356 = vsel %vm2332, %v2352, 0.0
  %v2357 = vsel %vm2332, %v2353, 0.0
  %v2358 = vadd.f32 %v2356, %v2357
  %v2359 = vsel %vm2332, %v2354, 0.0
  %v2360 = vadd.f32 %v2358, %v2359
  %v2361 = vsel %vm2332, %v2355, 0.0
  %v2362 = vadd.f32 %v2360, %v2361
  %2363 = vadd.xlane.f32.xlu0 %v2362
  %v2364 = vpop.xlane.xlu0 %2363
  %v2365 = vrot.slane %v2364, 4
  %v2366 = vadd.f32 %v2364, %v2365
  %v2367 = vrot.slane %v2366, 2
  %v2368 = vadd.f32 %v2366, %v2367
  %v2369 = vrot.slane %v2368, 1
  %v2370 = vadd.f32 %v2368, %v2369
  %s2371 = vtos %v2370
  %v2372 = vstv %s2371
  %v2373 = vadd.f32 %v2351, %v2372
  %v2374 = vsub.f32 0.0, %v1828
  %v2375 = vsub.f32 0.0, %v1829
  %v2376 = vsub.f32 0.0, %v1830
  %v2377 = vsub.f32 0.0, %v1831
  %v2378 = vsub.f32 0.0, %v1832
  %v2379 = vsub.f32 0.0, %v1833
  %v2380 = vsub.f32 0.0, %v1834
  %v2381 = vsub.f32 0.0, %v1835
  %v2382 = vsub.f32 0.0, %v1836
  %v2383 = vsub.f32 0.0, %v1837
  %v2384 = vsub.f32 0.0, %v1838
  %v2385 = vsub.f32 0.0, %v1839
  %v2386 = vsub.f32 0.0, %v1840
  %v2387 = vsub.f32 0.0, %v1841
  %v2388 = vsub.f32 0.0, %v1842
  %v2389 = vsub.f32 0.0, %v1843
  %v2390 = vadd.f32 %v1828, 1e-15
  %v2391 = vadd.f32 %v1829, 1e-15
  %v2392 = vadd.f32 %v1830, 1e-15
  %v2393 = vadd.f32 %v1831, 1e-15
  %v2394 = vadd.f32 %v1832, 1e-15
  %v2395 = vadd.f32 %v1833, 1e-15
  %v2396 = vadd.f32 %v1834, 1e-15
  %v2397 = vadd.f32 %v1835, 1e-15
  %v2398 = vadd.f32 %v1836, 1e-15
  %v2399 = vadd.f32 %v1837, 1e-15
  %v2400 = vadd.f32 %v1838, 1e-15
  %v2401 = vadd.f32 %v1839, 1e-15
  %v2402 = vadd.f32 %v1840, 1e-15
  %v2403 = vadd.f32 %v1841, 1e-15
  %v2404 = vadd.f32 %v1842, 1e-15
  %v2405 = vadd.f32 %v1843, 1e-15
  %v2406 = vlog2.pop %v2390
  %v2407 = vmul.f32 %v2406, 0.6931472
  %v2408 = vlog2.pop %v2391
  %v2409 = vmul.f32 %v2408, 0.6931472
  %v2410 = vlog2.pop %v2392
  %v2411 = vmul.f32 %v2410, 0.6931472
  %v2412 = vlog2.pop %v2393
  %v2413 = vmul.f32 %v2412, 0.6931472
  %v2414 = vlog2.pop %v2394
  %v2415 = vmul.f32 %v2414, 0.6931472
  %v2416 = vlog2.pop %v2395
  %v2417 = vmul.f32 %v2416, 0.6931472
  %v2418 = vlog2.pop %v2396
  %v2419 = vmul.f32 %v2418, 0.6931472
  %v2420 = vlog2.pop %v2397
  %v2421 = vmul.f32 %v2420, 0.6931472
  %v2422 = vlog2.pop %v2398
  %v2423 = vmul.f32 %v2422, 0.6931472
  %v2424 = vlog2.pop %v2399
  %v2425 = vmul.f32 %v2424, 0.6931472
  %v2426 = vlog2.pop %v2400
  %v2427 = vmul.f32 %v2426, 0.6931472
  %v2428 = vlog2.pop %v2401
  %v2429 = vmul.f32 %v2428, 0.6931472
  %v2430 = vlog2.pop %v2402
  %v2431 = vmul.f32 %v2430, 0.6931472
  %v2432 = vlog2.pop %v2403
  %v2433 = vmul.f32 %v2432, 0.6931472
  %v2434 = vlog2.pop %v2404
  %v2435 = vmul.f32 %v2434, 0.6931472
  %v2436 = vlog2.pop %v2405
  %v2437 = vmul.f32 %v2436, 0.6931472
  %v2438 = vmul.f32 %v2374, %v2407
  %v2439 = vmul.f32 %v2375, %v2409
  %v2440 = vmul.f32 %v2376, %v2411
  %v2441 = vmul.f32 %v2377, %v2413
  %v2442 = vmul.f32 %v2378, %v2415
  %v2443 = vmul.f32 %v2379, %v2417
  %v2444 = vmul.f32 %v2380, %v2419
  %v2445 = vmul.f32 %v2381, %v2421
  %v2446 = vmul.f32 %v2382, %v2423
  %v2447 = vmul.f32 %v2383, %v2425
  %v2448 = vmul.f32 %v2384, %v2427
  %v2449 = vmul.f32 %v2385, %v2429
  %v2450 = vmul.f32 %v2386, %v2431
  %v2451 = vmul.f32 %v2387, %v2433
  %v2452 = vmul.f32 %v2388, %v2435
  %v2453 = vmul.f32 %v2389, %v2437
  %2470 = vrot.lane.b32.xlu0 %v2438, 96
  %v2471 = vpop.permute.xlu0 %2470
  %2472 = vrot.lane.b32.xlu0 %v2439, 96
  %v2473 = vpop.permute.xlu0 %2472
  %2474 = vrot.lane.b32.xlu0 %v2440, 96
  %v2475 = vpop.permute.xlu0 %2474
  %2476 = vrot.lane.b32.xlu0 %v2441, 96
  %v2477 = vpop.permute.xlu0 %2476
  %2478 = vrot.lane.b32.xlu0 %v2442, 96
  %v2479 = vpop.permute.xlu0 %2478
  %2480 = vrot.lane.b32.xlu0 %v2443, 96
  %v2481 = vpop.permute.xlu0 %2480
  %2482 = vrot.lane.b32.xlu0 %v2444, 96
  %v2483 = vpop.permute.xlu0 %2482
  %2484 = vrot.lane.b32.xlu0 %v2445, 96
  %v2485 = vpop.permute.xlu0 %2484
  %2486 = vrot.lane.b32.xlu0 %v2446, 96
  %v2487 = vpop.permute.xlu0 %2486
  %2488 = vrot.lane.b32.xlu0 %v2447, 96
  %v2489 = vpop.permute.xlu0 %2488
  %2490 = vrot.lane.b32.xlu0 %v2448, 96
  %v2491 = vpop.permute.xlu0 %2490
  %2492 = vrot.lane.b32.xlu0 %v2449, 96
  %v2493 = vpop.permute.xlu0 %2492
  %2494 = vrot.lane.b32.xlu0 %v2450, 96
  %v2495 = vpop.permute.xlu0 %2494
  %2496 = vrot.lane.b32.xlu0 %v2451, 96
  %v2497 = vpop.permute.xlu0 %2496
  %2498 = vrot.lane.b32.xlu0 %v2452, 96
  %v2499 = vpop.permute.xlu0 %2498
  %2500 = vrot.lane.b32.xlu0 %v2453, 96
  %v2501 = vpop.permute.xlu0 %2500
  %v2518 = vsel %vm403, %v2471, 0.0
  %v2519 = vsel %vm403, %v2473, 0.0
  %v2520 = vadd.f32 %v2518, %v2519
  %v2521 = vsel %vm403, %v2475, 0.0
  %v2522 = vadd.f32 %v2520, %v2521
  %v2523 = vsel %vm403, %v2477, 0.0
  %v2524 = vadd.f32 %v2522, %v2523
  %v2525 = vsel %vm403, %v2479, 0.0
  %v2526 = vadd.f32 %v2524, %v2525
  %v2527 = vsel %vm403, %v2481, 0.0
  %v2528 = vadd.f32 %v2526, %v2527
  %v2529 = vsel %vm403, %v2483, 0.0
  %v2530 = vadd.f32 %v2528, %v2529
  %v2531 = vsel %vm403, %v2485, 0.0
  %v2532 = vadd.f32 %v2530, %v2531
  %v2533 = vsel %vm403, %v2487, 0.0
  %v2534 = vadd.f32 %v2532, %v2533
  %v2535 = vsel %vm403, %v2489, 0.0
  %v2536 = vadd.f32 %v2534, %v2535
  %v2537 = vsel %vm403, %v2491, 0.0
  %v2538 = vadd.f32 %v2536, %v2537
  %v2539 = vsel %vm403, %v2493, 0.0
  %v2540 = vadd.f32 %v2538, %v2539
  %v2541 = vsel %vm403, %v2495, 0.0
  %v2542 = vadd.f32 %v2540, %v2541
  %v2543 = vsel %vm403, %v2497, 0.0
  %v2544 = vadd.f32 %v2542, %v2543
  %v2545 = vsel %vm403, %v2499, 0.0
  %v2546 = vadd.f32 %v2544, %v2545
  %v2547 = vsel %vm403, %v2501, 0.0
  %v2548 = vadd.f32 %v2546, %v2547
  %2549 = vadd.xlane.f32.xlu0 %v2548
  %v2550 = vpop.xlane.xlu0 %2549
  %v2551 = vrot.slane %v2550, 4
  %v2552 = vadd.f32 %v2550, %v2551
  %v2553 = vrot.slane %v2552, 2
  %v2554 = vadd.f32 %v2552, %v2553
  %v2555 = vrot.slane %v2554, 1
  %v2556 = vadd.f32 %v2554, %v2555
  %s2557 = vtos %v2556
  %v2558 = vsel %vm104, 1.0, %v2224
  %v2559 = vsel %vm105, 1.0, %v2227
  %v2560 = vsel %vm106, 1.0, %v2232
  %v2561 = vsel %vm107, 1.0, %v2235
  %v2562 = vsel %vm2332, %v2558, 0.0
  %2563 = vadd.xlane.f32.xlu0 %v2562
  %v2564 = vpop.xlane.xlu0 %2563
  %v2565 = vsel %vm2332, %v2559, 0.0
  %2566 = vadd.xlane.f32.xlu0 %v2565
  %v2567 = vpop.xlane.xlu0 %2566
  %v2568 = vsel %vm2332, %v2560, 0.0
  %2569 = vadd.xlane.f32.xlu0 %v2568
  %v2570 = vpop.xlane.xlu0 %2569
  %v2571 = vsel %vm2332, %v2561, 0.0
  %2572 = vadd.xlane.f32.xlu0 %v2571
  %v2573 = vpop.xlane.xlu0 %2572
  %v2574 = vmax.f32 %v2564, 1.0
  %v2575 = vmax.f32 %v2567, 1.0
  %v2576 = vmax.f32 %v2570, 1.0
  %v2577 = vmax.f32 %v2573, 1.0
  %v2578 = vrsqrt.pop %v2574
  %v2579 = vrsqrt.pop %v2575
  %v2580 = vrsqrt.pop %v2576
  %v2581 = vrsqrt.pop %v2577
  %v2582 = vpack.c.bf16 %v2559, %v2558
  %v2583 = vpack.c.bf16 %v2561, %v2560
  %v2584 = vld [vmem:[%s6] sm:$0xf]
  %v2585 = vld [vmem:[%s6 + $0x4] sm:$0xf]
  %v2586 = vld [vmem:[%s6 + $0x8] sm:$0xf]
  %v2587 = vld [vmem:[%s6 + $0xc] sm:$0xf]
  %v2588 = vld [vmem:[%s8 + $0x3] sm:$0x1]
  %v2589 = vpack.c.bf16 %v2079, %v2076
  %v2590 = vpack.c.bf16 %v2087, %v2084
  %v2595 = vunpack.c.l.b16 %v2584
  %v2596 = vunpack.c.l.b16 %v2585
  %v2597 = vunpack.c.l.b16 %v2586
  %v2598 = vunpack.c.l.b16 %v2587
  %v2599 = vpack.c.b16 %v2596, %v2595
  %v2600 = vpack.c.b16 %v2598, %v2597
  %v2604 = vsel %vm2332, %v2589, 0
  %v2607 = vsel %vm2332, %v2590, 0
  %2609 = vmatprep.subr.bf16.mxu0 0
  %2610 = vmatpush1.bf16.msra.mxu0 0
  %2611 = vmatprep.subr.bf16.mxu0 0
  %2612 = vmatpush1.bf16.msra.mxu0 0
  %2613 = vmatprep.subr.bf16.mxu0 0
  %2614 = vmatpush1.bf16.msra.mxu0 0
  %2615 = vmatprep.subr.bf16.mxu0 0
  %2616 = vmatpush1.bf16.msra.mxu0 0
  %2617 = vmatprep.subr.bf16.mxu0 0
  %2618 = vmatpush1.bf16.msra.mxu0 0
  %2619 = vmatprep.subr.bf16.mxu0 0
  %2620 = vmatpush1.bf16.msra.mxu0 0
  %2621 = vmatprep.subr.bf16.mxu0 0
  %2622 = vmatpush1.bf16.msra.mxu0 %v2600
  %2623 = vmatprep.subr.bf16.mxu0 0
  %2624 = vmatpush1.bf16.msra.mxu0 %v2599
  %2625 = vmatprep.subr.bf16.mxu0 0
  %2626 = vmatpush2.bf16.msra.mxu0 0
  %2627 = vmatprep.subr.bf16.mxu0 0
  %2628 = vmatpush2.bf16.msra.mxu0 0
  %2629 = vmatprep.subr.bf16.mxu0 0
  %2630 = vmatpush2.bf16.msra.mxu0 0
  %2631 = vmatprep.subr.bf16.mxu0 0
  %2632 = vmatpush2.bf16.msra.mxu0 0
  %2633 = vmatprep.subr.bf16.mxu0 0
  %2634 = vmatpush2.bf16.msra.mxu0 0
  %2635 = vmatprep.subr.bf16.mxu0 0
  %2636 = vmatpush2.bf16.msra.mxu0 0
  %2637 = vmatprep.subr.bf16.mxu0 0
  %2638 = vmatpush2.bf16.msra.mxu0 0
  %2639 = vmatprep.subr.bf16.mxu0 0
  %2640 = vmatpush2.bf16.msra.mxu0 0
  %2641 = vmatprep.mubr.bf16.mxu0 0
  %2642 = vmatmul.mubr.bf16.gmra.mxu0 %v2604
  %v2643 = vpop.f32.mrf.mxu0
  %v2644 = vadd.f32 0.0, %v2643
  %v2645 = vpop.f32.mrf.mxu0
  %v2646 = vpop.f32.mrf.mxu0
  %v2647 = vadd.f32 0.0, %v2646
  %v2648 = vpop.f32.mrf.mxu0
  %2649 = vmatprep.mubr.bf16.mxu0 0
  %2650 = vmatmul.mubr.bf16.gmra.mxu0 %v2607
  %v2651 = vpop.f32.mrf.mxu0
  %v2652 = vadd.f32 0.0, %v2651
  %v2653 = vpop.f32.mrf.mxu0
  %v2654 = vpop.f32.mrf.mxu0
  %v2655 = vadd.f32 0.0, %v2654
  %v2656 = vpop.f32.mrf.mxu0
  %2657 = vdwg.mxu0
  %v2658 = vmul.f32 %v2578, %v2644
  %v2659 = vmul.f32 %v2579, %v2647
  %v2660 = vmul.f32 %v2580, %v2652
  %v2661 = vmul.f32 %v2581, %v2655
  %v2662 = vpack.c.bf16 %v2659, %v2658
  %v2663 = vpack.c.bf16 %v2661, %v2660
  %v2665 = vsel %vm2332, %v2582, 0
  %v2668 = vsel %vm2332, %v2583, 0
  %2670 = vmatprep.subr.bf16.mxu0 0
  %2671 = vmatpush1.bf16.msra.mxu0 0
  %2672 = vmatprep.subr.bf16.mxu0 0
  %2673 = vmatpush1.bf16.msra.mxu0 0
  %2674 = vmatprep.subr.bf16.mxu0 0
  %2675 = vmatpush1.bf16.msra.mxu0 0
  %2676 = vmatprep.subr.bf16.mxu0 0
  %2677 = vmatpush1.bf16.msra.mxu0 0
  %2678 = vmatprep.subr.bf16.mxu0 0
  %2679 = vmatpush1.bf16.msra.mxu0 0
  %2680 = vmatprep.subr.bf16.mxu0 0
  %2681 = vmatpush1.bf16.msra.mxu0 0
  %2682 = vmatprep.subr.bf16.mxu0 0
  %2683 = vmatpush1.bf16.msra.mxu0 %v2663
  %2684 = vmatprep.subr.bf16.mxu0 0
  %2685 = vmatpush1.bf16.msra.mxu0 %v2662
  %2686 = vmatprep.subr.bf16.mxu0 0
  %2687 = vmatpush2.bf16.msra.mxu0 0
  %2688 = vmatprep.subr.bf16.mxu0 0
  %2689 = vmatpush2.bf16.msra.mxu0 0
  %2690 = vmatprep.subr.bf16.mxu0 0
  %2691 = vmatpush2.bf16.msra.mxu0 0
  %2692 = vmatprep.subr.bf16.mxu0 0
  %2693 = vmatpush2.bf16.msra.mxu0 0
  %2694 = vmatprep.subr.bf16.mxu0 0
  %2695 = vmatpush2.bf16.msra.mxu0 0
  %2696 = vmatprep.subr.bf16.mxu0 0
  %2697 = vmatpush2.bf16.msra.mxu0 0
  %2698 = vmatprep.subr.bf16.mxu0 0
  %2699 = vmatpush2.bf16.msra.mxu0 0
  %2700 = vmatprep.subr.bf16.mxu0 0
  %2701 = vmatpush2.bf16.msra.mxu0 0
  %2702 = vmatprep.mubr.bf16.mxu0 0
  %2703 = vmatmul.mubr.bf16.gmra.mxu0 %v2665
  %v2704 = vpop.f32.mrf.mxu0
  %v2705 = vadd.f32 0.0, %v2704
  %v2706 = vpop.f32.mrf.mxu0
  %v2707 = vpop.f32.mrf.mxu0
  %v2708 = vadd.f32 0.0, %v2707
  %v2709 = vpop.f32.mrf.mxu0
  %2710 = vmatprep.mubr.bf16.mxu0 0
  %2711 = vmatmul.mubr.bf16.gmra.mxu0 %v2668
  %v2712 = vpop.f32.mrf.mxu0
  %v2713 = vadd.f32 0.0, %v2712
  %v2714 = vpop.f32.mrf.mxu0
  %v2715 = vpop.f32.mrf.mxu0
  %v2716 = vadd.f32 0.0, %v2715
  %v2717 = vpop.f32.mrf.mxu0
  %2718 = vdwg.mxu0
  %v2719 = vmul.f32 %v2578, %v2705
  %v2720 = vmul.f32 %v2579, %v2708
  %v2721 = vmul.f32 %v2580, %v2713
  %v2722 = vmul.f32 %v2581, %v2716
  %v2723 = vlaneseq
  %v2724 = vshrl.u32 %v2723, 7
  %v2725 = vsub.s32 0, %v2724
  %v2726 = vrot.slane %v2588, %v2725
  %v2727 = vadd.f32 %v2719, %v2726
  %v2728 = vadd.f32 %v2720, %v2726
  %v2729 = vadd.f32 %v2721, %v2726
  %v2730 = vadd.f32 %v2722, %v2726
  %v2731 = vmax.f32 %v2727, 0.0
  %v2732 = vmax.f32 %v2728, 0.0
  %v2733 = vmax.f32 %v2729, 0.0
  %v2734 = vmax.f32 %v2730, 0.0
  %v2735 = vld [vmem:[%s6 + $0x10] sm:$0xf]
  %v2736 = vld [vmem:[%s6 + $0x14] sm:$0xf]
  %v2737 = vld [vmem:[%s6 + $0x18] sm:$0xf]
  %v2738 = vld [vmem:[%s6 + $0x1c] sm:$0xf]
  %v2739 = vld [vmem:[%s8 + $0x4] sm:$0x1]
  %v2740 = vpack.c.bf16 %v2732, %v2731
  %v2741 = vpack.c.bf16 %v2734, %v2733
  %v2746 = vunpack.c.l.b16 %v2735
  %v2747 = vunpack.c.l.b16 %v2736
  %v2748 = vunpack.c.l.b16 %v2737
  %v2749 = vunpack.c.l.b16 %v2738
  %v2750 = vpack.c.b16 %v2747, %v2746
  %v2751 = vpack.c.b16 %v2749, %v2748
  %v2755 = vsel %vm2332, %v2740, 0
  %v2758 = vsel %vm2332, %v2741, 0
  %2760 = vmatprep.subr.bf16.mxu0 0
  %2761 = vmatpush1.bf16.msra.mxu0 0
  %2762 = vmatprep.subr.bf16.mxu0 0
  %2763 = vmatpush1.bf16.msra.mxu0 0
  %2764 = vmatprep.subr.bf16.mxu0 0
  %2765 = vmatpush1.bf16.msra.mxu0 0
  %2766 = vmatprep.subr.bf16.mxu0 0
  %2767 = vmatpush1.bf16.msra.mxu0 0
  %2768 = vmatprep.subr.bf16.mxu0 0
  %2769 = vmatpush1.bf16.msra.mxu0 0
  %2770 = vmatprep.subr.bf16.mxu0 0
  %2771 = vmatpush1.bf16.msra.mxu0 0
  %2772 = vmatprep.subr.bf16.mxu0 0
  %2773 = vmatpush1.bf16.msra.mxu0 %v2751
  %2774 = vmatprep.subr.bf16.mxu0 0
  %2775 = vmatpush1.bf16.msra.mxu0 %v2750
  %2776 = vmatprep.subr.bf16.mxu0 0
  %2777 = vmatpush2.bf16.msra.mxu0 0
  %2778 = vmatprep.subr.bf16.mxu0 0
  %2779 = vmatpush2.bf16.msra.mxu0 0
  %2780 = vmatprep.subr.bf16.mxu0 0
  %2781 = vmatpush2.bf16.msra.mxu0 0
  %2782 = vmatprep.subr.bf16.mxu0 0
  %2783 = vmatpush2.bf16.msra.mxu0 0
  %2784 = vmatprep.subr.bf16.mxu0 0
  %2785 = vmatpush2.bf16.msra.mxu0 0
  %2786 = vmatprep.subr.bf16.mxu0 0
  %2787 = vmatpush2.bf16.msra.mxu0 0
  %2788 = vmatprep.subr.bf16.mxu0 0
  %2789 = vmatpush2.bf16.msra.mxu0 0
  %2790 = vmatprep.subr.bf16.mxu0 0
  %2791 = vmatpush2.bf16.msra.mxu0 0
  %2792 = vmatprep.mubr.bf16.mxu0 0
  %2793 = vmatmul.mubr.bf16.gmra.mxu0 %v2755
  %v2794 = vpop.f32.mrf.mxu0
  %v2795 = vadd.f32 0.0, %v2794
  %v2796 = vpop.f32.mrf.mxu0
  %v2797 = vpop.f32.mrf.mxu0
  %v2798 = vadd.f32 0.0, %v2797
  %v2799 = vpop.f32.mrf.mxu0
  %2800 = vmatprep.mubr.bf16.mxu0 0
  %2801 = vmatmul.mubr.bf16.gmra.mxu0 %v2758
  %v2802 = vpop.f32.mrf.mxu0
  %v2803 = vadd.f32 0.0, %v2802
  %v2804 = vpop.f32.mrf.mxu0
  %v2805 = vpop.f32.mrf.mxu0
  %v2806 = vadd.f32 0.0, %v2805
  %v2807 = vpop.f32.mrf.mxu0
  %2808 = vdwg.mxu0
  %v2809 = vmul.f32 %v2578, %v2795
  %v2810 = vmul.f32 %v2579, %v2798
  %v2811 = vmul.f32 %v2580, %v2803
  %v2812 = vmul.f32 %v2581, %v2806
  %v2813 = vpack.c.bf16 %v2810, %v2809
  %v2814 = vpack.c.bf16 %v2812, %v2811
  %2815 = vmatprep.subr.bf16.mxu0 0
  %2816 = vmatpush1.bf16.msra.mxu0 0
  %2817 = vmatprep.subr.bf16.mxu0 0
  %2818 = vmatpush1.bf16.msra.mxu0 0
  %2819 = vmatprep.subr.bf16.mxu0 0
  %2820 = vmatpush1.bf16.msra.mxu0 0
  %2821 = vmatprep.subr.bf16.mxu0 0
  %2822 = vmatpush1.bf16.msra.mxu0 0
  %2823 = vmatprep.subr.bf16.mxu0 0
  %2824 = vmatpush1.bf16.msra.mxu0 0
  %2825 = vmatprep.subr.bf16.mxu0 0
  %2826 = vmatpush1.bf16.msra.mxu0 0
  %2827 = vmatprep.subr.bf16.mxu0 0
  %2828 = vmatpush1.bf16.msra.mxu0 %v2814
  %2829 = vmatprep.subr.bf16.mxu0 0
  %2830 = vmatpush1.bf16.msra.mxu0 %v2813
  %2831 = vmatprep.subr.bf16.mxu0 0
  %2832 = vmatpush2.bf16.msra.mxu0 0
  %2833 = vmatprep.subr.bf16.mxu0 0
  %2834 = vmatpush2.bf16.msra.mxu0 0
  %2835 = vmatprep.subr.bf16.mxu0 0
  %2836 = vmatpush2.bf16.msra.mxu0 0
  %2837 = vmatprep.subr.bf16.mxu0 0
  %2838 = vmatpush2.bf16.msra.mxu0 0
  %2839 = vmatprep.subr.bf16.mxu0 0
  %2840 = vmatpush2.bf16.msra.mxu0 0
  %2841 = vmatprep.subr.bf16.mxu0 0
  %2842 = vmatpush2.bf16.msra.mxu0 0
  %2843 = vmatprep.subr.bf16.mxu0 0
  %2844 = vmatpush2.bf16.msra.mxu0 0
  %2845 = vmatprep.subr.bf16.mxu0 0
  %2846 = vmatpush2.bf16.msra.mxu0 0
  %2847 = vmatprep.mubr.bf16.mxu0 0
  %2848 = vmatmul.mubr.bf16.gmra.mxu0 %v2665
  %v2849 = vpop.f32.mrf.mxu0
  %v2850 = vadd.f32 0.0, %v2849
  %v2851 = vpop.f32.mrf.mxu0
  %v2852 = vpop.f32.mrf.mxu0
  %v2853 = vadd.f32 0.0, %v2852
  %v2854 = vpop.f32.mrf.mxu0
  %2855 = vmatprep.mubr.bf16.mxu0 0
  %2856 = vmatmul.mubr.bf16.gmra.mxu0 %v2668
  %v2857 = vpop.f32.mrf.mxu0
  %v2858 = vadd.f32 0.0, %v2857
  %v2859 = vpop.f32.mrf.mxu0
  %v2860 = vpop.f32.mrf.mxu0
  %v2861 = vadd.f32 0.0, %v2860
  %v2862 = vpop.f32.mrf.mxu0
  %2863 = vdwg.mxu0
  %v2864 = vmul.f32 %v2578, %v2850
  %v2865 = vmul.f32 %v2579, %v2853
  %v2866 = vmul.f32 %v2580, %v2858
  %v2867 = vmul.f32 %v2581, %v2861
  %v2868 = vlaneseq
  %v2869 = vshrl.u32 %v2868, 7
  %v2870 = vsub.s32 0, %v2869
  %v2871 = vrot.slane %v2739, %v2870
  %v2872 = vadd.f32 %v2864, %v2871
  %v2873 = vadd.f32 %v2865, %v2871
  %v2874 = vadd.f32 %v2866, %v2871
  %v2875 = vadd.f32 %v2867, %v2871
  %v2876 = vmax.f32 %v2872, 0.0
  %v2877 = vmax.f32 %v2873, 0.0
  %v2878 = vmax.f32 %v2874, 0.0
  %v2879 = vmax.f32 %v2875, 0.0
  %v2880 = vld [vmem:[%s6 + $0x20] sm:$0xf]
  %v2881 = vld [vmem:[%s6 + $0x24] sm:$0xf]
  %v2882 = vld [vmem:[%s6 + $0x28] sm:$0xf]
  %v2883 = vld [vmem:[%s6 + $0x2c] sm:$0xf]
  %v2884 = vld [vmem:[%s6 + $0x30] sm:$0xf]
  %v2885 = vld [vmem:[%s6 + $0x34] sm:$0xf]
  %v2886 = vld [vmem:[%s6 + $0x38] sm:$0xf]
  %v2887 = vld [vmem:[%s6 + $0x3c] sm:$0xf]
  %v2888 = vpack.c.bf16 %v2877, %v2876
  %v2889 = vpack.c.bf16 %v2879, %v2878
  %v2894 = vunpack.c.l.b16 %v2884
  %v2895 = vunpack.c.l.b16 %v2885
  %v2896 = vunpack.c.l.b16 %v2886
  %v2897 = vunpack.c.l.b16 %v2887
  %v2898 = vpack.c.b16 %v2895, %v2894
  %v2899 = vpack.c.b16 %v2897, %v2896
  %v2903 = vsel %vm2332, %v2888, 0
  %v2906 = vsel %vm2332, %v2889, 0
  %2908 = vmatprep.subr.bf16.mxu0 0
  %2909 = vmatpush1.bf16.msra.mxu0 0
  %2910 = vmatprep.subr.bf16.mxu0 0
  %2911 = vmatpush1.bf16.msra.mxu0 0
  %2912 = vmatprep.subr.bf16.mxu0 0
  %2913 = vmatpush1.bf16.msra.mxu0 0
  %2914 = vmatprep.subr.bf16.mxu0 0
  %2915 = vmatpush1.bf16.msra.mxu0 0
  %2916 = vmatprep.subr.bf16.mxu0 0
  %2917 = vmatpush1.bf16.msra.mxu0 0
  %2918 = vmatprep.subr.bf16.mxu0 0
  %2919 = vmatpush1.bf16.msra.mxu0 0
  %2920 = vmatprep.subr.bf16.mxu0 0
  %2921 = vmatpush1.bf16.msra.mxu0 %v2899
  %2922 = vmatprep.subr.bf16.mxu0 0
  %2923 = vmatpush1.bf16.msra.mxu0 %v2898
  %2924 = vmatprep.subr.bf16.mxu0 0
  %2925 = vmatpush2.bf16.msra.mxu0 0
  %2926 = vmatprep.subr.bf16.mxu0 0
  %2927 = vmatpush2.bf16.msra.mxu0 0
  %2928 = vmatprep.subr.bf16.mxu0 0
  %2929 = vmatpush2.bf16.msra.mxu0 0
  %2930 = vmatprep.subr.bf16.mxu0 0
  %2931 = vmatpush2.bf16.msra.mxu0 0
  %2932 = vmatprep.subr.bf16.mxu0 0
  %2933 = vmatpush2.bf16.msra.mxu0 0
  %2934 = vmatprep.subr.bf16.mxu0 0
  %2935 = vmatpush2.bf16.msra.mxu0 0
  %2936 = vmatprep.subr.bf16.mxu0 0
  %2937 = vmatpush2.bf16.msra.mxu0 0
  %2938 = vmatprep.subr.bf16.mxu0 0
  %2939 = vmatpush2.bf16.msra.mxu0 0
  %2940 = vmatprep.mubr.bf16.mxu0 0
  %2941 = vmatmul.mubr.bf16.gmra.mxu0 %v2903
  %v2942 = vpop.f32.mrf.mxu0
  %v2943 = vadd.f32 0.0, %v2942
  %v2944 = vpop.f32.mrf.mxu0
  %v2945 = vpop.f32.mrf.mxu0
  %v2946 = vadd.f32 0.0, %v2945
  %v2947 = vpop.f32.mrf.mxu0
  %2948 = vmatprep.mubr.bf16.mxu0 0
  %2949 = vmatmul.mubr.bf16.gmra.mxu0 %v2906
  %v2950 = vpop.f32.mrf.mxu0
  %v2951 = vadd.f32 0.0, %v2950
  %v2952 = vpop.f32.mrf.mxu0
  %v2953 = vpop.f32.mrf.mxu0
  %v2954 = vadd.f32 0.0, %v2953
  %v2955 = vpop.f32.mrf.mxu0
  %2956 = vdwg.mxu0
  %v2961 = vunpack.c.l.b16 %v2880
  %v2962 = vunpack.c.l.b16 %v2881
  %v2963 = vunpack.c.l.b16 %v2882
  %v2964 = vunpack.c.l.b16 %v2883
  %v2965 = vpack.c.b16 %v2962, %v2961
  %v2966 = vpack.c.b16 %v2964, %v2963
  %2969 = vmatprep.subr.bf16.mxu0 0
  %2970 = vmatpush1.bf16.msra.mxu0 0
  %2971 = vmatprep.subr.bf16.mxu0 0
  %2972 = vmatpush1.bf16.msra.mxu0 0
  %2973 = vmatprep.subr.bf16.mxu0 0
  %2974 = vmatpush1.bf16.msra.mxu0 0
  %2975 = vmatprep.subr.bf16.mxu0 0
  %2976 = vmatpush1.bf16.msra.mxu0 0
  %2977 = vmatprep.subr.bf16.mxu0 0
  %2978 = vmatpush1.bf16.msra.mxu0 0
  %2979 = vmatprep.subr.bf16.mxu0 0
  %2980 = vmatpush1.bf16.msra.mxu0 0
  %2981 = vmatprep.subr.bf16.mxu0 0
  %2982 = vmatpush1.bf16.msra.mxu0 %v2966
  %2983 = vmatprep.subr.bf16.mxu0 0
  %2984 = vmatpush1.bf16.msra.mxu0 %v2965
  %2985 = vmatprep.subr.bf16.mxu0 0
  %2986 = vmatpush2.bf16.msra.mxu0 0
  %2987 = vmatprep.subr.bf16.mxu0 0
  %2988 = vmatpush2.bf16.msra.mxu0 0
  %2989 = vmatprep.subr.bf16.mxu0 0
  %2990 = vmatpush2.bf16.msra.mxu0 0
  %2991 = vmatprep.subr.bf16.mxu0 0
  %2992 = vmatpush2.bf16.msra.mxu0 0
  %2993 = vmatprep.subr.bf16.mxu0 0
  %2994 = vmatpush2.bf16.msra.mxu0 0
  %2995 = vmatprep.subr.bf16.mxu0 0
  %2996 = vmatpush2.bf16.msra.mxu0 0
  %2997 = vmatprep.subr.bf16.mxu0 0
  %2998 = vmatpush2.bf16.msra.mxu0 0
  %2999 = vmatprep.subr.bf16.mxu0 0
  %3000 = vmatpush2.bf16.msra.mxu0 0
  %3001 = vmatprep.mubr.bf16.mxu0 0
  %3002 = vmatmul.mubr.bf16.gmra.mxu0 %v2755
  %v3003 = vpop.f32.mrf.mxu0
  %v3004 = vadd.f32 %v2943, %v3003
  %v3005 = vpop.f32.mrf.mxu0
  %v3006 = vpop.f32.mrf.mxu0
  %v3007 = vadd.f32 %v2946, %v3006
  %v3008 = vpop.f32.mrf.mxu0
  %3009 = vmatprep.mubr.bf16.mxu0 0
  %3010 = vmatmul.mubr.bf16.gmra.mxu0 %v2758
  %v3011 = vpop.f32.mrf.mxu0
  %v3012 = vadd.f32 %v2951, %v3011
  %v3013 = vpop.f32.mrf.mxu0
  %v3014 = vpop.f32.mrf.mxu0
  %v3015 = vadd.f32 %v2954, %v3014
  %v3016 = vpop.f32.mrf.mxu0
  %3017 = vdwg.mxu0
  %v3018 = vld [vmem:[%s8 + $0x5] sm:$0x1]
  %v3019 = vlaneseq
  %v3020 = vshrl.u32 %v3019, 7
  %v3021 = vsub.s32 0, %v3020
  %v3022 = vrot.slane %v3018, %v3021
  %v3023 = vadd.f32 %v3004, %v3022
  %v3024 = vadd.f32 %v3007, %v3022
  %v3025 = vadd.f32 %v3012, %v3022
  %v3026 = vadd.f32 %v3015, %v3022
  %v3027 = vmax.f32 %v3023, 0.0
  %v3028 = vmax.f32 %v3024, 0.0
  %v3029 = vmax.f32 %v3025, 0.0
  %v3030 = vmax.f32 %v3026, 0.0
  %v3031 = vpack.c.bf16 %v3028, %v3027
  %v3032 = vpack.c.bf16 %v3030, %v3029
  %v3033 = vsel %vm2332, %v136, 0
  %3035 = vmatprep.subr.bf16.mxu0 0
  %3036 = vmatpush1.bf16.msra.mxu0 0
  %3037 = vmatprep.subr.bf16.mxu0 0
  %3038 = vmatpush1.bf16.msra.mxu0 0
  %3039 = vmatprep.subr.bf16.mxu0 0
  %3040 = vmatpush1.bf16.msra.mxu0 0
  %3041 = vmatprep.subr.bf16.mxu0 0
  %3042 = vmatpush1.bf16.msra.mxu0 0
  %3043 = vmatprep.subr.bf16.mxu0 0
  %3044 = vmatpush1.bf16.msra.mxu0 0
  %3045 = vmatprep.subr.bf16.mxu0 0
  %3046 = vmatpush1.bf16.msra.mxu0 0
  %3047 = vmatprep.subr.bf16.mxu0 0
  %3048 = vmatpush1.bf16.msra.mxu0 %v3032
  %3049 = vmatprep.subr.bf16.mxu0 0
  %3050 = vmatpush1.bf16.msra.mxu0 %v3031
  %3051 = vmatprep.subr.bf16.mxu0 0
  %3052 = vmatpush2.bf16.msra.mxu0 0
  %3053 = vmatprep.subr.bf16.mxu0 0
  %3054 = vmatpush2.bf16.msra.mxu0 0
  %3055 = vmatprep.subr.bf16.mxu0 0
  %3056 = vmatpush2.bf16.msra.mxu0 0
  %3057 = vmatprep.subr.bf16.mxu0 0
  %3058 = vmatpush2.bf16.msra.mxu0 0
  %3059 = vmatprep.subr.bf16.mxu0 0
  %3060 = vmatpush2.bf16.msra.mxu0 0
  %3061 = vmatprep.subr.bf16.mxu0 0
  %3062 = vmatpush2.bf16.msra.mxu0 0
  %3063 = vmatprep.subr.bf16.mxu0 0
  %3064 = vmatpush2.bf16.msra.mxu0 0
  %3065 = vmatprep.subr.bf16.mxu0 0
  %3066 = vmatpush2.bf16.msra.mxu0 0
  %3067 = vmatprep.mubr.bf16.mxu0 0
  %3068 = vmatmul.mubr.bf16.gmra.mxu0 %v3033
  %v3069 = vpop.f32.mrf.mxu0
  %v3070 = vadd.f32 0.0, %v3069
  %v3071 = vpop.f32.mrf.mxu0
  %v3072 = vpop.f32.mrf.mxu0
  %v3073 = vpop.f32.mrf.mxu0
  %3074 = vdwg.mxu0
  %v3075 = vld [vmem:[%s8 + $0x6] sm:$0x1]
  %v3076 = vlaneseq
  %v3077 = vshrl.u32 %v3076, 7
  %v3078 = vsub.s32 0, %v3077
  %v3079 = vrot.slane %v3075, %v3078
  %v3080 = vmul.f32 %v1582, %v3079
  %v3081 = vld [vmem:[%s8 + $0x8] sm:$0x1]
  %v3082 = vlaneseq
  %v3083 = vshrl.u32 %v3082, 7
  %v3084 = vsub.s32 0, %v3083
  %v3085 = vrot.slane %v3081, %v3084
  %v3086 = vadd.f32 %v3080, %v3085
  %v3087 = vld [vmem:[%s8 + $0x7] sm:$0x1]
  %v3088 = vlaneseq
  %v3089 = vshrl.u32 %v3088, 7
  %v3090 = vsub.s32 0, %v3089
  %v3091 = vrot.slane %v3087, %v3090
  %v3092 = vmul.f32 %v3070, %v3091
  %v3093 = vld [vmem:[%s8 + $0x9] sm:$0x1]
  %v3094 = vlaneseq
  %v3095 = vshrl.u32 %v3094, 7
  %v3096 = vsub.s32 0, %v3095
  %v3097 = vrot.slane %v3093, %v3096
  %v3098 = vadd.f32 %v3092, %v3097
  %v3099 = vld [vmem:[%s7] sm:$0xf]
  %v3100 = vld [vmem:[%s7 + $0x4] sm:$0xf]
  %v3101 = vld [vmem:[%s7 + $0x8] sm:$0xf]
  %v3102 = vld [vmem:[%s7 + $0xc] sm:$0xf]
  %v3103 = vpack.c.bf16 %v3086, %v3086
  %v3104 = vld [vmem:[%s7 + $0x10] sm:$0xf]
  %v3105 = vld [vmem:[%s7 + $0x14] sm:$0xf]
  %v3106 = vld [vmem:[%s7 + $0x18] sm:$0xf]
  %v3107 = vld [vmem:[%s7 + $0x1c] sm:$0xf]
  %v3108 = vpack.c.bf16 %v3098, %v3098
  %v3113 = vunpack.c.l.b16 %v3104
  %v3114 = vunpack.c.l.b16 %v3105
  %v3115 = vunpack.c.l.b16 %v3106
  %v3116 = vunpack.c.l.b16 %v3107
  %v3117 = vpack.c.b16 %v3114, %v3113
  %v3118 = vpack.c.b16 %v3116, %v3115
  %v3122 = vsel %vm2332, %v3108, 0
  %3124 = vmatprep.subr.bf16.mxu0 0
  %3125 = vmatpush1.bf16.msra.mxu0 0
  %3126 = vmatprep.subr.bf16.mxu0 0
  %3127 = vmatpush1.bf16.msra.mxu0 0
  %3128 = vmatprep.subr.bf16.mxu0 0
  %3129 = vmatpush1.bf16.msra.mxu0 0
  %3130 = vmatprep.subr.bf16.mxu0 0
  %3131 = vmatpush1.bf16.msra.mxu0 0
  %3132 = vmatprep.subr.bf16.mxu0 0
  %3133 = vmatpush1.bf16.msra.mxu0 0
  %3134 = vmatprep.subr.bf16.mxu0 0
  %3135 = vmatpush1.bf16.msra.mxu0 0
  %3136 = vmatprep.subr.bf16.mxu0 0
  %3137 = vmatpush1.bf16.msra.mxu0 %v3118
  %3138 = vmatprep.subr.bf16.mxu0 0
  %3139 = vmatpush1.bf16.msra.mxu0 %v3117
  %3140 = vmatprep.subr.bf16.mxu0 0
  %3141 = vmatpush2.bf16.msra.mxu0 0
  %3142 = vmatprep.subr.bf16.mxu0 0
  %3143 = vmatpush2.bf16.msra.mxu0 0
  %3144 = vmatprep.subr.bf16.mxu0 0
  %3145 = vmatpush2.bf16.msra.mxu0 0
  %3146 = vmatprep.subr.bf16.mxu0 0
  %3147 = vmatpush2.bf16.msra.mxu0 0
  %3148 = vmatprep.subr.bf16.mxu0 0
  %3149 = vmatpush2.bf16.msra.mxu0 0
  %3150 = vmatprep.subr.bf16.mxu0 0
  %3151 = vmatpush2.bf16.msra.mxu0 0
  %3152 = vmatprep.subr.bf16.mxu0 0
  %3153 = vmatpush2.bf16.msra.mxu0 0
  %3154 = vmatprep.subr.bf16.mxu0 0
  %3155 = vmatpush2.bf16.msra.mxu0 0
  %3156 = vmatprep.mubr.bf16.mxu0 0
  %3157 = vmatmul.mubr.bf16.gmra.mxu0 %v3122
  %v3158 = vpop.f32.mrf.mxu0
  %v3159 = vadd.f32 0.0, %v3158
  %v3160 = vpop.f32.mrf.mxu0
  %v3161 = vpop.f32.mrf.mxu0
  %v3162 = vpop.f32.mrf.mxu0
  %3163 = vdwg.mxu0
  %v3168 = vunpack.c.l.b16 %v3099
  %v3169 = vunpack.c.l.b16 %v3100
  %v3170 = vunpack.c.l.b16 %v3101
  %v3171 = vunpack.c.l.b16 %v3102
  %v3172 = vpack.c.b16 %v3169, %v3168
  %v3173 = vpack.c.b16 %v3171, %v3170
  %v3177 = vsel %vm2332, %v3103, 0
  %3179 = vmatprep.subr.bf16.mxu0 0
  %3180 = vmatpush1.bf16.msra.mxu0 0
  %3181 = vmatprep.subr.bf16.mxu0 0
  %3182 = vmatpush1.bf16.msra.mxu0 0
  %3183 = vmatprep.subr.bf16.mxu0 0
  %3184 = vmatpush1.bf16.msra.mxu0 0
  %3185 = vmatprep.subr.bf16.mxu0 0
  %3186 = vmatpush1.bf16.msra.mxu0 0
  %3187 = vmatprep.subr.bf16.mxu0 0
  %3188 = vmatpush1.bf16.msra.mxu0 0
  %3189 = vmatprep.subr.bf16.mxu0 0
  %3190 = vmatpush1.bf16.msra.mxu0 0
  %3191 = vmatprep.subr.bf16.mxu0 0
  %3192 = vmatpush1.bf16.msra.mxu0 %v3173
  %3193 = vmatprep.subr.bf16.mxu0 0
  %3194 = vmatpush1.bf16.msra.mxu0 %v3172
  %3195 = vmatprep.subr.bf16.mxu0 0
  %3196 = vmatpush2.bf16.msra.mxu0 0
  %3197 = vmatprep.subr.bf16.mxu0 0
  %3198 = vmatpush2.bf16.msra.mxu0 0
  %3199 = vmatprep.subr.bf16.mxu0 0
  %3200 = vmatpush2.bf16.msra.mxu0 0
  %3201 = vmatprep.subr.bf16.mxu0 0
  %3202 = vmatpush2.bf16.msra.mxu0 0
  %3203 = vmatprep.subr.bf16.mxu0 0
  %3204 = vmatpush2.bf16.msra.mxu0 0
  %3205 = vmatprep.subr.bf16.mxu0 0
  %3206 = vmatpush2.bf16.msra.mxu0 0
  %3207 = vmatprep.subr.bf16.mxu0 0
  %3208 = vmatpush2.bf16.msra.mxu0 0
  %3209 = vmatprep.subr.bf16.mxu0 0
  %3210 = vmatpush2.bf16.msra.mxu0 0
  %3211 = vmatprep.mubr.bf16.mxu0 0
  %3212 = vmatmul.mubr.bf16.gmra.mxu0 %v3177
  %v3213 = vpop.f32.mrf.mxu0
  %v3214 = vadd.f32 %v3159, %v3213
  %v3215 = vpop.f32.mrf.mxu0
  %v3216 = vpop.f32.mrf.mxu0
  %v3217 = vpop.f32.mrf.mxu0
  %3218 = vdwg.mxu0
  %v3219 = vld [vmem:[%s8 + $0xa] sm:$0x1]
  %v3220 = vlaneseq
  %v3221 = vshrl.u32 %v3220, 7
  %v3222 = vsub.s32 0, %v3221
  %v3223 = vrot.slane %v3219, %v3222
  %v3224 = vadd.f32 %v3214, %v3223
  %v3225 = vmax.f32 %v3224, 0.0
  %v3226 = vld [vmem:[%s7 + $0x20] sm:$0xf]
  %v3227 = vld [vmem:[%s7 + $0x24] sm:$0xf]
  %v3228 = vld [vmem:[%s7 + $0x28] sm:$0xf]
  %v3229 = vld [vmem:[%s7 + $0x2c] sm:$0xf]
  %v3230 = vpack.c.bf16 %v3225, %v3225
  %v3231 = vld [vmem:[%s8 + $0xb] sm:$0x1]
  %v3232 = vlaneseq
  %v3233 = vshrl.u32 %v3232, 7
  %v3234 = vsub.s32 0, %v3233
  %v3235 = vrot.slane %v3231, %v3234
  %v3240 = vunpack.c.l.b16 %v3226
  %v3241 = vunpack.c.l.b16 %v3227
  %v3242 = vunpack.c.l.b16 %v3228
  %v3243 = vunpack.c.l.b16 %v3229
  %v3244 = vpack.c.b16 %v3241, %v3240
  %v3245 = vpack.c.b16 %v3243, %v3242
  %v3249 = vsel %vm2332, %v3230, 0
  %3251 = vmatprep.subr.bf16.mxu0 0
  %3252 = vmatpush1.bf16.msra.mxu0 0
  %3253 = vmatprep.subr.bf16.mxu0 0
  %3254 = vmatpush1.bf16.msra.mxu0 0
  %3255 = vmatprep.subr.bf16.mxu0 0
  %3256 = vmatpush1.bf16.msra.mxu0 0
  %3257 = vmatprep.subr.bf16.mxu0 0
  %3258 = vmatpush1.bf16.msra.mxu0 0
  %3259 = vmatprep.subr.bf16.mxu0 0
  %3260 = vmatpush1.bf16.msra.mxu0 0
  %3261 = vmatprep.subr.bf16.mxu0 0
  %3262 = vmatpush1.bf16.msra.mxu0 0
  %3263 = vmatprep.subr.bf16.mxu0 0
  %3264 = vmatpush1.bf16.msra.mxu0 %v3245
  %3265 = vmatprep.subr.bf16.mxu0 0
  %3266 = vmatpush1.bf16.msra.mxu0 %v3244
  %3267 = vmatprep.subr.bf16.mxu0 0
  %3268 = vmatpush2.bf16.msra.mxu0 0
  %3269 = vmatprep.subr.bf16.mxu0 0
  %3270 = vmatpush2.bf16.msra.mxu0 0
  %3271 = vmatprep.subr.bf16.mxu0 0
  %3272 = vmatpush2.bf16.msra.mxu0 0
  %3273 = vmatprep.subr.bf16.mxu0 0
  %3274 = vmatpush2.bf16.msra.mxu0 0
  %3275 = vmatprep.subr.bf16.mxu0 0
  %3276 = vmatpush2.bf16.msra.mxu0 0
  %3277 = vmatprep.subr.bf16.mxu0 0
  %3278 = vmatpush2.bf16.msra.mxu0 0
  %3279 = vmatprep.subr.bf16.mxu0 0
  %3280 = vmatpush2.bf16.msra.mxu0 0
  %3281 = vmatprep.subr.bf16.mxu0 0
  %3282 = vmatpush2.bf16.msra.mxu0 0
  %3283 = vmatprep.mubr.bf16.mxu0 0
  %3284 = vmatmul.mubr.bf16.gmra.mxu0 %v3249
  %v3285 = vpop.f32.mrf.mxu0
  %v3286 = vadd.f32 %v3235, %v3285
  %v3287 = vpop.f32.mrf.mxu0
  %v3288 = vpop.f32.mrf.mxu0
  %v3289 = vpop.f32.mrf.mxu0
  %3290 = vdwg.mxu0
  %3291 = vmax.xlane.f32.xlu0 %v3286
  %v3292 = vpop.xlane.xlu0 %3291
  %v3293 = vsub.f32 %v3286, %v3292
  %v3294 = vmul.f32 %v3293, 1.442695
  %v3295 = vpow.pop %v3294
  %3296 = vadd.xlane.f32.xlu0 %v3295
  %v3297 = vpop.xlane.xlu0 %3296
  %v3298 = vrcp.pop %v3297
  %v3299 = vmul.f32 %v3295, %v3298
  %vm3300 = vcmp.eq.s32.totalorder %v103, 3
  %vm3301 = vcmp.eq.s32.totalorder %v86, 0
  %vm3302 = vmand %vm3300, %vm3301
  %v3303 = vsel %vm3302, %v2373, %v3299
  %vm3304 = vcmp.eq.s32.totalorder %v103, 4
  %vm3305 = vmand %vm3304, %vm3301
  %v3306 = vstv %s2557
  %v3307 = vsel %vm3305, %v3306, %v3303
  %3308 = vst [vmem:[%s10] sm:$0xff] %v3307
  // Predicated region
  $region42: #{diffpool_forward.1} parent=0 // pred_check
    _
  $region43: #{diffpool_forward.1} parent=0 // pred_check_branch
    %3310 = sbr.rel (0) target = $region45
  $region44: #{diffpool_forward.1} parent=0 // pred_region
    _
  $region45: #{diffpool_forward.1} parent=0 // pred_fallthru
    _
  // Predicated region
  $region46: #{diffpool_forward.1} parent=0 // pred_check
    _
  $region47: #{diffpool_forward.1} parent=0 // pred_check_branch
    %3312 = sbr.rel (0) target = $region49
  $region48: #{diffpool_forward.1} parent=0 // pred_region
    _
  $region49: #{diffpool_forward.1} parent=0 // pred_fallthru
    _

</llo_original>
